<compile_context>
chip_gen: v7x
topology: tpu7x:2x2x1
jax: 0.10.0
libtpu: 0.0.40
codegen_flags: <defaults>
</compile_context>

<pallas_src>
import functools

import jax
import jax.numpy as jnp
from jax.experimental import pallas as pl
from jax.experimental.pallas import tpu as pltpu

_VMEM_LIMIT = 32 * 1024 * 1024  # explicit scoped-VMEM budget (safe on v7x)


def _pick_tile(dim, candidates):
    """Largest candidate that evenly divides `dim`, else the full dim."""
    for c in candidates:
        if dim >= c and dim % c == 0:
            return c
    return dim


# ----------------------------------------------------------------------------
# Fused GEMM kernel:  (M,K)bf16 @ (K,N)bf16 + bias, with fused epilogue.
#   act == "leaky" -> leaky_relu(0.2)
#   act == "stats" -> raw output (bf16) + per-tile per-channel sum / sumsq
# ----------------------------------------------------------------------------
def _gemm_kernel(a_ref, w_ref, b_ref, o_ref, *rest, act):
    if act == "stats":
        stats_ref, acc_ref = rest
    else:
        (acc_ref,) = rest

    k_idx = pl.program_id(2)

    @pl.when(k_idx == 0)
    def _():
        acc_ref[...] = jnp.zeros_like(acc_ref)

    acc_ref[...] += jnp.dot(a_ref[...], w_ref[...],
                            preferred_element_type=jnp.float32)

    @pl.when(k_idx == pl.num_programs(2) - 1)
    def _():
        y = acc_ref[...] + b_ref[...]            # f32 (tm, tn)
        if act == "leaky":
            y = jnp.where(y >= 0, y, 0.2 * y)
        o_ref[...] = y.astype(o_ref.dtype)
        if act == "stats":
            # Per-channel partial statistics from the f32 accumulator:
            # row 0 = sum, row 1 = sum of squares.
            s = jnp.sum(y, axis=0, keepdims=True)          # (1, tn)
            sq = jnp.sum(y * y, axis=0, keepdims=True)     # (1, tn)
            stats_ref[...] = jnp.concatenate([s, sq], axis=0)[None]


def conv_gemm(patches, wmat, bias, act, out_dtype):
    """patches (M,K) bf16 @ wmat (K,N) bf16 + bias (1,N) f32, fused epilogue."""
    M, K = patches.shape
    _, N = wmat.shape
    tm = _pick_tile(M, (512, 256, 128, 64, 32, 16, 8))
    tk = _pick_tile(K, (2048, 1024, 512, 256, 128))
    tn = _pick_tile(N, (256, 128))           # 256-wide when possible (v6e/v7x)
    gm, gn, gk = M // tm, N // tn, K // tk

    # Deeper weight buffering only when the K loop actually streams weights.
    if gk >= 3:
        w_spec = pl.BlockSpec((tk, tn), lambda i, j, k: (k, j),
                              pipeline_mode=pl.Buffered(3))
    else:
        w_spec = pl.BlockSpec((tk, tn), lambda i, j, k: (k, j))

    in_specs = [
        pl.BlockSpec((tm, tk), lambda i, j, k: (i, k)),
        w_spec,
        pl.BlockSpec((1, tn), lambda i, j, k: (0, j)),
    ]
    out_specs = pl.BlockSpec((tm, tn), lambda i, j, k: (i, j))
    out_shape = jax.ShapeDtypeStruct((M, N), out_dtype)
    if act == "stats":
        out_specs = (out_specs,
                     pl.BlockSpec((1, 2, tn), lambda i, j, k: (i, 0, j)))
        out_shape = (out_shape,
                     jax.ShapeDtypeStruct((gm, 2, N), jnp.float32))

    return pl.pallas_call(
        functools.partial(_gemm_kernel, act=act),
        out_shape=out_shape,
        grid_spec=pltpu.PrefetchScalarGridSpec(
            num_scalar_prefetch=0,
            grid=(gm, gn, gk),
            in_specs=in_specs,
            out_specs=out_specs,
            scratch_shapes=[pltpu.VMEM((tm, tn), jnp.float32)]),
        compiler_params=pltpu.CompilerParams(
            dimension_semantics=("parallel", "parallel", "arbitrary"),
            vmem_limit_bytes=_VMEM_LIMIT),
    )(patches, wmat, bias)


# ----------------------------------------------------------------------------
# im2col (channel-last) + conv layer glue (plain JAX reshapes / slices)
# ----------------------------------------------------------------------------
def im2col_nhwc(x, k, stride, pad):
    """(B,H,W,C) -> (B*OH*OW, k*k*C) patches, feature order (kh, kw, C)."""
    B, H, W, C = x.shape
    xp = jnp.pad(x, ((0, 0), (pad, pad), (pad, pad), (0, 0)))
    OH = (H + 2 * pad - k) // stride + 1
    OW = (W + 2 * pad - k) // stride + 1
    cols = []
    for i in range(k):
        for j in range(k):
            cols.append(xp[:, i:i + (OH - 1) * stride + 1:stride,
                              j:j + (OW - 1) * stride + 1:stride, :])
    patches = jnp.concatenate(cols, axis=-1)          # (B, OH, OW, k*k*C)
    return patches.reshape(B * OH * OW, k * k * C), OH, OW


def conv_layer(x_nhwc, w, b, stride, pad, act, out_dtype):
    """PyTorch-semantics Conv2d via im2col GEMM. w:(Cout,Cin,kh,kw) b:(Cout,)."""
    Cout, Cin, kh, kw = w.shape
    B = x_nhwc.shape[0]
    patches, OH, OW = im2col_nhwc(x_nhwc, kh, stride, pad)
    patches = patches.astype(jnp.bfloat16)
    wmat = jnp.transpose(w, (2, 3, 1, 0)).reshape(kh * kw * Cin, Cout)
    wmat = wmat.astype(jnp.bfloat16)
    bias = b.reshape(1, Cout).astype(jnp.float32)
    out = conv_gemm(patches, wmat, bias, act, out_dtype)
    return out, (B, OH, OW, Cout)


# ----------------------------------------------------------------------------
# Parameters (mimics discriminator.weight_init(0.0, 0.02); BN affine = default)
# ----------------------------------------------------------------------------
def init_params(key, c):
    shapes = [
        (c,       3,     4, 4),
        (c * 2,   c,     4, 4),
        (c * 4,   c * 2, 4, 4),
        (c * 8,   c * 4, 4, 4),
        (1,       c * 8, 4, 4),
    ]
    params = {}
    keys = jax.random.split(key, len(shapes))
    for idx, (k, s) in enumerate(zip(keys, shapes), start=1):
        params[f"w{idx}"] = 0.02 * jax.random.normal(k, s, dtype=jnp.float32)
        params[f"b{idx}"] = jnp.zeros((s[0],), dtype=jnp.float32)
    return params


# ----------------------------------------------------------------------------
# Forward
# ----------------------------------------------------------------------------
@jax.jit
def discriminator_forward(x_nchw, params):
    eps = 1e-5
    x = jnp.transpose(x_nchw, (0, 2, 3, 1)).astype(jnp.float32)  # NHWC once

    # Conv_1 -> leaky_relu (fused in GEMM epilogue), bf16 activations out.
    y, (B, OH, OW, C) = conv_layer(x, params["w1"], params["b1"], 2, 1,
                                   "leaky", jnp.bfloat16)
    x = y.reshape(B, OH, OW, C)

    # Conv_{2,3,4} -> BN -> leaky_relu:
    #   GEMM emits bf16 conv output + f32 per-tile channel sum/sumsq partials;
    #   tiny partial reduction + scale/shift in plain JAX; the affine+leaky is
    #   plain JAX so XLA fuses it into the next layer's im2col producer fusion
    #   (no dedicated elementwise pass over HBM).
    for idx in (2, 3, 4):
        (y, stats), (B, OH, OW, C) = conv_layer(
            x, params[f"w{idx}"], params[f"b{idx}"], 2, 1,
            "stats", jnp.bfloat16)
        M = B * OH * OW
        s = jnp.sum(stats[:, 0, :], axis=0)           # (C,)
        sq = jnp.sum(stats[:, 1, :], axis=0)          # (C,)
        mean = s / M
        var = jnp.maximum(sq / M - mean * mean, 0.0)  # biased batch variance
        inv = jax.lax.rsqrt(var + eps)
        scale = inv.reshape(1, C)                         # gamma = 1
        shift = (-mean * inv).reshape(1, C)               # beta  = 0
        z = y.astype(jnp.float32).reshape(M, C) * scale + shift
        z = jnp.where(z >= 0, z, 0.2 * z)
        x = z.reshape(B, OH, OW, C)

    # Conv_5 (4x4, stride 1, no pad -> 1x1 output, N=1) + sigmoid as a plain
    # JAX mat-vec: a Pallas launch here is pure overhead (lane width 1).
    w5, b5 = params["w5"], params["b5"]
    Cout, Cin, kh, kw = w5.shape
    a5 = x.reshape(B, kh * kw * Cin)                              # (h, w, c)
    w5m = jnp.transpose(w5, (2, 3, 1, 0)).reshape(kh * kw * Cin, Cout)
    logits = a5 @ w5m + b5.reshape(1, Cout)
    out = jax.nn.sigmoid(logits)
    return out.reshape(B, 1, 1, 1)


# ----------------------------------------------------------------------------
# Plain-JAX reference (f32) of the PyTorch module for a correctness check.
# ----------------------------------------------------------------------------
def reference_forward(x, params):
    def conv(x, w, b, stride, pad):
        out = jax.lax.conv_general_dilated(
            x, w, window_strides=(stride, stride),
            padding=((pad, pad), (pad, pad)),
            dimension_numbers=("NCHW", "OIHW", "NCHW"))
        return out + b.reshape(1, -1, 1, 1)

    def bn(x):
        mean = jnp.mean(x, axis=(0, 2, 3), keepdims=True)
        var = jnp.mean((x - mean) ** 2, axis=(0, 2, 3), keepdims=True)
        return (x - mean) * jax.lax.rsqrt(var + 1e-5)

    def lrelu(x):
        return jnp.where(x >= 0, x, 0.2 * x)

    x = lrelu(conv(x, params["w1"], params["b1"], 2, 1))
    x = lrelu(bn(conv(x, params["w2"], params["b2"], 2, 1)))
    x = lrelu(bn(conv(x, params["w3"], params["b3"], 2, 1)))
    x = lrelu(bn(conv(x, params["w4"], params["b4"], 2, 1)))
    return jax.nn.sigmoid(conv(x, params["w5"], params["b5"], 1, 0))


if __name__ == "__main__":
    c = 8          # small channel base for a quick run (PyTorch default: 128)
    B = 2
    key = jax.random.PRNGKey(0)
    kx, kp = jax.random.split(key)
    # Input must be 64x64 so Conv_5 (4x4, stride 1, no pad) sees a 4x4 map.
    x = jax.random.normal(kx, (B, 3, 64, 64), dtype=jnp.float32)
    params = init_params(kp, c)

    out = jax.block_until_ready(discriminator_forward(x, params))
    assert out.shape == (B, 1, 1, 1)
    assert bool(jnp.all((out >= 0.0) & (out <= 1.0)))

    ref = jax.block_until_ready(reference_forward(x, params))
    max_err = float(jnp.max(jnp.abs(out - ref)))
    assert max_err < 5e-2, f"mismatch vs reference: {max_err}"

    print("KERNEL_OK")
</pallas_src>

<mosaic_0001>
module attributes {stable_mosaic.version = 11 : i64} {
  func.func @_gemm_kernel(%arg0: i32, %arg1: i32, %arg2: i32, %arg3: memref<512x48xbf16, #tpu.memory_space<vmem>>, %arg4: memref<48x8xbf16, #tpu.memory_space<vmem>>, %arg5: memref<1x8xf32, #tpu.memory_space<vmem>>, %arg6: memref<512x8xbf16, #tpu.memory_space<vmem>>, %arg7: memref<512x8xf32, #tpu.memory_space<vmem>>) attributes {dimension_semantics = [#tpu.dimension_semantics<parallel>, #tpu.dimension_semantics<parallel>, #tpu.dimension_semantics<arbitrary>], iteration_bounds = array<i64: 4, 1, 1>, scalar_prefetch = 0 : i64, scratch_operands = 1 : i64, tpu.core_type = #tpu.core_type<tc>, window_params = [{transform_indices = @transform_0, window_bounds = array<i64: 512, 48>}, {transform_indices = @transform_1, window_bounds = array<i64: 48, 8>}, {transform_indices = @transform_2, window_bounds = array<i64: 1, 8>}, {transform_indices = @transform_3, window_bounds = array<i64: 512, 8>}]} {
    %c0_i32 = arith.constant 0 : i32
    %0 = arith.cmpi eq, %arg2, %c0_i32 : i32
    %1 = arith.extui %0 : i1 to i32
    %c0_i32_0 = arith.constant 0 : i32
    %2 = arith.cmpi ne, %1, %c0_i32_0 : i32
    scf.if %2 {
      %cst_10 = arith.constant 0.000000e+00 : f32
      %12 = vector.broadcast %cst_10 : f32 to vector<512x8xf32>
      %c0_11 = arith.constant 0 : index
      %c0_12 = arith.constant 0 : index
      %13 = vector.load %arg7[%c0_11, %c0_12] : memref<512x8xf32, #tpu.memory_space<vmem>>, vector<512x8xf32>
      tpu.vector_store %arg7[%c0_11, %c0_12], %12 {strides = array<i32>} : memref<512x8xf32, #tpu.memory_space<vmem>>, vector<512x8xf32>,
    } else {
    }
    %c0 = arith.constant 0 : index
    %c0_1 = arith.constant 0 : index
    %3 = vector.load %arg7[%c0, %c0_1] : memref<512x8xf32, #tpu.memory_space<vmem>>, vector<512x8xf32>
    %c0_2 = arith.constant 0 : index
    %c0_3 = arith.constant 0 : index
    %4 = vector.load %arg3[%c0_2, %c0_3] : memref<512x48xbf16, #tpu.memory_space<vmem>>, vector<512x48xbf16>
    %c0_4 = arith.constant 0 : index
    %c0_5 = arith.constant 0 : index
    %5 = vector.load %arg4[%c0_4, %c0_5] : memref<48x8xbf16, #tpu.memory_space<vmem>>, vector<48x8xbf16>
    %cst = arith.constant dense<0.000000e+00> : vector<512x8xf32>
    %6 = tpu.matmul %4, %5, %cst {dimension_numbers = #tpu.dot_dimension_numbers<[1], [0], [0], [1], [0, 0, 1, 1], [], []>} : vector<512x48xbf16>, vector<48x8xbf16>, vector<512x8xf32> -> vector<512x8xf32>
    %7 = arith.addf %3, %6 : vector<512x8xf32>
    %c0_6 = arith.constant 0 : index
    %c0_7 = arith.constant 0 : index
    %8 = vector.load %arg7[%c0_6, %c0_7] : memref<512x8xf32, #tpu.memory_space<vmem>>, vector<512x8xf32>
    tpu.vector_store %arg7[%c0_6, %c0_7], %7 {strides = array<i32>} : memref<512x8xf32, #tpu.memory_space<vmem>>, vector<512x8xf32>,
    %c0_i32_8 = arith.constant 0 : i32
    %9 = arith.cmpi eq, %arg2, %c0_i32_8 : i32
    %10 = arith.extui %9 : i1 to i32
    %c0_i32_9 = arith.constant 0 : i32
    %11 = arith.cmpi ne, %10, %c0_i32_9 : i32
    scf.if %11 {
      %c0_10 = arith.constant 0 : index
      %c0_11 = arith.constant 0 : index
      %12 = vector.load %arg7[%c0_10, %c0_11] : memref<512x8xf32, #tpu.memory_space<vmem>>, vector<512x8xf32>
      %c0_12 = arith.constant 0 : index
      %c0_13 = arith.constant 0 : index
      %13 = vector.load %arg5[%c0_12, %c0_13] : memref<1x8xf32, #tpu.memory_space<vmem>>, vector<1x8xf32>
      %14 = vector.broadcast %13 : vector<1x8xf32> to vector<512x8xf32>
      %15 = arith.addf %12, %14 : vector<512x8xf32>
      %cst_14 = arith.constant 0.000000e+00 : f32
      %16 = vector.broadcast %cst_14 : f32 to vector<512x8xf32>
      %17 = arith.cmpf oge, %15, %16 : vector<512x8xf32>
      %cst_15 = arith.constant 2.000000e-01 : f32
      %18 = vector.broadcast %cst_15 : f32 to vector<512x8xf32>
      %19 = arith.mulf %18, %15 : vector<512x8xf32>
      %20 = arith.select %17, %15, %19 : vector<512x8xi1>, vector<512x8xf32>
      %21 = arith.truncf %20 : vector<512x8xf32> to vector<512x8xbf16>
      %c0_16 = arith.constant 0 : index
      %c0_17 = arith.constant 0 : index
      %22 = vector.load %arg6[%c0_16, %c0_17] : memref<512x8xbf16, #tpu.memory_space<vmem>>, vector<512x8xbf16>
      tpu.vector_store %arg6[%c0_16, %c0_17], %21 {strides = array<i32>} : memref<512x8xbf16, #tpu.memory_space<vmem>>, vector<512x8xbf16>,
    } else {
    }
    return
  }
  func.func @transform_0(%arg0: i32, %arg1: i32, %arg2: i32) -> (i32, i32) {
    %c0_i32 = arith.constant 0 : i32
    return %arg0, %arg2 : i32, i32
  }
  func.func @transform_1(%arg0: i32, %arg1: i32, %arg2: i32) -> (i32, i32) {
    %c0_i32 = arith.constant 0 : i32
    return %arg2, %arg1 : i32, i32
  }
  func.func @transform_2(%arg0: i32, %arg1: i32, %arg2: i32) -> (i32, i32) {
    %c0_i32 = arith.constant 0 : i32
    %c0_i32_0 = arith.constant 0 : i32
    return %c0_i32, %arg1 : i32, i32
  }
  func.func @transform_3(%arg0: i32, %arg1: i32, %arg2: i32) -> (i32, i32) {
    %c0_i32 = arith.constant 0 : i32
    return %arg0, %arg1 : i32, i32
  }
}

module attributes {stable_mosaic.version = 11 : i64} {
  func.func @_gemm_kernel(%arg0: i32, %arg1: i32, %arg2: i32, %arg3: memref<512x128xbf16, #tpu.memory_space<vmem>>, %arg4: memref<128x16xbf16, #tpu.memory_space<vmem>>, %arg5: memref<1x16xf32, #tpu.memory_space<vmem>>, %arg6: memref<512x16xbf16, #tpu.memory_space<vmem>>, %arg7: memref<1x2x16xf32, #tpu.memory_space<vmem>>, %arg8: memref<512x16xf32, #tpu.memory_space<vmem>>) attributes {dimension_semantics = [#tpu.dimension_semantics<parallel>, #tpu.dimension_semantics<parallel>, #tpu.dimension_semantics<arbitrary>], iteration_bounds = array<i64: 1, 1, 1>, scalar_prefetch = 0 : i64, scratch_operands = 1 : i64, tpu.core_type = #tpu.core_type<tc>, window_params = [{transform_indices = @transform_0, window_bounds = array<i64: 512, 128>}, {transform_indices = @transform_1, window_bounds = array<i64: 128, 16>}, {transform_indices = @transform_2, window_bounds = array<i64: 1, 16>}, {transform_indices = @transform_3, window_bounds = array<i64: 512, 16>}, {transform_indices = @transform_4, window_bounds = array<i64: 1, 2, 16>}]} {
    %c0_i32 = arith.constant 0 : i32
    %0 = arith.cmpi eq, %arg2, %c0_i32 : i32
    %1 = arith.extui %0 : i1 to i32
    %c0_i32_0 = arith.constant 0 : i32
    %2 = arith.cmpi ne, %1, %c0_i32_0 : i32
    scf.if %2 {
      %cst_10 = arith.constant 0.000000e+00 : f32
      %12 = vector.broadcast %cst_10 : f32 to vector<512x16xf32>
      %c0_11 = arith.constant 0 : index
      %c0_12 = arith.constant 0 : index
      %13 = vector.load %arg8[%c0_11, %c0_12] : memref<512x16xf32, #tpu.memory_space<vmem>>, vector<512x16xf32>
      tpu.vector_store %arg8[%c0_11, %c0_12], %12 {strides = array<i32>} : memref<512x16xf32, #tpu.memory_space<vmem>>, vector<512x16xf32>,
    } else {
    }
    %c0 = arith.constant 0 : index
    %c0_1 = arith.constant 0 : index
    %3 = vector.load %arg8[%c0, %c0_1] : memref<512x16xf32, #tpu.memory_space<vmem>>, vector<512x16xf32>
    %c0_2 = arith.constant 0 : index
    %c0_3 = arith.constant 0 : index
    %4 = vector.load %arg3[%c0_2, %c0_3] : memref<512x128xbf16, #tpu.memory_space<vmem>>, vector<512x128xbf16>
    %c0_4 = arith.constant 0 : index
    %c0_5 = arith.constant 0 : index
    %5 = vector.load %arg4[%c0_4, %c0_5] : memref<128x16xbf16, #tpu.memory_space<vmem>>, vector<128x16xbf16>
    %cst = arith.constant dense<0.000000e+00> : vector<512x16xf32>
    %6 = tpu.matmul %4, %5, %cst {dimension_numbers = #tpu.dot_dimension_numbers<[1], [0], [0], [1], [0, 0, 1, 1], [], []>} : vector<512x128xbf16>, vector<128x16xbf16>, vector<512x16xf32> -> vector<512x16xf32>
    %7 = arith.addf %3, %6 : vector<512x16xf32>
    %c0_6 = arith.constant 0 : index
    %c0_7 = arith.constant 0 : index
    %8 = vector.load %arg8[%c0_6, %c0_7] : memref<512x16xf32, #tpu.memory_space<vmem>>, vector<512x16xf32>
    tpu.vector_store %arg8[%c0_6, %c0_7], %7 {strides = array<i32>} : memref<512x16xf32, #tpu.memory_space<vmem>>, vector<512x16xf32>,
    %c0_i32_8 = arith.constant 0 : i32
    %9 = arith.cmpi eq, %arg2, %c0_i32_8 : i32
    %10 = arith.extui %9 : i1 to i32
    %c0_i32_9 = arith.constant 0 : i32
    %11 = arith.cmpi ne, %10, %c0_i32_9 : i32
    scf.if %11 {
      %c0_10 = arith.constant 0 : index
      %c0_11 = arith.constant 0 : index
      %12 = vector.load %arg8[%c0_10, %c0_11] : memref<512x16xf32, #tpu.memory_space<vmem>>, vector<512x16xf32>
      %c0_12 = arith.constant 0 : index
      %c0_13 = arith.constant 0 : index
      %13 = vector.load %arg5[%c0_12, %c0_13] : memref<1x16xf32, #tpu.memory_space<vmem>>, vector<1x16xf32>
      %14 = vector.broadcast %13 : vector<1x16xf32> to vector<512x16xf32>
      %15 = arith.addf %12, %14 : vector<512x16xf32>
      %16 = arith.truncf %15 : vector<512x16xf32> to vector<512x16xbf16>
      %c0_14 = arith.constant 0 : index
      %c0_15 = arith.constant 0 : index
      %17 = vector.load %arg6[%c0_14, %c0_15] : memref<512x16xbf16, #tpu.memory_space<vmem>>, vector<512x16xbf16>
      tpu.vector_store %arg6[%c0_14, %c0_15], %16 {strides = array<i32>} : memref<512x16xbf16, #tpu.memory_space<vmem>>, vector<512x16xbf16>,
      %cst_16 = arith.constant dense<0.000000e+00> : vector<16xf32>
      %18 = vector.multi_reduction <add>, %15, %cst_16 [0] : vector<512x16xf32> to vector<16xf32>
      %19 = vector.shape_cast %18 : vector<16xf32> to vector<1x16xf32>
      %20 = arith.mulf %15, %15 : vector<512x16xf32>
      %cst_17 = arith.constant dense<0.000000e+00> : vector<16xf32>
      %21 = vector.multi_reduction <add>, %20, %cst_17 [0] : vector<512x16xf32> to vector<16xf32>
      %22 = vector.shape_cast %21 : vector<16xf32> to vector<1x16xf32>
      %23 = tpu.concatenate %19, %22 in 0 : vector<1x16xf32>, vector<1x16xf32> -> vector<2x16xf32>
      %24 = vector.shape_cast %23 : vector<2x16xf32> to vector<1x2x16xf32>
      %c0_18 = arith.constant 0 : index
      %c0_19 = arith.constant 0 : index
      %c0_20 = arith.constant 0 : index
      %25 = vector.load %arg7[%c0_18, %c0_19, %c0_20] : memref<1x2x16xf32, #tpu.memory_space<vmem>>, vector<1x2x16xf32>
      tpu.vector_store %arg7[%c0_18, %c0_19, %c0_20], %24 {strides = array<i32>} : memref<1x2x16xf32, #tpu.memory_space<vmem>>, vector<1x2x16xf32>,
    } else {
    }
    return
  }
  func.func @transform_0(%arg0: i32, %arg1: i32, %arg2: i32) -> (i32, i32) {
    %c0_i32 = arith.constant 0 : i32
    return %arg0, %arg2 : i32, i32
  }
  func.func @transform_1(%arg0: i32, %arg1: i32, %arg2: i32) -> (i32, i32) {
    %c0_i32 = arith.constant 0 : i32
    return %arg2, %arg1 : i32, i32
  }
  func.func @transform_2(%arg0: i32, %arg1: i32, %arg2: i32) -> (i32, i32) {
    %c0_i32 = arith.constant 0 : i32
    %c0_i32_0 = arith.constant 0 : i32
    return %c0_i32, %arg1 : i32, i32
  }
  func.func @transform_3(%arg0: i32, %arg1: i32, %arg2: i32) -> (i32, i32) {
    %c0_i32 = arith.constant 0 : i32
    return %arg0, %arg1 : i32, i32
  }
  func.func @transform_4(%arg0: i32, %arg1: i32, %arg2: i32) -> (i32, i32, i32) {
    %c0_i32 = arith.constant 0 : i32
    %c0_i32_0 = arith.constant 0 : i32
    return %arg0, %c0_i32, %arg1 : i32, i32, i32
  }
}

module attributes {stable_mosaic.version = 11 : i64} {
  func.func @_gemm_kernel(%arg0: i32, %arg1: i32, %arg2: i32, %arg3: memref<128x256xbf16, #tpu.memory_space<vmem>>, %arg4: memref<256x32xbf16, #tpu.memory_space<vmem>>, %arg5: memref<1x32xf32, #tpu.memory_space<vmem>>, %arg6: memref<128x32xbf16, #tpu.memory_space<vmem>>, %arg7: memref<1x2x32xf32, #tpu.memory_space<vmem>>, %arg8: memref<128x32xf32, #tpu.memory_space<vmem>>) attributes {dimension_semantics = [#tpu.dimension_semantics<parallel>, #tpu.dimension_semantics<parallel>, #tpu.dimension_semantics<arbitrary>], iteration_bounds = array<i64: 1, 1, 1>, scalar_prefetch = 0 : i64, scratch_operands = 1 : i64, tpu.core_type = #tpu.core_type<tc>, window_params = [{transform_indices = @transform_0, window_bounds = array<i64: 128, 256>}, {transform_indices = @transform_1, window_bounds = array<i64: 256, 32>}, {transform_indices = @transform_2, window_bounds = array<i64: 1, 32>}, {transform_indices = @transform_3, window_bounds = array<i64: 128, 32>}, {transform_indices = @transform_4, window_bounds = array<i64: 1, 2, 32>}]} {
    %c0_i32 = arith.constant 0 : i32
    %0 = arith.cmpi eq, %arg2, %c0_i32 : i32
    %1 = arith.extui %0 : i1 to i32
    %c0_i32_0 = arith.constant 0 : i32
    %2 = arith.cmpi ne, %1, %c0_i32_0 : i32
    scf.if %2 {
      %cst_10 = arith.constant 0.000000e+00 : f32
      %12 = vector.broadcast %cst_10 : f32 to vector<128x32xf32>
      %c0_11 = arith.constant 0 : index
      %c0_12 = arith.constant 0 : index
      %13 = vector.load %arg8[%c0_11, %c0_12] : memref<128x32xf32, #tpu.memory_space<vmem>>, vector<128x32xf32>
      tpu.vector_store %arg8[%c0_11, %c0_12], %12 {strides = array<i32>} : memref<128x32xf32, #tpu.memory_space<vmem>>, vector<128x32xf32>,
    } else {
    }
    %c0 = arith.constant 0 : index
    %c0_1 = arith.constant 0 : index
    %3 = vector.load %arg8[%c0, %c0_1] : memref<128x32xf32, #tpu.memory_space<vmem>>, vector<128x32xf32>
    %c0_2 = arith.constant 0 : index
    %c0_3 = arith.constant 0 : index
    %4 = vector.load %arg3[%c0_2, %c0_3] : memref<128x256xbf16, #tpu.memory_space<vmem>>, vector<128x256xbf16>
    %c0_4 = arith.constant 0 : index
    %c0_5 = arith.constant 0 : index
    %5 = vector.load %arg4[%c0_4, %c0_5] : memref<256x32xbf16, #tpu.memory_space<vmem>>, vector<256x32xbf16>
    %cst = arith.constant dense<0.000000e+00> : vector<128x32xf32>
    %6 = tpu.matmul %4, %5, %cst {dimension_numbers = #tpu.dot_dimension_numbers<[1], [0], [0], [1], [0, 0, 1, 1], [], []>} : vector<128x256xbf16>, vector<256x32xbf16>, vector<128x32xf32> -> vector<128x32xf32>
    %7 = arith.addf %3, %6 : vector<128x32xf32>
    %c0_6 = arith.constant 0 : index
    %c0_7 = arith.constant 0 : index
    %8 = vector.load %arg8[%c0_6, %c0_7] : memref<128x32xf32, #tpu.memory_space<vmem>>, vector<128x32xf32>
    tpu.vector_store %arg8[%c0_6, %c0_7], %7 {strides = array<i32>} : memref<128x32xf32, #tpu.memory_space<vmem>>, vector<128x32xf32>,
    %c0_i32_8 = arith.constant 0 : i32
    %9 = arith.cmpi eq, %arg2, %c0_i32_8 : i32
    %10 = arith.extui %9 : i1 to i32
    %c0_i32_9 = arith.constant 0 : i32
    %11 = arith.cmpi ne, %10, %c0_i32_9 : i32
    scf.if %11 {
      %c0_10 = arith.constant 0 : index
      %c0_11 = arith.constant 0 : index
      %12 = vector.load %arg8[%c0_10, %c0_11] : memref<128x32xf32, #tpu.memory_space<vmem>>, vector<128x32xf32>
      %c0_12 = arith.constant 0 : index
      %c0_13 = arith.constant 0 : index
      %13 = vector.load %arg5[%c0_12, %c0_13] : memref<1x32xf32, #tpu.memory_space<vmem>>, vector<1x32xf32>
      %14 = vector.broadcast %13 : vector<1x32xf32> to vector<128x32xf32>
      %15 = arith.addf %12, %14 : vector<128x32xf32>
      %16 = arith.truncf %15 : vector<128x32xf32> to vector<128x32xbf16>
      %c0_14 = arith.constant 0 : index
      %c0_15 = arith.constant 0 : index
      %17 = vector.load %arg6[%c0_14, %c0_15] : memref<128x32xbf16, #tpu.memory_space<vmem>>, vector<128x32xbf16>
      tpu.vector_store %arg6[%c0_14, %c0_15], %16 {strides = array<i32>} : memref<128x32xbf16, #tpu.memory_space<vmem>>, vector<128x32xbf16>,
      %cst_16 = arith.constant dense<0.000000e+00> : vector<32xf32>
      %18 = vector.multi_reduction <add>, %15, %cst_16 [0] : vector<128x32xf32> to vector<32xf32>
      %19 = vector.shape_cast %18 : vector<32xf32> to vector<1x32xf32>
      %20 = arith.mulf %15, %15 : vector<128x32xf32>
      %cst_17 = arith.constant dense<0.000000e+00> : vector<32xf32>
      %21 = vector.multi_reduction <add>, %20, %cst_17 [0] : vector<128x32xf32> to vector<32xf32>
      %22 = vector.shape_cast %21 : vector<32xf32> to vector<1x32xf32>
      %23 = tpu.concatenate %19, %22 in 0 : vector<1x32xf32>, vector<1x32xf32> -> vector<2x32xf32>
      %24 = vector.shape_cast %23 : vector<2x32xf32> to vector<1x2x32xf32>
      %c0_18 = arith.constant 0 : index
      %c0_19 = arith.constant 0 : index
      %c0_20 = arith.constant 0 : index
      %25 = vector.load %arg7[%c0_18, %c0_19, %c0_20] : memref<1x2x32xf32, #tpu.memory_space<vmem>>, vector<1x2x32xf32>
      tpu.vector_store %arg7[%c0_18, %c0_19, %c0_20], %24 {strides = array<i32>} : memref<1x2x32xf32, #tpu.memory_space<vmem>>, vector<1x2x32xf32>,
    } else {
    }
    return
  }
  func.func @transform_0(%arg0: i32, %arg1: i32, %arg2: i32) -> (i32, i32) {
    %c0_i32 = arith.constant 0 : i32
    return %arg0, %arg2 : i32, i32
  }
  func.func @transform_1(%arg0: i32, %arg1: i32, %arg2: i32) -> (i32, i32) {
    %c0_i32 = arith.constant 0 : i32
    return %arg2, %arg1 : i32, i32
  }
  func.func @transform_2(%arg0: i32, %arg1: i32, %arg2: i32) -> (i32, i32) {
    %c0_i32 = arith.constant 0 : i32
    %c0_i32_0 = arith.constant 0 : i32
    return %c0_i32, %arg1 : i32, i32
  }
  func.func @transform_3(%arg0: i32, %arg1: i32, %arg2: i32) -> (i32, i32) {
    %c0_i32 = arith.constant 0 : i32
    return %arg0, %arg1 : i32, i32
  }
  func.func @transform_4(%arg0: i32, %arg1: i32, %arg2: i32) -> (i32, i32, i32) {
    %c0_i32 = arith.constant 0 : i32
    %c0_i32_0 = arith.constant 0 : i32
    return %arg0, %c0_i32, %arg1 : i32, i32, i32
  }
}

module attributes {stable_mosaic.version = 11 : i64} {
  func.func @_gemm_kernel(%arg0: i32, %arg1: i32, %arg2: i32, %arg3: memref<32x512xbf16, #tpu.memory_space<vmem>>, %arg4: memref<512x64xbf16, #tpu.memory_space<vmem>>, %arg5: memref<1x64xf32, #tpu.memory_space<vmem>>, %arg6: memref<32x64xbf16, #tpu.memory_space<vmem>>, %arg7: memref<1x2x64xf32, #tpu.memory_space<vmem>>, %arg8: memref<32x64xf32, #tpu.memory_space<vmem>>) attributes {dimension_semantics = [#tpu.dimension_semantics<parallel>, #tpu.dimension_semantics<parallel>, #tpu.dimension_semantics<arbitrary>], iteration_bounds = array<i64: 1, 1, 1>, scalar_prefetch = 0 : i64, scratch_operands = 1 : i64, tpu.core_type = #tpu.core_type<tc>, window_params = [{transform_indices = @transform_0, window_bounds = array<i64: 32, 512>}, {transform_indices = @transform_1, window_bounds = array<i64: 512, 64>}, {transform_indices = @transform_2, window_bounds = array<i64: 1, 64>}, {transform_indices = @transform_3, window_bounds = array<i64: 32, 64>}, {transform_indices = @transform_4, window_bounds = array<i64: 1, 2, 64>}]} {
    %c0_i32 = arith.constant 0 : i32
    %0 = arith.cmpi eq, %arg2, %c0_i32 : i32
    %1 = arith.extui %0 : i1 to i32
    %c0_i32_0 = arith.constant 0 : i32
    %2 = arith.cmpi ne, %1, %c0_i32_0 : i32
    scf.if %2 {
      %cst_10 = arith.constant 0.000000e+00 : f32
      %12 = vector.broadcast %cst_10 : f32 to vector<32x64xf32>
      %c0_11 = arith.constant 0 : index
      %c0_12 = arith.constant 0 : index
      %13 = vector.load %arg8[%c0_11, %c0_12] : memref<32x64xf32, #tpu.memory_space<vmem>>, vector<32x64xf32>
      tpu.vector_store %arg8[%c0_11, %c0_12], %12 {strides = array<i32>} : memref<32x64xf32, #tpu.memory_space<vmem>>, vector<32x64xf32>,
    } else {
    }
    %c0 = arith.constant 0 : index
    %c0_1 = arith.constant 0 : index
    %3 = vector.load %arg8[%c0, %c0_1] : memref<32x64xf32, #tpu.memory_space<vmem>>, vector<32x64xf32>
    %c0_2 = arith.constant 0 : index
    %c0_3 = arith.constant 0 : index
    %4 = vector.load %arg3[%c0_2, %c0_3] : memref<32x512xbf16, #tpu.memory_space<vmem>>, vector<32x512xbf16>
    %c0_4 = arith.constant 0 : index
    %c0_5 = arith.constant 0 : index
    %5 = vector.load %arg4[%c0_4, %c0_5] : memref<512x64xbf16, #tpu.memory_space<vmem>>, vector<512x64xbf16>
    %cst = arith.constant dense<0.000000e+00> : vector<32x64xf32>
    %6 = tpu.matmul %4, %5, %cst {dimension_numbers = #tpu.dot_dimension_numbers<[1], [0], [0], [1], [0, 0, 1, 1], [], []>} : vector<32x512xbf16>, vector<512x64xbf16>, vector<32x64xf32> -> vector<32x64xf32>
    %7 = arith.addf %3, %6 : vector<32x64xf32>
    %c0_6 = arith.constant 0 : index
    %c0_7 = arith.constant 0 : index
    %8 = vector.load %arg8[%c0_6, %c0_7] : memref<32x64xf32, #tpu.memory_space<vmem>>, vector<32x64xf32>
    tpu.vector_store %arg8[%c0_6, %c0_7], %7 {strides = array<i32>} : memref<32x64xf32, #tpu.memory_space<vmem>>, vector<32x64xf32>,
    %c0_i32_8 = arith.constant 0 : i32
    %9 = arith.cmpi eq, %arg2, %c0_i32_8 : i32
    %10 = arith.extui %9 : i1 to i32
    %c0_i32_9 = arith.constant 0 : i32
    %11 = arith.cmpi ne, %10, %c0_i32_9 : i32
    scf.if %11 {
      %c0_10 = arith.constant 0 : index
      %c0_11 = arith.constant 0 : index
      %12 = vector.load %arg8[%c0_10, %c0_11] : memref<32x64xf32, #tpu.memory_space<vmem>>, vector<32x64xf32>
      %c0_12 = arith.constant 0 : index
      %c0_13 = arith.constant 0 : index
      %13 = vector.load %arg5[%c0_12, %c0_13] : memref<1x64xf32, #tpu.memory_space<vmem>>, vector<1x64xf32>
      %14 = vector.broadcast %13 : vector<1x64xf32> to vector<32x64xf32>
      %15 = arith.addf %12, %14 : vector<32x64xf32>
      %16 = arith.truncf %15 : vector<32x64xf32> to vector<32x64xbf16>
      %c0_14 = arith.constant 0 : index
      %c0_15 = arith.constant 0 : index
      %17 = vector.load %arg6[%c0_14, %c0_15] : memref<32x64xbf16, #tpu.memory_space<vmem>>, vector<32x64xbf16>
      tpu.vector_store %arg6[%c0_14, %c0_15], %16 {strides = array<i32>} : memref<32x64xbf16, #tpu.memory_space<vmem>>, vector<32x64xbf16>,
      %cst_16 = arith.constant dense<0.000000e+00> : vector<64xf32>
      %18 = vector.multi_reduction <add>, %15, %cst_16 [0] : vector<32x64xf32> to vector<64xf32>
      %19 = vector.shape_cast %18 : vector<64xf32> to vector<1x64xf32>
      %20 = arith.mulf %15, %15 : vector<32x64xf32>
      %cst_17 = arith.constant dense<0.000000e+00> : vector<64xf32>
      %21 = vector.multi_reduction <add>, %20, %cst_17 [0] : vector<32x64xf32> to vector<64xf32>
      %22 = vector.shape_cast %21 : vector<64xf32> to vector<1x64xf32>
      %23 = tpu.concatenate %19, %22 in 0 : vector<1x64xf32>, vector<1x64xf32> -> vector<2x64xf32>
      %24 = vector.shape_cast %23 : vector<2x64xf32> to vector<1x2x64xf32>
      %c0_18 = arith.constant 0 : index
      %c0_19 = arith.constant 0 : index
      %c0_20 = arith.constant 0 : index
      %25 = vector.load %arg7[%c0_18, %c0_19, %c0_20] : memref<1x2x64xf32, #tpu.memory_space<vmem>>, vector<1x2x64xf32>
      tpu.vector_store %arg7[%c0_18, %c0_19, %c0_20], %24 {strides = array<i32>} : memref<1x2x64xf32, #tpu.memory_space<vmem>>, vector<1x2x64xf32>,
    } else {
    }
    return
  }
  func.func @transform_0(%arg0: i32, %arg1: i32, %arg2: i32) -> (i32, i32) {
    %c0_i32 = arith.constant 0 : i32
    return %arg0, %arg2 : i32, i32
  }
  func.func @transform_1(%arg0: i32, %arg1: i32, %arg2: i32) -> (i32, i32) {
    %c0_i32 = arith.constant 0 : i32
    return %arg2, %arg1 : i32, i32
  }
  func.func @transform_2(%arg0: i32, %arg1: i32, %arg2: i32) -> (i32, i32) {
    %c0_i32 = arith.constant 0 : i32
    %c0_i32_0 = arith.constant 0 : i32
    return %c0_i32, %arg1 : i32, i32
  }
  func.func @transform_3(%arg0: i32, %arg1: i32, %arg2: i32) -> (i32, i32) {
    %c0_i32 = arith.constant 0 : i32
    return %arg0, %arg1 : i32, i32
  }
  func.func @transform_4(%arg0: i32, %arg1: i32, %arg2: i32) -> (i32, i32, i32) {
    %c0_i32 = arith.constant 0 : i32
    %c0_i32_0 = arith.constant 0 : i32
    return %arg0, %c0_i32, %arg1 : i32, i32, i32
  }
}

</mosaic_0001>

<llo_original>
// kernel: discriminator_forward.4
$region0: #{discriminator_forward.4}
  #allocation0 [shape = 'u32[]', space=smem, size = 0x4, offset = 0x4, fixed_abs, tag = 'smem constant byte address 0x4 - core index']
  #allocation1 [shape = 'u32[144,128]{1,0:T(1,128)}', space=vmem, size = 0x12000, scoped, tag = 'internal scratch']
  #allocation2 [shape = 'f32[512,8]{1,0:T(8,128)}', space=vmem, size = 0x40000, scoped, tag = 'scratch operand']
  %s0 = inlined_call_operand.vmem [shape: bf16[2048,48], index: 0, kind: input, shape index: {}]
  %s1 = inlined_call_operand.vmem [shape: bf16[48,8], index: 1, kind: input, shape index: {}]
  %s2 = inlined_call_operand.vmem [shape: f32[1,8], index: 2, kind: input, shape index: {}]
  %s3 = inlined_call_operand.vmem [shape: bf16[2048,8], index: 3, kind: output, shape index: {}]
  %s4 = sld [smem:[#allocation0]]
  $region53: #{discriminator_forward.4} parent=0
    _
  %s6 = ssub.s32 1, %s4
  %s7 = scalar_select 0, %s6, %s4
  loop: start=0, step=1, limit=6
  $region2: #{discriminator_forward.4} parent=0 // loop_pre_header
    _
  $region3: #{discriminator_forward.4} parent=0 // loop_header
    %s9 = sphi 0, %s13
    %p10 = scmp.ge.s32.totalorder %s9, 6
    %s16 = sphi 0, %s35
    %s17 = sphi 0, %s31
    %s18 = sphi 0, %s27
    %s19 = sphi 0, %s16
    %s20 = sphi 0, %s17
    %s21 = sphi 0, %s18
    %s22 = sphi 0, %s19
    %s23 = sphi 0, %s20
    %s24 = sphi 0, %s21
    %s40 = sphi 0, %s42
    %s43 = sphi 0, %s40
    %s44 = sphi 0, %s43
    %s60 = sphi 0, %s44
    %s68 = sphi 0, %s70
    %s71 = sphi 0, %s68
    %s72 = sphi 0, %s71
    %s88 = sphi 0, %s72
    %s94 = sphi 0, %s96
    %s97 = sphi 0, %s94
    %s98 = sphi 0, %s97
    %s114 = sphi 0, %s98
    %s122 = sphi 0, %s124
    %s125 = sphi 0, %s122
    %s126 = sphi 0, %s125
    %s142 = sphi 0, %s126
  $region4: #{discriminator_forward.4} parent=0 // loop_header_branch
    %12 = sbr.rel (%p10) target = $region8
  $region5: #{discriminator_forward.4} parent=0 // loop_body
    %s14 = ssub.s32 %s9, 1
    %s15 = ssub.s32 %s9, 2
    %s25 = sadd.s32 1, %s18
    %p26 = scmp.ge.s32.totalorder %s25, 1
    %s27 = scalar_select %p26, 0, %s25
    %s28 = sadd.s32 1, %s17
    %s29 = scalar_select %p26, %s28, %s17
    %p30 = scmp.ge.s32.totalorder %s29, 1
    %s31 = scalar_select %p30, 0, %s29
    %s32 = sadd.s32 1, %s16
    %s33 = scalar_select %p30, %s32, %s16
    %p34 = scmp.ge.s32.totalorder %s33, 4
    %s35 = scalar_select %p34, 0, %s33
    %s36 = ssub.s32 %s16, %s35
    %s37 = ssub.s32 %s18, %s27
    %s38 = sor.u32 %s36, %s37
    %p39 = scmp.eq.s32.totalorder %s38, 0
    %s41 = sadd.s32 %s40, 1
    %s42 = scalar_select %p39, %s40, %s41
    %p45 = pneg %p39
    %p46 = scmp.eq.s32.totalorder %s9, 3
    %p47 = por %p45, %p46
    %p48 = scmp.ne.s32.totalorder %s40, %s43
    %p49 = scmp.eq.s32.totalorder %s9, 0
    %p50 = por %p48, %p49
    %p51 = scmp.ne.s32.totalorder %s40, %s43
    %p52 = scmp.eq.s32.totalorder %s14, 3
    %p53 = por %p51, %p52
    %p54 = scmp.ne.s32.totalorder %s43, %s44
    %p55 = scmp.eq.s32.totalorder %s14, 0
    %p56 = por %p54, %p55
    %p57 = scmp.ne.s32.totalorder %s43, %s44
    %p58 = scmp.eq.s32.totalorder %s15, 3
    %p59 = por %p57, %p58
    %p61 = scmp.ne.s32.totalorder %s44, %s60
    %p62 = scmp.eq.s32.totalorder %s15, 0
    %p63 = por %p61, %p62
    %s64 = ssub.s32 %s18, %s27
    %s65 = ssub.s32 %s17, %s31
    %s66 = sor.u32 %s64, %s65
    %p67 = scmp.eq.s32.totalorder %s66, 0
    %s69 = sadd.s32 %s68, 1
    %s70 = scalar_select %p67, %s68, %s69
    %p73 = pneg %p67
    %p74 = scmp.eq.s32.totalorder %s9, 3
    %p75 = por %p73, %p74
    %p76 = scmp.ne.s32.totalorder %s68, %s71
    %p77 = scmp.eq.s32.totalorder %s9, 0
    %p78 = por %p76, %p77
    %p79 = scmp.ne.s32.totalorder %s68, %s71
    %p80 = scmp.eq.s32.totalorder %s14, 3
    %p81 = por %p79, %p80
    %p82 = scmp.ne.s32.totalorder %s71, %s72
    %p83 = scmp.eq.s32.totalorder %s14, 0
    %p84 = por %p82, %p83
    %p85 = scmp.ne.s32.totalorder %s71, %s72
    %p86 = scmp.eq.s32.totalorder %s15, 3
    %p87 = por %p85, %p86
    %p89 = scmp.ne.s32.totalorder %s72, %s88
    %p90 = scmp.eq.s32.totalorder %s15, 0
    %p91 = por %p89, %p90
    %s92 = ssub.s32 %s17, %s31
    %p93 = scmp.eq.s32.totalorder %s92, 0
    %s95 = sadd.s32 %s94, 1
    %s96 = scalar_select %p93, %s94, %s95
    %p99 = pneg %p93
    %p100 = scmp.eq.s32.totalorder %s9, 3
    %p101 = por %p99, %p100
    %p102 = scmp.ne.s32.totalorder %s94, %s97
    %p103 = scmp.eq.s32.totalorder %s9, 0
    %p104 = por %p102, %p103
    %p105 = scmp.ne.s32.totalorder %s94, %s97
    %p106 = scmp.eq.s32.totalorder %s14, 3
    %p107 = por %p105, %p106
    %p108 = scmp.ne.s32.totalorder %s97, %s98
    %p109 = scmp.eq.s32.totalorder %s14, 0
    %p110 = por %p108, %p109
    %p111 = scmp.ne.s32.totalorder %s97, %s98
    %p112 = scmp.eq.s32.totalorder %s15, 3
    %p113 = por %p111, %p112
    %p115 = scmp.ne.s32.totalorder %s98, %s114
    %p116 = scmp.eq.s32.totalorder %s15, 0
    %p117 = por %p115, %p116
    %s118 = ssub.s32 %s16, %s35
    %s119 = ssub.s32 %s17, %s31
    %s120 = sor.u32 %s118, %s119
    %p121 = scmp.eq.s32.totalorder %s120, 0
    %s123 = sadd.s32 %s122, 1
    %s124 = scalar_select %p121, %s122, %s123
    %p127 = pneg %p121
    %p128 = scmp.eq.s32.totalorder %s9, 3
    %p129 = por %p127, %p128
    %p130 = scmp.ne.s32.totalorder %s122, %s125
    %p131 = scmp.eq.s32.totalorder %s9, 0
    %p132 = por %p130, %p131
    %p133 = scmp.ne.s32.totalorder %s122, %s125
    %p134 = scmp.eq.s32.totalorder %s14, 3
    %p135 = por %p133, %p134
    %p136 = scmp.ne.s32.totalorder %s125, %s126
    %p137 = scmp.eq.s32.totalorder %s14, 0
    %p138 = por %p136, %p137
    %p139 = scmp.ne.s32.totalorder %s125, %s126
    %p140 = scmp.eq.s32.totalorder %s15, 3
    %p141 = por %p139, %p140
    %p143 = scmp.ne.s32.totalorder %s126, %s142
    %p144 = scmp.eq.s32.totalorder %s15, 0
    %p145 = por %p143, %p144
    %p146 = scmp.le.s32.totalorder 1, %s9
    %p147 = scmp.lt.s32.totalorder %s9, 5
    %p148 = pnand %p146, %p147
    %p149 = pneg %p148
    // Predicated region
    $region9: #{discriminator_forward.4} parent=5 // pred_check
      _
    $region10: #{discriminator_forward.4} parent=5 // pred_check_branch
      %151 = sbr.rel (%p148) target = $region12
    $region11: #{discriminator_forward.4} parent=5 // pred_region
      %s152 = ssub.s32 %s9, 1
      // Predicated region
      $region13: #{discriminator_forward.4} parent=11 // pred_check
        %p153 = pneg %p84
      $region14: #{discriminator_forward.4} parent=11 // pred_check_branch
        %155 = sbr.rel (%p153) target = $region16
      $region15: #{discriminator_forward.4} parent=11 // pred_region
        %s156 = smul.u32 6, %s21
        %p157 = scmp.lt.s32.totalorder %s156, 5
        %s158 = scalar_select %p157, %s156, 5
        %p159 = scmp.lt.s32.totalorder %s20, 0
        %s160 = scalar_select %p159, %s20, 0
        %s161 = sadd.s32 %s160, %s158
        %s162 = smul.addr %s161, 4
        %s163 = scalar_lea.vmem %s1, %s162
        %s164 = smul.u32 6, %s21
      $region16: #{discriminator_forward.4} parent=11 // pred_fallthru
        _
      // Predicated region
      $region17: #{discriminator_forward.4} parent=11 // pred_check
        %p165 = pneg %p110
      $region18: #{discriminator_forward.4} parent=11 // pred_check_branch
        %167 = sbr.rel (%p165) target = $region20
      $region19: #{discriminator_forward.4} parent=11 // pred_region
        %p168 = scmp.lt.s32.totalorder %s20, 0
        %s169 = scalar_select %p168, %s20, 0
        %s170 = scalar_lea.vmem %s2, %s169
      $region20: #{discriminator_forward.4} parent=11 // pred_fallthru
        _
    $region12: #{discriminator_forward.4} parent=5 // pred_fallthru
      _
    %p171 = scmp.lt.s32.totalorder %s9, 4
    // Predicated region
    $region21: #{discriminator_forward.4} parent=5 // pred_check
      %p172 = pneg %p171
    $region22: #{discriminator_forward.4} parent=5 // pred_check_branch
      %174 = sbr.rel (%p172) target = $region24
    $region23: #{discriminator_forward.4} parent=5 // pred_region
      // Predicated region
      $region25: #{discriminator_forward.4} parent=23 // pred_check
        %p175 = pneg %p50
      $region26: #{discriminator_forward.4} parent=23 // pred_check_branch
        %177 = sbr.rel (%p175) target = $region28
      $region27: #{discriminator_forward.4} parent=23 // pred_region
        %s178 = smul.u32 64, %s16
        %p179 = scmp.lt.s32.totalorder %s178, 255
        %s180 = scalar_select %p179, %s178, 255
        %p181 = scmp.lt.s32.totalorder %s18, 0
        %s182 = scalar_select %p181, %s18, 0
        %s183 = sadd.s32 %s182, %s180
        %s184 = smul.addr %s183, 4
        %s185 = scalar_lea.vmem %s0, %s184
        %s186 = smul.u32 64, %s16
      $region28: #{discriminator_forward.4} parent=23 // pred_fallthru
        _
    $region24: #{discriminator_forward.4} parent=5 // pred_fallthru
      _
    %p187 = scmp.le.s32.totalorder 1, %s9
    %p188 = scmp.lt.s32.totalorder %s9, 5
    %p189 = pnand %p187, %p188
    %p190 = pneg %p189
    // Predicated region
    $region29: #{discriminator_forward.4} parent=5 // pred_check
      _
    $region30: #{discriminator_forward.4} parent=5 // pred_check_branch
      %192 = sbr.rel (%p189) target = $region32
    $region31: #{discriminator_forward.4} parent=5 // pred_region
      %s193 = ssub.s32 %s9, 1
      %s194 = smul.u32 64, %s19
      %p195 = scmp.lt.s32.totalorder %s194, 255
      %s196 = scalar_select %p195, %s194, 255
      %p197 = scmp.lt.s32.totalorder %s21, 0
      %s198 = scalar_select %p197, %s21, 0
      %s199 = sadd.s32 %s198, %s196
      %s200 = smul.addr %s199, 4
      %s201 = scalar_lea.vmem %s0, %s200
      %p202 = pneg %p56
      %p203 = pneg %p53
      %s204 = smul.u32 6, %s21
      %p205 = scmp.lt.s32.totalorder %s204, 5
      %s206 = scalar_select %p205, %s204, 5
      %p207 = scmp.lt.s32.totalorder %s20, 0
      %s208 = scalar_select %p207, %s20, 0
      %s209 = sadd.s32 %s208, %s206
      %s210 = smul.addr %s209, 4
      %s211 = scalar_lea.vmem %s1, %s210
      %p212 = pneg %p84
      %p213 = pneg %p81
      %p214 = scmp.lt.s32.totalorder %s20, 0
      %s215 = scalar_select %p214, %s20, 0
      %s216 = scalar_lea.vmem %s2, %s215
      %p217 = pneg %p110
      %p218 = pneg %p107
      %p219 = pneg %p138
      %p220 = pneg %p135
      %s221 = smul.u32 64, %s19
      %p222 = scmp.lt.s32.totalorder %s221, 255
      %s223 = scalar_select %p222, %s221, 255
      %p224 = scmp.lt.s32.totalorder %s20, 0
      %s225 = scalar_select %p224, %s20, 0
      %s226 = sadd.s32 %s225, %s223
      %s227 = smul.addr %s226, 4
      %s228 = scalar_lea.vmem %s3, %s227
      %s229 = smul.u32 64, %s19
      %p230 = scmp.lt.s32.totalorder %s229, 255
      %s231 = scalar_select %p230, %s229, 255
      %p232 = scmp.lt.s32.totalorder %s21, 0
      %s233 = scalar_select %p232, %s21, 0
      %s234 = sadd.s32 %s233, %s231
      %s235 = smul.addr %s234, 4
      %s236 = scalar_lea.vmem %s0, %s235
      %s237 = smul.u32 64, %s19
      %s238 = smul.u32 6, %s21
      %p239 = scmp.lt.s32.totalorder %s238, 5
      %s240 = scalar_select %p239, %s238, 5
      %p241 = scmp.lt.s32.totalorder %s20, 0
      %s242 = scalar_select %p241, %s20, 0
      %s243 = sadd.s32 %s242, %s240
      %s244 = smul.addr %s243, 4
      %s245 = scalar_lea.vmem %s1, %s244
      %s246 = smul.u32 6, %s21
      %p247 = scmp.lt.s32.totalorder %s20, 0
      %s248 = scalar_select %p247, %s20, 0
      %s249 = scalar_lea.vmem %s2, %s248
      %s250 = smul.u32 64, %s19
      %p251 = scmp.lt.s32.totalorder %s250, 255
      %s252 = scalar_select %p251, %s250, 255
      %p253 = scmp.lt.s32.totalorder %s20, 0
      %s254 = scalar_select %p253, %s20, 0
      %s255 = sadd.s32 %s254, %s252
      %s256 = smul.addr %s255, 4
      %s257 = scalar_lea.vmem %s3, %s256
      %s258 = smul.u32 64, %s19
      %p260 = scmp.eq.s32.totalorder %s21, 0
      // Predicated region
      $region33: #{discriminator_forward.4} parent=31 // pred_check
        %p261 = pneg %p260
      $region34: #{discriminator_forward.4} parent=31 // pred_check_branch
        %263 = sbr.rel (%p261) target = $region36
      $region35: #{discriminator_forward.4} parent=31 // pred_region
        %vm264 = vcmask 64512
        %265 = vst.msk [vmem:[#allocation2] sm:$0xff] %vm264, 0.0
        %266 = vst.msk [vmem:[#allocation2 + $0x8] sm:$0xff] %vm264, 0.0
        %267 = vst.msk [vmem:[#allocation2 + $0x10] sm:$0xff] %vm264, 0.0
        %268 = vst.msk [vmem:[#allocation2 + $0x18] sm:$0xff] %vm264, 0.0
        %269 = vst.msk [vmem:[#allocation2 + $0x20] sm:$0xff] %vm264, 0.0
        %270 = vst.msk [vmem:[#allocation2 + $0x28] sm:$0xff] %vm264, 0.0
        %271 = vst.msk [vmem:[#allocation2 + $0x30] sm:$0xff] %vm264, 0.0
        %272 = vst.msk [vmem:[#allocation2 + $0x38] sm:$0xff] %vm264, 0.0
        %273 = vst.msk [vmem:[#allocation2 + $0x40] sm:$0xff] %vm264, 0.0
        %274 = vst.msk [vmem:[#allocation2 + $0x48] sm:$0xff] %vm264, 0.0
        %275 = vst.msk [vmem:[#allocation2 + $0x50] sm:$0xff] %vm264, 0.0
        %276 = vst.msk [vmem:[#allocation2 + $0x58] sm:$0xff] %vm264, 0.0
        %277 = vst.msk [vmem:[#allocation2 + $0x60] sm:$0xff] %vm264, 0.0
        %278 = vst.msk [vmem:[#allocation2 + $0x68] sm:$0xff] %vm264, 0.0
        %279 = vst.msk [vmem:[#allocation2 + $0x70] sm:$0xff] %vm264, 0.0
        %280 = vst.msk [vmem:[#allocation2 + $0x78] sm:$0xff] %vm264, 0.0
        %281 = vst.msk [vmem:[#allocation2 + $0x80] sm:$0xff] %vm264, 0.0
        %282 = vst.msk [vmem:[#allocation2 + $0x88] sm:$0xff] %vm264, 0.0
        %283 = vst.msk [vmem:[#allocation2 + $0x90] sm:$0xff] %vm264, 0.0
        %284 = vst.msk [vmem:[#allocation2 + $0x98] sm:$0xff] %vm264, 0.0
        %285 = vst.msk [vmem:[#allocation2 + $0xa0] sm:$0xff] %vm264, 0.0
        %286 = vst.msk [vmem:[#allocation2 + $0xa8] sm:$0xff] %vm264, 0.0
        %287 = vst.msk [vmem:[#allocation2 + $0xb0] sm:$0xff] %vm264, 0.0
        %288 = vst.msk [vmem:[#allocation2 + $0xb8] sm:$0xff] %vm264, 0.0
        %289 = vst.msk [vmem:[#allocation2 + $0xc0] sm:$0xff] %vm264, 0.0
        %290 = vst.msk [vmem:[#allocation2 + $0xc8] sm:$0xff] %vm264, 0.0
        %291 = vst.msk [vmem:[#allocation2 + $0xd0] sm:$0xff] %vm264, 0.0
        %292 = vst.msk [vmem:[#allocation2 + $0xd8] sm:$0xff] %vm264, 0.0
        %293 = vst.msk [vmem:[#allocation2 + $0xe0] sm:$0xff] %vm264, 0.0
        %294 = vst.msk [vmem:[#allocation2 + $0xe8] sm:$0xff] %vm264, 0.0
        %295 = vst.msk [vmem:[#allocation2 + $0xf0] sm:$0xff] %vm264, 0.0
        %296 = vst.msk [vmem:[#allocation2 + $0xf8] sm:$0xff] %vm264, 0.0
        %297 = vst.msk [vmem:[#allocation2 + $0x100] sm:$0xff] %vm264, 0.0
        %298 = vst.msk [vmem:[#allocation2 + $0x108] sm:$0xff] %vm264, 0.0
        %299 = vst.msk [vmem:[#allocation2 + $0x110] sm:$0xff] %vm264, 0.0
        %300 = vst.msk [vmem:[#allocation2 + $0x118] sm:$0xff] %vm264, 0.0
        %301 = vst.msk [vmem:[#allocation2 + $0x120] sm:$0xff] %vm264, 0.0
        %302 = vst.msk [vmem:[#allocation2 + $0x128] sm:$0xff] %vm264, 0.0
        %303 = vst.msk [vmem:[#allocation2 + $0x130] sm:$0xff] %vm264, 0.0
        %304 = vst.msk [vmem:[#allocation2 + $0x138] sm:$0xff] %vm264, 0.0
        %305 = vst.msk [vmem:[#allocation2 + $0x140] sm:$0xff] %vm264, 0.0
        %306 = vst.msk [vmem:[#allocation2 + $0x148] sm:$0xff] %vm264, 0.0
        %307 = vst.msk [vmem:[#allocation2 + $0x150] sm:$0xff] %vm264, 0.0
        %308 = vst.msk [vmem:[#allocation2 + $0x158] sm:$0xff] %vm264, 0.0
        %309 = vst.msk [vmem:[#allocation2 + $0x160] sm:$0xff] %vm264, 0.0
        %310 = vst.msk [vmem:[#allocation2 + $0x168] sm:$0xff] %vm264, 0.0
        %311 = vst.msk [vmem:[#allocation2 + $0x170] sm:$0xff] %vm264, 0.0
        %312 = vst.msk [vmem:[#allocation2 + $0x178] sm:$0xff] %vm264, 0.0
        %313 = vst.msk [vmem:[#allocation2 + $0x180] sm:$0xff] %vm264, 0.0
        %314 = vst.msk [vmem:[#allocation2 + $0x188] sm:$0xff] %vm264, 0.0
        %315 = vst.msk [vmem:[#allocation2 + $0x190] sm:$0xff] %vm264, 0.0
        %316 = vst.msk [vmem:[#allocation2 + $0x198] sm:$0xff] %vm264, 0.0
        %317 = vst.msk [vmem:[#allocation2 + $0x1a0] sm:$0xff] %vm264, 0.0
        %318 = vst.msk [vmem:[#allocation2 + $0x1a8] sm:$0xff] %vm264, 0.0
        %319 = vst.msk [vmem:[#allocation2 + $0x1b0] sm:$0xff] %vm264, 0.0
        %320 = vst.msk [vmem:[#allocation2 + $0x1b8] sm:$0xff] %vm264, 0.0
        %321 = vst.msk [vmem:[#allocation2 + $0x1c0] sm:$0xff] %vm264, 0.0
        %322 = vst.msk [vmem:[#allocation2 + $0x1c8] sm:$0xff] %vm264, 0.0
        %323 = vst.msk [vmem:[#allocation2 + $0x1d0] sm:$0xff] %vm264, 0.0
        %324 = vst.msk [vmem:[#allocation2 + $0x1d8] sm:$0xff] %vm264, 0.0
        %325 = vst.msk [vmem:[#allocation2 + $0x1e0] sm:$0xff] %vm264, 0.0
        %326 = vst.msk [vmem:[#allocation2 + $0x1e8] sm:$0xff] %vm264, 0.0
        %327 = vst.msk [vmem:[#allocation2 + $0x1f0] sm:$0xff] %vm264, 0.0
        %328 = vst.msk [vmem:[#allocation2 + $0x1f8] sm:$0xff] %vm264, 0.0
      $region36: #{discriminator_forward.4} parent=31 // pred_fallthru
        _
      %v329 = vld [vmem:[#allocation2] sm:$0xff]
      %v330 = vld [vmem:[#allocation2 + $0x8] sm:$0xff]
      %v331 = vld [vmem:[#allocation2 + $0x10] sm:$0xff]
      %v332 = vld [vmem:[#allocation2 + $0x18] sm:$0xff]
      %v333 = vld [vmem:[#allocation2 + $0x20] sm:$0xff]
      %v334 = vld [vmem:[#allocation2 + $0x28] sm:$0xff]
      %v335 = vld [vmem:[#allocation2 + $0x30] sm:$0xff]
      %v336 = vld [vmem:[#allocation2 + $0x38] sm:$0xff]
      %v337 = vld [vmem:[#allocation2 + $0x40] sm:$0xff]
      %v338 = vld [vmem:[#allocation2 + $0x48] sm:$0xff]
      %v339 = vld [vmem:[#allocation2 + $0x50] sm:$0xff]
      %v340 = vld [vmem:[#allocation2 + $0x58] sm:$0xff]
      %v341 = vld [vmem:[#allocation2 + $0x60] sm:$0xff]
      %v342 = vld [vmem:[#allocation2 + $0x68] sm:$0xff]
      %v343 = vld [vmem:[#allocation2 + $0x70] sm:$0xff]
      %v344 = vld [vmem:[#allocation2 + $0x78] sm:$0xff]
      %v345 = vld [vmem:[#allocation2 + $0x80] sm:$0xff]
      %v346 = vld [vmem:[#allocation2 + $0x88] sm:$0xff]
      %v347 = vld [vmem:[#allocation2 + $0x90] sm:$0xff]
      %v348 = vld [vmem:[#allocation2 + $0x98] sm:$0xff]
      %v349 = vld [vmem:[#allocation2 + $0xa0] sm:$0xff]
      %v350 = vld [vmem:[#allocation2 + $0xa8] sm:$0xff]
      %v351 = vld [vmem:[#allocation2 + $0xb0] sm:$0xff]
      %v352 = vld [vmem:[#allocation2 + $0xb8] sm:$0xff]
      %v353 = vld [vmem:[#allocation2 + $0xc0] sm:$0xff]
      %v354 = vld [vmem:[#allocation2 + $0xc8] sm:$0xff]
      %v355 = vld [vmem:[#allocation2 + $0xd0] sm:$0xff]
      %v356 = vld [vmem:[#allocation2 + $0xd8] sm:$0xff]
      %v357 = vld [vmem:[#allocation2 + $0xe0] sm:$0xff]
      %v358 = vld [vmem:[#allocation2 + $0xe8] sm:$0xff]
      %v359 = vld [vmem:[#allocation2 + $0xf0] sm:$0xff]
      %v360 = vld [vmem:[#allocation2 + $0xf8] sm:$0xff]
      %v361 = vld [vmem:[#allocation2 + $0x100] sm:$0xff]
      %v362 = vld [vmem:[#allocation2 + $0x108] sm:$0xff]
      %v363 = vld [vmem:[#allocation2 + $0x110] sm:$0xff]
      %v364 = vld [vmem:[#allocation2 + $0x118] sm:$0xff]
      %v365 = vld [vmem:[#allocation2 + $0x120] sm:$0xff]
      %v366 = vld [vmem:[#allocation2 + $0x128] sm:$0xff]
      %v367 = vld [vmem:[#allocation2 + $0x130] sm:$0xff]
      %v368 = vld [vmem:[#allocation2 + $0x138] sm:$0xff]
      %v369 = vld [vmem:[#allocation2 + $0x140] sm:$0xff]
      %v370 = vld [vmem:[#allocation2 + $0x148] sm:$0xff]
      %v371 = vld [vmem:[#allocation2 + $0x150] sm:$0xff]
      %v372 = vld [vmem:[#allocation2 + $0x158] sm:$0xff]
      %v373 = vld [vmem:[#allocation2 + $0x160] sm:$0xff]
      %v374 = vld [vmem:[#allocation2 + $0x168] sm:$0xff]
      %v375 = vld [vmem:[#allocation2 + $0x170] sm:$0xff]
      %v376 = vld [vmem:[#allocation2 + $0x178] sm:$0xff]
      %v377 = vld [vmem:[#allocation2 + $0x180] sm:$0xff]
      %v378 = vld [vmem:[#allocation2 + $0x188] sm:$0xff]
      %v379 = vld [vmem:[#allocation2 + $0x190] sm:$0xff]
      %v380 = vld [vmem:[#allocation2 + $0x198] sm:$0xff]
      %v381 = vld [vmem:[#allocation2 + $0x1a0] sm:$0xff]
      %v382 = vld [vmem:[#allocation2 + $0x1a8] sm:$0xff]
      %v383 = vld [vmem:[#allocation2 + $0x1b0] sm:$0xff]
      %v384 = vld [vmem:[#allocation2 + $0x1b8] sm:$0xff]
      %v385 = vld [vmem:[#allocation2 + $0x1c0] sm:$0xff]
      %v386 = vld [vmem:[#allocation2 + $0x1c8] sm:$0xff]
      %v387 = vld [vmem:[#allocation2 + $0x1d0] sm:$0xff]
      %v388 = vld [vmem:[#allocation2 + $0x1d8] sm:$0xff]
      %v389 = vld [vmem:[#allocation2 + $0x1e0] sm:$0xff]
      %v390 = vld [vmem:[#allocation2 + $0x1e8] sm:$0xff]
      %v391 = vld [vmem:[#allocation2 + $0x1f0] sm:$0xff]
      %v392 = vld [vmem:[#allocation2 + $0x1f8] sm:$0xff]
      %v393 = vld [vmem:[%s236] sm:$0xf]
      %v394 = vld [vmem:[%s236 + $0x4] sm:$0xf]
      %v395 = vld [vmem:[%s236 + $0x8] sm:$0xf]
      %v396 = vld [vmem:[%s236 + $0xc] sm:$0xf]
      %v397 = vld [vmem:[%s236 + $0x10] sm:$0xf]
      %v398 = vld [vmem:[%s236 + $0x14] sm:$0xf]
      %v399 = vld [vmem:[%s236 + $0x18] sm:$0xf]
      %v400 = vld [vmem:[%s236 + $0x1c] sm:$0xf]
      %v401 = vld [vmem:[%s236 + $0x20] sm:$0xf]
      %v402 = vld [vmem:[%s236 + $0x24] sm:$0xf]
      %v403 = vld [vmem:[%s236 + $0x28] sm:$0xf]
      %v404 = vld [vmem:[%s236 + $0x2c] sm:$0xf]
      %v405 = vld [vmem:[%s236 + $0x30] sm:$0xf]
      %v406 = vld [vmem:[%s236 + $0x34] sm:$0xf]
      %v407 = vld [vmem:[%s236 + $0x38] sm:$0xf]
      %v408 = vld [vmem:[%s236 + $0x3c] sm:$0xf]
      %v409 = vld [vmem:[%s236 + $0x40] sm:$0xf]
      %v410 = vld [vmem:[%s236 + $0x44] sm:$0xf]
      %v411 = vld [vmem:[%s236 + $0x48] sm:$0xf]
      %v412 = vld [vmem:[%s236 + $0x4c] sm:$0xf]
      %v413 = vld [vmem:[%s236 + $0x50] sm:$0xf]
      %v414 = vld [vmem:[%s236 + $0x54] sm:$0xf]
      %v415 = vld [vmem:[%s236 + $0x58] sm:$0xf]
      %v416 = vld [vmem:[%s236 + $0x5c] sm:$0xf]
      %v417 = vld [vmem:[%s236 + $0x60] sm:$0xf]
      %v418 = vld [vmem:[%s236 + $0x64] sm:$0xf]
      %v419 = vld [vmem:[%s236 + $0x68] sm:$0xf]
      %v420 = vld [vmem:[%s236 + $0x6c] sm:$0xf]
      %v421 = vld [vmem:[%s236 + $0x70] sm:$0xf]
      %v422 = vld [vmem:[%s236 + $0x74] sm:$0xf]
      %v423 = vld [vmem:[%s236 + $0x78] sm:$0xf]
      %v424 = vld [vmem:[%s236 + $0x7c] sm:$0xf]
      %v425 = vld [vmem:[%s236 + $0x80] sm:$0xf]
      %v426 = vld [vmem:[%s236 + $0x84] sm:$0xf]
      %v427 = vld [vmem:[%s236 + $0x88] sm:$0xf]
      %v428 = vld [vmem:[%s236 + $0x8c] sm:$0xf]
      %v429 = vld [vmem:[%s236 + $0x90] sm:$0xf]
      %v430 = vld [vmem:[%s236 + $0x94] sm:$0xf]
      %v431 = vld [vmem:[%s236 + $0x98] sm:$0xf]
      %v432 = vld [vmem:[%s236 + $0x9c] sm:$0xf]
      %v433 = vld [vmem:[%s236 + $0xa0] sm:$0xf]
      %v434 = vld [vmem:[%s236 + $0xa4] sm:$0xf]
      %v435 = vld [vmem:[%s236 + $0xa8] sm:$0xf]
      %v436 = vld [vmem:[%s236 + $0xac] sm:$0xf]
      %v437 = vld [vmem:[%s236 + $0xb0] sm:$0xf]
      %v438 = vld [vmem:[%s236 + $0xb4] sm:$0xf]
      %v439 = vld [vmem:[%s236 + $0xb8] sm:$0xf]
      %v440 = vld [vmem:[%s236 + $0xbc] sm:$0xf]
      %v441 = vld [vmem:[%s236 + $0xc0] sm:$0xf]
      %v442 = vld [vmem:[%s236 + $0xc4] sm:$0xf]
      %v443 = vld [vmem:[%s236 + $0xc8] sm:$0xf]
      %v444 = vld [vmem:[%s236 + $0xcc] sm:$0xf]
      %v445 = vld [vmem:[%s236 + $0xd0] sm:$0xf]
      %v446 = vld [vmem:[%s236 + $0xd4] sm:$0xf]
      %v447 = vld [vmem:[%s236 + $0xd8] sm:$0xf]
      %v448 = vld [vmem:[%s236 + $0xdc] sm:$0xf]
      %v449 = vld [vmem:[%s236 + $0xe0] sm:$0xf]
      %v450 = vld [vmem:[%s236 + $0xe4] sm:$0xf]
      %v451 = vld [vmem:[%s236 + $0xe8] sm:$0xf]
      %v452 = vld [vmem:[%s236 + $0xec] sm:$0xf]
      %v453 = vld [vmem:[%s236 + $0xf0] sm:$0xf]
      %v454 = vld [vmem:[%s236 + $0xf4] sm:$0xf]
      %v455 = vld [vmem:[%s236 + $0xf8] sm:$0xf]
      %v456 = vld [vmem:[%s236 + $0xfc] sm:$0xf]
      %v457 = vld [vmem:[%s245] sm:$0xf]
      %v458 = vld [vmem:[%s245 + $0x4] sm:$0xf]
      %v459 = vld [vmem:[%s245 + $0x8] sm:$0xf]
      %v460 = vld [vmem:[%s245 + $0xc] sm:$0xf]
      %v461 = vld [vmem:[%s245 + $0x10] sm:$0xf]
      %v462 = vld [vmem:[%s245 + $0x14] sm:$0xf]
      %v527 = vunpack.c.l.b16 %v393
      %v528 = vunpack.c.l.b16 %v394
      %v529 = vunpack.c.l.b16 %v395
      %v530 = vunpack.c.l.b16 %v396
      %v531 = vunpack.c.l.b16 %v397
      %v532 = vunpack.c.l.b16 %v398
      %v533 = vunpack.c.l.b16 %v399
      %v534 = vunpack.c.l.b16 %v400
      %v535 = vunpack.c.l.b16 %v401
      %v536 = vunpack.c.l.b16 %v402
      %v537 = vunpack.c.l.b16 %v403
      %v538 = vunpack.c.l.b16 %v404
      %v539 = vunpack.c.l.b16 %v405
      %v540 = vunpack.c.l.b16 %v406
      %v541 = vunpack.c.l.b16 %v407
      %v542 = vunpack.c.l.b16 %v408
      %v543 = vunpack.c.l.b16 %v409
      %v544 = vunpack.c.l.b16 %v410
      %v545 = vunpack.c.l.b16 %v411
      %v546 = vunpack.c.l.b16 %v412
      %v547 = vunpack.c.l.b16 %v413
      %v548 = vunpack.c.l.b16 %v414
      %v549 = vunpack.c.l.b16 %v415
      %v550 = vunpack.c.l.b16 %v416
      %v551 = vunpack.c.l.b16 %v417
      %v552 = vunpack.c.l.b16 %v418
      %v553 = vunpack.c.l.b16 %v419
      %v554 = vunpack.c.l.b16 %v420
      %v555 = vunpack.c.l.b16 %v421
      %v556 = vunpack.c.l.b16 %v422
      %v557 = vunpack.c.l.b16 %v423
      %v558 = vunpack.c.l.b16 %v424
      %v559 = vunpack.c.l.b16 %v425
      %v560 = vunpack.c.l.b16 %v426
      %v561 = vunpack.c.l.b16 %v427
      %v562 = vunpack.c.l.b16 %v428
      %v563 = vunpack.c.l.b16 %v429
      %v564 = vunpack.c.l.b16 %v430
      %v565 = vunpack.c.l.b16 %v431
      %v566 = vunpack.c.l.b16 %v432
      %v567 = vunpack.c.l.b16 %v433
      %v568 = vunpack.c.l.b16 %v434
      %v569 = vunpack.c.l.b16 %v435
      %v570 = vunpack.c.l.b16 %v436
      %v571 = vunpack.c.l.b16 %v437
      %v572 = vunpack.c.l.b16 %v438
      %v573 = vunpack.c.l.b16 %v439
      %v574 = vunpack.c.l.b16 %v440
      %v575 = vunpack.c.l.b16 %v441
      %v576 = vunpack.c.l.b16 %v442
      %v577 = vunpack.c.l.b16 %v443
      %v578 = vunpack.c.l.b16 %v444
      %v579 = vunpack.c.l.b16 %v445
      %v580 = vunpack.c.l.b16 %v446
      %v581 = vunpack.c.l.b16 %v447
      %v582 = vunpack.c.l.b16 %v448
      %v583 = vunpack.c.l.b16 %v449
      %v584 = vunpack.c.l.b16 %v450
      %v585 = vunpack.c.l.b16 %v451
      %v586 = vunpack.c.l.b16 %v452
      %v587 = vunpack.c.l.b16 %v453
      %v588 = vunpack.c.l.b16 %v454
      %v589 = vunpack.c.l.b16 %v455
      %v590 = vunpack.c.l.b16 %v456
      %v591 = vpack.c.b16 %v528, %v527
      %v592 = vpack.c.b16 %v530, %v529
      %v593 = vpack.c.b16 %v532, %v531
      %v594 = vpack.c.b16 %v534, %v533
      %v595 = vpack.c.b16 %v536, %v535
      %v596 = vpack.c.b16 %v538, %v537
      %v597 = vpack.c.b16 %v540, %v539
      %v598 = vpack.c.b16 %v542, %v541
      %v599 = vpack.c.b16 %v544, %v543
      %v600 = vpack.c.b16 %v546, %v545
      %v601 = vpack.c.b16 %v548, %v547
      %v602 = vpack.c.b16 %v550, %v549
      %v603 = vpack.c.b16 %v552, %v551
      %v604 = vpack.c.b16 %v554, %v553
      %v605 = vpack.c.b16 %v556, %v555
      %v606 = vpack.c.b16 %v558, %v557
      %v607 = vpack.c.b16 %v560, %v559
      %v608 = vpack.c.b16 %v562, %v561
      %v609 = vpack.c.b16 %v564, %v563
      %v610 = vpack.c.b16 %v566, %v565
      %v611 = vpack.c.b16 %v568, %v567
      %v612 = vpack.c.b16 %v570, %v569
      %v613 = vpack.c.b16 %v572, %v571
      %v614 = vpack.c.b16 %v574, %v573
      %v615 = vpack.c.b16 %v576, %v575
      %v616 = vpack.c.b16 %v578, %v577
      %v617 = vpack.c.b16 %v580, %v579
      %v618 = vpack.c.b16 %v582, %v581
      %v619 = vpack.c.b16 %v584, %v583
      %v620 = vpack.c.b16 %v586, %v585
      %v621 = vpack.c.b16 %v588, %v587
      %v622 = vpack.c.b16 %v590, %v589
      %v629 = vunpack.c.l.b16 %v457
      %v630 = vunpack.c.l.b16 %v458
      %v631 = vunpack.c.l.b16 %v459
      %v632 = vunpack.c.l.b16 %v460
      %v633 = vunpack.c.l.b16 %v461
      %v634 = vunpack.c.l.b16 %v462
      %v635 = vpack.c.b16 %v630, %v629
      %v636 = vpack.c.b16 %v632, %v631
      %v637 = vpack.c.b16 %v634, %v633
      %vm641 = vcmask 392192
      %v643 = vsel %vm641, %v591, 0
      %v646 = vsel %vm641, %v592, 0
      %v649 = vsel %vm641, %v593, 0
      %v652 = vsel %vm641, %v594, 0
      %v655 = vsel %vm641, %v595, 0
      %v658 = vsel %vm641, %v596, 0
      %v661 = vsel %vm641, %v597, 0
      %v664 = vsel %vm641, %v598, 0
      %v667 = vsel %vm641, %v599, 0
      %v670 = vsel %vm641, %v600, 0
      %v673 = vsel %vm641, %v601, 0
      %v676 = vsel %vm641, %v602, 0
      %v679 = vsel %vm641, %v603, 0
      %v682 = vsel %vm641, %v604, 0
      %v685 = vsel %vm641, %v605, 0
      %v688 = vsel %vm641, %v606, 0
      %v691 = vsel %vm641, %v607, 0
      %v694 = vsel %vm641, %v608, 0
      %v697 = vsel %vm641, %v609, 0
      %v700 = vsel %vm641, %v610, 0
      %v703 = vsel %vm641, %v611, 0
      %v706 = vsel %vm641, %v612, 0
      %v709 = vsel %vm641, %v613, 0
      %v712 = vsel %vm641, %v614, 0
      %v715 = vsel %vm641, %v615, 0
      %v718 = vsel %vm641, %v616, 0
      %v721 = vsel %vm641, %v617, 0
      %v724 = vsel %vm641, %v618, 0
      %v727 = vsel %vm641, %v619, 0
      %v730 = vsel %vm641, %v620, 0
      %v733 = vsel %vm641, %v621, 0
      %v736 = vsel %vm641, %v622, 0
      %738 = vmatprep.subr.bf16.mxu0 0
      %739 = vmatpush1.bf16.msra.mxu0 %v635
      %740 = vmatprep.subr.bf16.mxu0 0
      %741 = vmatpush1.bf16.msra.mxu0 %v636
      %742 = vmatprep.subr.bf16.mxu0 0
      %743 = vmatpush1.bf16.msra.mxu0 %v637
      %744 = vmatprep.subr.bf16.mxu0 0
      %745 = vmatpush1.bf16.msra.mxu0 0
      %746 = vmatprep.subr.bf16.mxu0 0
      %747 = vmatpush1.bf16.msra.mxu0 0
      %748 = vmatprep.subr.bf16.mxu0 0
      %749 = vmatpush1.bf16.msra.mxu0 0
      %750 = vmatprep.subr.bf16.mxu0 0
      %751 = vmatpush1.bf16.msra.mxu0 0
      %752 = vmatprep.subr.bf16.mxu0 0
      %753 = vmatpush1.bf16.msra.mxu0 0
      %754 = vmatprep.subr.bf16.mxu0 0
      %755 = vmatpush1.bf16.msra.mxu0 0
      %756 = vmatprep.subr.bf16.mxu0 0
      %757 = vmatpush1.bf16.msra.mxu0 0
      %758 = vmatprep.subr.bf16.mxu0 0
      %759 = vmatpush1.bf16.msra.mxu0 0
      %760 = vmatprep.subr.bf16.mxu0 0
      %761 = vmatpush1.bf16.msra.mxu0 0
      %762 = vmatprep.subr.bf16.mxu0 0
      %763 = vmatpush1.bf16.msra.mxu0 0
      %764 = vmatprep.subr.bf16.mxu0 0
      %765 = vmatpush1.bf16.msra.mxu0 0
      %766 = vmatprep.subr.bf16.mxu0 0
      %767 = vmatpush1.bf16.msra.mxu0 0
      %768 = vmatprep.subr.bf16.mxu0 0
      %769 = vmatpush1.bf16.msra.mxu0 0
      %770 = vmatprep.mubr.bf16.mxu0 0
      %771 = vmatmul.mubr.bf16.gmra.mrb[0].mxu0 %v643
      %v772 = vpop.f32.mrb[0].mxu0
      %v773 = vadd.f32 0.0, %v772
      %v774 = vpop.f32.mrb[0].mxu0
      %v775 = vpop.f32.mrb[0].mxu0
      %v776 = vadd.f32 0.0, %v775
      %v777 = vpop.f32.mrb[0].mxu0
      %778 = vmatprep.mubr.bf16.mxu0 0
      %779 = vmatmul.mubr.bf16.gmra.mrb[0].mxu0 %v646
      %v780 = vpop.f32.mrb[0].mxu0
      %v781 = vadd.f32 0.0, %v780
      %v782 = vpop.f32.mrb[0].mxu0
      %v783 = vpop.f32.mrb[0].mxu0
      %v784 = vadd.f32 0.0, %v783
      %v785 = vpop.f32.mrb[0].mxu0
      %786 = vmatprep.mubr.bf16.mxu0 0
      %787 = vmatmul.mubr.bf16.gmra.mrb[0].mxu0 %v649
      %v788 = vpop.f32.mrb[0].mxu0
      %v789 = vadd.f32 0.0, %v788
      %v790 = vpop.f32.mrb[0].mxu0
      %v791 = vpop.f32.mrb[0].mxu0
      %v792 = vadd.f32 0.0, %v791
      %v793 = vpop.f32.mrb[0].mxu0
      %794 = vmatprep.mubr.bf16.mxu0 0
      %795 = vmatmul.mubr.bf16.gmra.mrb[0].mxu0 %v652
      %v796 = vpop.f32.mrb[0].mxu0
      %v797 = vadd.f32 0.0, %v796
      %v798 = vpop.f32.mrb[0].mxu0
      %v799 = vpop.f32.mrb[0].mxu0
      %v800 = vadd.f32 0.0, %v799
      %v801 = vpop.f32.mrb[0].mxu0
      %802 = vmatprep.mubr.bf16.mxu0 0
      %803 = vmatmul.mubr.bf16.gmra.mrb[0].mxu0 %v655
      %v804 = vpop.f32.mrb[0].mxu0
      %v805 = vadd.f32 0.0, %v804
      %v806 = vpop.f32.mrb[0].mxu0
      %v807 = vpop.f32.mrb[0].mxu0
      %v808 = vadd.f32 0.0, %v807
      %v809 = vpop.f32.mrb[0].mxu0
      %810 = vmatprep.mubr.bf16.mxu0 0
      %811 = vmatmul.mubr.bf16.gmra.mrb[0].mxu0 %v658
      %v812 = vpop.f32.mrb[0].mxu0
      %v813 = vadd.f32 0.0, %v812
      %v814 = vpop.f32.mrb[0].mxu0
      %v815 = vpop.f32.mrb[0].mxu0
      %v816 = vadd.f32 0.0, %v815
      %v817 = vpop.f32.mrb[0].mxu0
      %818 = vmatprep.mubr.bf16.mxu0 0
      %819 = vmatmul.mubr.bf16.gmra.mrb[0].mxu0 %v661
      %v820 = vpop.f32.mrb[0].mxu0
      %v821 = vadd.f32 0.0, %v820
      %v822 = vpop.f32.mrb[0].mxu0
      %v823 = vpop.f32.mrb[0].mxu0
      %v824 = vadd.f32 0.0, %v823
      %v825 = vpop.f32.mrb[0].mxu0
      %826 = vmatprep.mubr.bf16.mxu0 0
      %827 = vmatmul.mubr.bf16.gmra.mrb[0].mxu0 %v664
      %v828 = vpop.f32.mrb[0].mxu0
      %v829 = vadd.f32 0.0, %v828
      %v830 = vpop.f32.mrb[0].mxu0
      %v831 = vpop.f32.mrb[0].mxu0
      %v832 = vadd.f32 0.0, %v831
      %v833 = vpop.f32.mrb[0].mxu0
      %834 = vmatprep.mubr.bf16.mxu0 0
      %835 = vmatmul.mubr.bf16.gmra.mrb[0].mxu0 %v667
      %v836 = vpop.f32.mrb[0].mxu0
      %v837 = vadd.f32 0.0, %v836
      %v838 = vpop.f32.mrb[0].mxu0
      %v839 = vpop.f32.mrb[0].mxu0
      %v840 = vadd.f32 0.0, %v839
      %v841 = vpop.f32.mrb[0].mxu0
      %842 = vmatprep.mubr.bf16.mxu0 0
      %843 = vmatmul.mubr.bf16.gmra.mrb[0].mxu0 %v670
      %v844 = vpop.f32.mrb[0].mxu0
      %v845 = vadd.f32 0.0, %v844
      %v846 = vpop.f32.mrb[0].mxu0
      %v847 = vpop.f32.mrb[0].mxu0
      %v848 = vadd.f32 0.0, %v847
      %v849 = vpop.f32.mrb[0].mxu0
      %850 = vmatprep.mubr.bf16.mxu0 0
      %851 = vmatmul.mubr.bf16.gmra.mrb[0].mxu0 %v673
      %v852 = vpop.f32.mrb[0].mxu0
      %v853 = vadd.f32 0.0, %v852
      %v854 = vpop.f32.mrb[0].mxu0
      %v855 = vpop.f32.mrb[0].mxu0
      %v856 = vadd.f32 0.0, %v855
      %v857 = vpop.f32.mrb[0].mxu0
      %858 = vmatprep.mubr.bf16.mxu0 0
      %859 = vmatmul.mubr.bf16.gmra.mrb[0].mxu0 %v676
      %v860 = vpop.f32.mrb[0].mxu0
      %v861 = vadd.f32 0.0, %v860
      %v862 = vpop.f32.mrb[0].mxu0
      %v863 = vpop.f32.mrb[0].mxu0
      %v864 = vadd.f32 0.0, %v863
      %v865 = vpop.f32.mrb[0].mxu0
      %866 = vmatprep.mubr.bf16.mxu0 0
      %867 = vmatmul.mubr.bf16.gmra.mrb[0].mxu0 %v679
      %v868 = vpop.f32.mrb[0].mxu0
      %v869 = vadd.f32 0.0, %v868
      %v870 = vpop.f32.mrb[0].mxu0
      %v871 = vpop.f32.mrb[0].mxu0
      %v872 = vadd.f32 0.0, %v871
      %v873 = vpop.f32.mrb[0].mxu0
      %874 = vmatprep.mubr.bf16.mxu0 0
      %875 = vmatmul.mubr.bf16.gmra.mrb[0].mxu0 %v682
      %v876 = vpop.f32.mrb[0].mxu0
      %v877 = vadd.f32 0.0, %v876
      %v878 = vpop.f32.mrb[0].mxu0
      %v879 = vpop.f32.mrb[0].mxu0
      %v880 = vadd.f32 0.0, %v879
      %v881 = vpop.f32.mrb[0].mxu0
      %882 = vmatprep.mubr.bf16.mxu0 0
      %883 = vmatmul.mubr.bf16.gmra.mrb[0].mxu0 %v685
      %v884 = vpop.f32.mrb[0].mxu0
      %v885 = vadd.f32 0.0, %v884
      %v886 = vpop.f32.mrb[0].mxu0
      %v887 = vpop.f32.mrb[0].mxu0
      %v888 = vadd.f32 0.0, %v887
      %v889 = vpop.f32.mrb[0].mxu0
      %890 = vmatprep.mubr.bf16.mxu0 0
      %891 = vmatmul.mubr.bf16.gmra.mrb[0].mxu0 %v688
      %v892 = vpop.f32.mrb[0].mxu0
      %v893 = vadd.f32 0.0, %v892
      %v894 = vpop.f32.mrb[0].mxu0
      %v895 = vpop.f32.mrb[0].mxu0
      %v896 = vadd.f32 0.0, %v895
      %v897 = vpop.f32.mrb[0].mxu0
      %898 = vmatprep.mubr.bf16.mxu0 0
      %899 = vmatmul.mubr.bf16.gmra.mrb[0].mxu0 %v691
      %v900 = vpop.f32.mrb[0].mxu0
      %v901 = vadd.f32 0.0, %v900
      %v902 = vpop.f32.mrb[0].mxu0
      %v903 = vpop.f32.mrb[0].mxu0
      %v904 = vadd.f32 0.0, %v903
      %v905 = vpop.f32.mrb[0].mxu0
      %906 = vmatprep.mubr.bf16.mxu0 0
      %907 = vmatmul.mubr.bf16.gmra.mrb[0].mxu0 %v694
      %v908 = vpop.f32.mrb[0].mxu0
      %v909 = vadd.f32 0.0, %v908
      %v910 = vpop.f32.mrb[0].mxu0
      %v911 = vpop.f32.mrb[0].mxu0
      %v912 = vadd.f32 0.0, %v911
      %v913 = vpop.f32.mrb[0].mxu0
      %914 = vmatprep.mubr.bf16.mxu0 0
      %915 = vmatmul.mubr.bf16.gmra.mrb[0].mxu0 %v697
      %v916 = vpop.f32.mrb[0].mxu0
      %v917 = vadd.f32 0.0, %v916
      %v918 = vpop.f32.mrb[0].mxu0
      %v919 = vpop.f32.mrb[0].mxu0
      %v920 = vadd.f32 0.0, %v919
      %v921 = vpop.f32.mrb[0].mxu0
      %922 = vmatprep.mubr.bf16.mxu0 0
      %923 = vmatmul.mubr.bf16.gmra.mrb[0].mxu0 %v700
      %v924 = vpop.f32.mrb[0].mxu0
      %v925 = vadd.f32 0.0, %v924
      %v926 = vpop.f32.mrb[0].mxu0
      %v927 = vpop.f32.mrb[0].mxu0
      %v928 = vadd.f32 0.0, %v927
      %v929 = vpop.f32.mrb[0].mxu0
      %930 = vmatprep.mubr.bf16.mxu0 0
      %931 = vmatmul.mubr.bf16.gmra.mrb[0].mxu0 %v703
      %v932 = vpop.f32.mrb[0].mxu0
      %v933 = vadd.f32 0.0, %v932
      %v934 = vpop.f32.mrb[0].mxu0
      %v935 = vpop.f32.mrb[0].mxu0
      %v936 = vadd.f32 0.0, %v935
      %v937 = vpop.f32.mrb[0].mxu0
      %938 = vmatprep.mubr.bf16.mxu0 0
      %939 = vmatmul.mubr.bf16.gmra.mrb[0].mxu0 %v706
      %v940 = vpop.f32.mrb[0].mxu0
      %v941 = vadd.f32 0.0, %v940
      %v942 = vpop.f32.mrb[0].mxu0
      %v943 = vpop.f32.mrb[0].mxu0
      %v944 = vadd.f32 0.0, %v943
      %v945 = vpop.f32.mrb[0].mxu0
      %946 = vmatprep.mubr.bf16.mxu0 0
      %947 = vmatmul.mubr.bf16.gmra.mrb[0].mxu0 %v709
      %v948 = vpop.f32.mrb[0].mxu0
      %v949 = vadd.f32 0.0, %v948
      %v950 = vpop.f32.mrb[0].mxu0
      %v951 = vpop.f32.mrb[0].mxu0
      %v952 = vadd.f32 0.0, %v951
      %v953 = vpop.f32.mrb[0].mxu0
      %954 = vmatprep.mubr.bf16.mxu0 0
      %955 = vmatmul.mubr.bf16.gmra.mrb[0].mxu0 %v712
      %v956 = vpop.f32.mrb[0].mxu0
      %v957 = vadd.f32 0.0, %v956
      %v958 = vpop.f32.mrb[0].mxu0
      %v959 = vpop.f32.mrb[0].mxu0
      %v960 = vadd.f32 0.0, %v959
      %v961 = vpop.f32.mrb[0].mxu0
      %962 = vmatprep.mubr.bf16.mxu0 0
      %963 = vmatmul.mubr.bf16.gmra.mrb[0].mxu0 %v715
      %v964 = vpop.f32.mrb[0].mxu0
      %v965 = vadd.f32 0.0, %v964
      %v966 = vpop.f32.mrb[0].mxu0
      %v967 = vpop.f32.mrb[0].mxu0
      %v968 = vadd.f32 0.0, %v967
      %v969 = vpop.f32.mrb[0].mxu0
      %970 = vmatprep.mubr.bf16.mxu0 0
      %971 = vmatmul.mubr.bf16.gmra.mrb[0].mxu0 %v718
      %v972 = vpop.f32.mrb[0].mxu0
      %v973 = vadd.f32 0.0, %v972
      %v974 = vpop.f32.mrb[0].mxu0
      %v975 = vpop.f32.mrb[0].mxu0
      %v976 = vadd.f32 0.0, %v975
      %v977 = vpop.f32.mrb[0].mxu0
      %978 = vmatprep.mubr.bf16.mxu0 0
      %979 = vmatmul.mubr.bf16.gmra.mrb[0].mxu0 %v721
      %v980 = vpop.f32.mrb[0].mxu0
      %v981 = vadd.f32 0.0, %v980
      %v982 = vpop.f32.mrb[0].mxu0
      %v983 = vpop.f32.mrb[0].mxu0
      %v984 = vadd.f32 0.0, %v983
      %v985 = vpop.f32.mrb[0].mxu0
      %986 = vmatprep.mubr.bf16.mxu0 0
      %987 = vmatmul.mubr.bf16.gmra.mrb[0].mxu0 %v724
      %v988 = vpop.f32.mrb[0].mxu0
      %v989 = vadd.f32 0.0, %v988
      %v990 = vpop.f32.mrb[0].mxu0
      %v991 = vpop.f32.mrb[0].mxu0
      %v992 = vadd.f32 0.0, %v991
      %v993 = vpop.f32.mrb[0].mxu0
      %994 = vmatprep.mubr.bf16.mxu0 0
      %995 = vmatmul.mubr.bf16.gmra.mrb[0].mxu0 %v727
      %v996 = vpop.f32.mrb[0].mxu0
      %v997 = vadd.f32 0.0, %v996
      %v998 = vpop.f32.mrb[0].mxu0
      %v999 = vpop.f32.mrb[0].mxu0
      %v1000 = vadd.f32 0.0, %v999
      %v1001 = vpop.f32.mrb[0].mxu0
      %1002 = vmatprep.mubr.bf16.mxu0 0
      %1003 = vmatmul.mubr.bf16.gmra.mrb[0].mxu0 %v730
      %v1004 = vpop.f32.mrb[0].mxu0
      %v1005 = vadd.f32 0.0, %v1004
      %v1006 = vpop.f32.mrb[0].mxu0
      %v1007 = vpop.f32.mrb[0].mxu0
      %v1008 = vadd.f32 0.0, %v1007
      %v1009 = vpop.f32.mrb[0].mxu0
      %1010 = vmatprep.mubr.bf16.mxu0 0
      %1011 = vmatmul.mubr.bf16.gmra.mrb[0].mxu0 %v733
      %v1012 = vpop.f32.mrb[0].mxu0
      %v1013 = vadd.f32 0.0, %v1012
      %v1014 = vpop.f32.mrb[0].mxu0
      %v1015 = vpop.f32.mrb[0].mxu0
      %v1016 = vadd.f32 0.0, %v1015
      %v1017 = vpop.f32.mrb[0].mxu0
      %1018 = vmatprep.mubr.bf16.mxu0 0
      %1019 = vmatmul.mubr.bf16.gmra.mrb[0].mxu0 %v736
      %v1020 = vpop.f32.mrb[0].mxu0
      %v1021 = vadd.f32 0.0, %v1020
      %v1022 = vpop.f32.mrb[0].mxu0
      %v1023 = vpop.f32.mrb[0].mxu0
      %v1024 = vadd.f32 0.0, %v1023
      %v1025 = vpop.f32.mrb[0].mxu0
      %1026 = vdwg.mxu0
      %v1027 = vadd.f32 %v329, %v773
      %v1028 = vadd.f32 %v330, %v776
      %v1029 = vadd.f32 %v331, %v781
      %v1030 = vadd.f32 %v332, %v784
      %v1031 = vadd.f32 %v333, %v789
      %v1032 = vadd.f32 %v334, %v792
      %v1033 = vadd.f32 %v335, %v797
      %v1034 = vadd.f32 %v336, %v800
      %v1035 = vadd.f32 %v337, %v805
      %v1036 = vadd.f32 %v338, %v808
      %v1037 = vadd.f32 %v339, %v813
      %v1038 = vadd.f32 %v340, %v816
      %v1039 = vadd.f32 %v341, %v821
      %v1040 = vadd.f32 %v342, %v824
      %v1041 = vadd.f32 %v343, %v829
      %v1042 = vadd.f32 %v344, %v832
      %v1043 = vadd.f32 %v345, %v837
      %v1044 = vadd.f32 %v346, %v840
      %v1045 = vadd.f32 %v347, %v845
      %v1046 = vadd.f32 %v348, %v848
      %v1047 = vadd.f32 %v349, %v853
      %v1048 = vadd.f32 %v350, %v856
      %v1049 = vadd.f32 %v351, %v861
      %v1050 = vadd.f32 %v352, %v864
      %v1051 = vadd.f32 %v353, %v869
      %v1052 = vadd.f32 %v354, %v872
      %v1053 = vadd.f32 %v355, %v877
      %v1054 = vadd.f32 %v356, %v880
      %v1055 = vadd.f32 %v357, %v885
      %v1056 = vadd.f32 %v358, %v888
      %v1057 = vadd.f32 %v359, %v893
      %v1058 = vadd.f32 %v360, %v896
      %v1059 = vadd.f32 %v361, %v901
      %v1060 = vadd.f32 %v362, %v904
      %v1061 = vadd.f32 %v363, %v909
      %v1062 = vadd.f32 %v364, %v912
      %v1063 = vadd.f32 %v365, %v917
      %v1064 = vadd.f32 %v366, %v920
      %v1065 = vadd.f32 %v367, %v925
      %v1066 = vadd.f32 %v368, %v928
      %v1067 = vadd.f32 %v369, %v933
      %v1068 = vadd.f32 %v370, %v936
      %v1069 = vadd.f32 %v371, %v941
      %v1070 = vadd.f32 %v372, %v944
      %v1071 = vadd.f32 %v373, %v949
      %v1072 = vadd.f32 %v374, %v952
      %v1073 = vadd.f32 %v375, %v957
      %v1074 = vadd.f32 %v376, %v960
      %v1075 = vadd.f32 %v377, %v965
      %v1076 = vadd.f32 %v378, %v968
      %v1077 = vadd.f32 %v379, %v973
      %v1078 = vadd.f32 %v380, %v976
      %v1079 = vadd.f32 %v381, %v981
      %v1080 = vadd.f32 %v382, %v984
      %v1081 = vadd.f32 %v383, %v989
      %v1082 = vadd.f32 %v384, %v992
      %v1083 = vadd.f32 %v385, %v997
      %v1084 = vadd.f32 %v386, %v1000
      %v1085 = vadd.f32 %v387, %v1005
      %v1086 = vadd.f32 %v388, %v1008
      %v1087 = vadd.f32 %v389, %v1013
      %v1088 = vadd.f32 %v390, %v1016
      %v1089 = vadd.f32 %v391, %v1021
      %v1090 = vadd.f32 %v392, %v1024
      %vm1091 = vcmask 64512
      %1092 = vst.msk [vmem:[#allocation2] sm:$0xff] %vm1091, %v1027
      %1093 = vst.msk [vmem:[#allocation2 + $0x8] sm:$0xff] %vm1091, %v1028
      %1094 = vst.msk [vmem:[#allocation2 + $0x10] sm:$0xff] %vm1091, %v1029
      %1095 = vst.msk [vmem:[#allocation2 + $0x18] sm:$0xff] %vm1091, %v1030
      %1096 = vst.msk [vmem:[#allocation2 + $0x20] sm:$0xff] %vm1091, %v1031
      %1097 = vst.msk [vmem:[#allocation2 + $0x28] sm:$0xff] %vm1091, %v1032
      %1098 = vst.msk [vmem:[#allocation2 + $0x30] sm:$0xff] %vm1091, %v1033
      %1099 = vst.msk [vmem:[#allocation2 + $0x38] sm:$0xff] %vm1091, %v1034
      %1100 = vst.msk [vmem:[#allocation2 + $0x40] sm:$0xff] %vm1091, %v1035
      %1101 = vst.msk [vmem:[#allocation2 + $0x48] sm:$0xff] %vm1091, %v1036
      %1102 = vst.msk [vmem:[#allocation2 + $0x50] sm:$0xff] %vm1091, %v1037
      %1103 = vst.msk [vmem:[#allocation2 + $0x58] sm:$0xff] %vm1091, %v1038
      %1104 = vst.msk [vmem:[#allocation2 + $0x60] sm:$0xff] %vm1091, %v1039
      %1105 = vst.msk [vmem:[#allocation2 + $0x68] sm:$0xff] %vm1091, %v1040
      %1106 = vst.msk [vmem:[#allocation2 + $0x70] sm:$0xff] %vm1091, %v1041
      %1107 = vst.msk [vmem:[#allocation2 + $0x78] sm:$0xff] %vm1091, %v1042
      %1108 = vst.msk [vmem:[#allocation2 + $0x80] sm:$0xff] %vm1091, %v1043
      %1109 = vst.msk [vmem:[#allocation2 + $0x88] sm:$0xff] %vm1091, %v1044
      %1110 = vst.msk [vmem:[#allocation2 + $0x90] sm:$0xff] %vm1091, %v1045
      %1111 = vst.msk [vmem:[#allocation2 + $0x98] sm:$0xff] %vm1091, %v1046
      %1112 = vst.msk [vmem:[#allocation2 + $0xa0] sm:$0xff] %vm1091, %v1047
      %1113 = vst.msk [vmem:[#allocation2 + $0xa8] sm:$0xff] %vm1091, %v1048
      %1114 = vst.msk [vmem:[#allocation2 + $0xb0] sm:$0xff] %vm1091, %v1049
      %1115 = vst.msk [vmem:[#allocation2 + $0xb8] sm:$0xff] %vm1091, %v1050
      %1116 = vst.msk [vmem:[#allocation2 + $0xc0] sm:$0xff] %vm1091, %v1051
      %1117 = vst.msk [vmem:[#allocation2 + $0xc8] sm:$0xff] %vm1091, %v1052
      %1118 = vst.msk [vmem:[#allocation2 + $0xd0] sm:$0xff] %vm1091, %v1053
      %1119 = vst.msk [vmem:[#allocation2 + $0xd8] sm:$0xff] %vm1091, %v1054
      %1120 = vst.msk [vmem:[#allocation2 + $0xe0] sm:$0xff] %vm1091, %v1055
      %1121 = vst.msk [vmem:[#allocation2 + $0xe8] sm:$0xff] %vm1091, %v1056
      %1122 = vst.msk [vmem:[#allocation2 + $0xf0] sm:$0xff] %vm1091, %v1057
      %1123 = vst.msk [vmem:[#allocation2 + $0xf8] sm:$0xff] %vm1091, %v1058
      %1124 = vst.msk [vmem:[#allocation2 + $0x100] sm:$0xff] %vm1091, %v1059
      %1125 = vst.msk [vmem:[#allocation2 + $0x108] sm:$0xff] %vm1091, %v1060
      %1126 = vst.msk [vmem:[#allocation2 + $0x110] sm:$0xff] %vm1091, %v1061
      %1127 = vst.msk [vmem:[#allocation2 + $0x118] sm:$0xff] %vm1091, %v1062
      %1128 = vst.msk [vmem:[#allocation2 + $0x120] sm:$0xff] %vm1091, %v1063
      %1129 = vst.msk [vmem:[#allocation2 + $0x128] sm:$0xff] %vm1091, %v1064
      %1130 = vst.msk [vmem:[#allocation2 + $0x130] sm:$0xff] %vm1091, %v1065
      %1131 = vst.msk [vmem:[#allocation2 + $0x138] sm:$0xff] %vm1091, %v1066
      %1132 = vst.msk [vmem:[#allocation2 + $0x140] sm:$0xff] %vm1091, %v1067
      %1133 = vst.msk [vmem:[#allocation2 + $0x148] sm:$0xff] %vm1091, %v1068
      %1134 = vst.msk [vmem:[#allocation2 + $0x150] sm:$0xff] %vm1091, %v1069
      %1135 = vst.msk [vmem:[#allocation2 + $0x158] sm:$0xff] %vm1091, %v1070
      %1136 = vst.msk [vmem:[#allocation2 + $0x160] sm:$0xff] %vm1091, %v1071
      %1137 = vst.msk [vmem:[#allocation2 + $0x168] sm:$0xff] %vm1091, %v1072
      %1138 = vst.msk [vmem:[#allocation2 + $0x170] sm:$0xff] %vm1091, %v1073
      %1139 = vst.msk [vmem:[#allocation2 + $0x178] sm:$0xff] %vm1091, %v1074
      %1140 = vst.msk [vmem:[#allocation2 + $0x180] sm:$0xff] %vm1091, %v1075
      %1141 = vst.msk [vmem:[#allocation2 + $0x188] sm:$0xff] %vm1091, %v1076
      %1142 = vst.msk [vmem:[#allocation2 + $0x190] sm:$0xff] %vm1091, %v1077
      %1143 = vst.msk [vmem:[#allocation2 + $0x198] sm:$0xff] %vm1091, %v1078
      %1144 = vst.msk [vmem:[#allocation2 + $0x1a0] sm:$0xff] %vm1091, %v1079
      %1145 = vst.msk [vmem:[#allocation2 + $0x1a8] sm:$0xff] %vm1091, %v1080
      %1146 = vst.msk [vmem:[#allocation2 + $0x1b0] sm:$0xff] %vm1091, %v1081
      %1147 = vst.msk [vmem:[#allocation2 + $0x1b8] sm:$0xff] %vm1091, %v1082
      %1148 = vst.msk [vmem:[#allocation2 + $0x1c0] sm:$0xff] %vm1091, %v1083
      %1149 = vst.msk [vmem:[#allocation2 + $0x1c8] sm:$0xff] %vm1091, %v1084
      %1150 = vst.msk [vmem:[#allocation2 + $0x1d0] sm:$0xff] %vm1091, %v1085
      %1151 = vst.msk [vmem:[#allocation2 + $0x1d8] sm:$0xff] %vm1091, %v1086
      %1152 = vst.msk [vmem:[#allocation2 + $0x1e0] sm:$0xff] %vm1091, %v1087
      %1153 = vst.msk [vmem:[#allocation2 + $0x1e8] sm:$0xff] %vm1091, %v1088
      %1154 = vst.msk [vmem:[#allocation2 + $0x1f0] sm:$0xff] %vm1091, %v1089
      %1155 = vst.msk [vmem:[#allocation2 + $0x1f8] sm:$0xff] %vm1091, %v1090
      // Predicated region
      $region37: #{discriminator_forward.4} parent=31 // pred_check
        %p1156 = pneg %p260
      $region38: #{discriminator_forward.4} parent=31 // pred_check_branch
        %1158 = sbr.rel (%p1156) target = $region40
      $region39: #{discriminator_forward.4} parent=31 // pred_region
        %v1159 = vld [vmem:[#allocation2] sm:$0xff]
        %v1160 = vld [vmem:[#allocation2 + $0x8] sm:$0xff]
        %v1161 = vld [vmem:[#allocation2 + $0x10] sm:$0xff]
        %v1162 = vld [vmem:[#allocation2 + $0x18] sm:$0xff]
        %v1163 = vld [vmem:[#allocation2 + $0x20] sm:$0xff]
        %v1164 = vld [vmem:[#allocation2 + $0x28] sm:$0xff]
        %v1165 = vld [vmem:[#allocation2 + $0x30] sm:$0xff]
        %v1166 = vld [vmem:[#allocation2 + $0x38] sm:$0xff]
        %v1167 = vld [vmem:[#allocation2 + $0x40] sm:$0xff]
        %v1168 = vld [vmem:[#allocation2 + $0x48] sm:$0xff]
        %v1169 = vld [vmem:[#allocation2 + $0x50] sm:$0xff]
        %v1170 = vld [vmem:[#allocation2 + $0x58] sm:$0xff]
        %v1171 = vld [vmem:[#allocation2 + $0x60] sm:$0xff]
        %v1172 = vld [vmem:[#allocation2 + $0x68] sm:$0xff]
        %v1173 = vld [vmem:[#allocation2 + $0x70] sm:$0xff]
        %v1174 = vld [vmem:[#allocation2 + $0x78] sm:$0xff]
        %v1175 = vld [vmem:[#allocation2 + $0x80] sm:$0xff]
        %v1176 = vld [vmem:[#allocation2 + $0x88] sm:$0xff]
        %v1177 = vld [vmem:[#allocation2 + $0x90] sm:$0xff]
        %v1178 = vld [vmem:[#allocation2 + $0x98] sm:$0xff]
        %v1179 = vld [vmem:[#allocation2 + $0xa0] sm:$0xff]
        %v1180 = vld [vmem:[#allocation2 + $0xa8] sm:$0xff]
        %v1181 = vld [vmem:[#allocation2 + $0xb0] sm:$0xff]
        %v1182 = vld [vmem:[#allocation2 + $0xb8] sm:$0xff]
        %v1183 = vld [vmem:[#allocation2 + $0xc0] sm:$0xff]
        %v1184 = vld [vmem:[#allocation2 + $0xc8] sm:$0xff]
        %v1185 = vld [vmem:[#allocation2 + $0xd0] sm:$0xff]
        %v1186 = vld [vmem:[#allocation2 + $0xd8] sm:$0xff]
        %v1187 = vld [vmem:[#allocation2 + $0xe0] sm:$0xff]
        %v1188 = vld [vmem:[#allocation2 + $0xe8] sm:$0xff]
        %v1189 = vld [vmem:[#allocation2 + $0xf0] sm:$0xff]
        %v1190 = vld [vmem:[#allocation2 + $0xf8] sm:$0xff]
        %v1191 = vld [vmem:[#allocation2 + $0x100] sm:$0xff]
        %v1192 = vld [vmem:[#allocation2 + $0x108] sm:$0xff]
        %v1193 = vld [vmem:[#allocation2 + $0x110] sm:$0xff]
        %v1194 = vld [vmem:[#allocation2 + $0x118] sm:$0xff]
        %v1195 = vld [vmem:[#allocation2 + $0x120] sm:$0xff]
        %v1196 = vld [vmem:[#allocation2 + $0x128] sm:$0xff]
        %v1197 = vld [vmem:[#allocation2 + $0x130] sm:$0xff]
        %v1198 = vld [vmem:[#allocation2 + $0x138] sm:$0xff]
        %v1199 = vld [vmem:[#allocation2 + $0x140] sm:$0xff]
        %v1200 = vld [vmem:[#allocation2 + $0x148] sm:$0xff]
        %v1201 = vld [vmem:[#allocation2 + $0x150] sm:$0xff]
        %v1202 = vld [vmem:[#allocation2 + $0x158] sm:$0xff]
        %v1203 = vld [vmem:[#allocation2 + $0x160] sm:$0xff]
        %v1204 = vld [vmem:[#allocation2 + $0x168] sm:$0xff]
        %v1205 = vld [vmem:[#allocation2 + $0x170] sm:$0xff]
        %v1206 = vld [vmem:[#allocation2 + $0x178] sm:$0xff]
        %v1207 = vld [vmem:[#allocation2 + $0x180] sm:$0xff]
        %v1208 = vld [vmem:[#allocation2 + $0x188] sm:$0xff]
        %v1209 = vld [vmem:[#allocation2 + $0x190] sm:$0xff]
        %v1210 = vld [vmem:[#allocation2 + $0x198] sm:$0xff]
        %v1211 = vld [vmem:[#allocation2 + $0x1a0] sm:$0xff]
        %v1212 = vld [vmem:[#allocation2 + $0x1a8] sm:$0xff]
        %v1213 = vld [vmem:[#allocation2 + $0x1b0] sm:$0xff]
        %v1214 = vld [vmem:[#allocation2 + $0x1b8] sm:$0xff]
        %v1215 = vld [vmem:[#allocation2 + $0x1c0] sm:$0xff]
        %v1216 = vld [vmem:[#allocation2 + $0x1c8] sm:$0xff]
        %v1217 = vld [vmem:[#allocation2 + $0x1d0] sm:$0xff]
        %v1218 = vld [vmem:[#allocation2 + $0x1d8] sm:$0xff]
        %v1219 = vld [vmem:[#allocation2 + $0x1e0] sm:$0xff]
        %v1220 = vld [vmem:[#allocation2 + $0x1e8] sm:$0xff]
        %v1221 = vld [vmem:[#allocation2 + $0x1f0] sm:$0xff]
        %v1222 = vld [vmem:[#allocation2 + $0x1f8] sm:$0xff]
        %v1223 = vld [vmem:[%s249] sm:$0x1]
        %v1225 = vlaneseq
        %v1226 = vshrl.u32 %v1225, 7
        %v1227 = vsub.s32 0, %v1226
        %v1228 = vrot.slane %v1223, %v1227
        %v1230 = vadd.f32 %v1159, %v1228
        %v1231 = vadd.f32 %v1160, %v1228
        %v1232 = vadd.f32 %v1161, %v1228
        %v1233 = vadd.f32 %v1162, %v1228
        %v1234 = vadd.f32 %v1163, %v1228
        %v1235 = vadd.f32 %v1164, %v1228
        %v1236 = vadd.f32 %v1165, %v1228
        %v1237 = vadd.f32 %v1166, %v1228
        %v1238 = vadd.f32 %v1167, %v1228
        %v1239 = vadd.f32 %v1168, %v1228
        %v1240 = vadd.f32 %v1169, %v1228
        %v1241 = vadd.f32 %v1170, %v1228
        %v1242 = vadd.f32 %v1171, %v1228
        %v1243 = vadd.f32 %v1172, %v1228
        %v1244 = vadd.f32 %v1173, %v1228
        %v1245 = vadd.f32 %v1174, %v1228
        %v1246 = vadd.f32 %v1175, %v1228
        %v1247 = vadd.f32 %v1176, %v1228
        %v1248 = vadd.f32 %v1177, %v1228
        %v1249 = vadd.f32 %v1178, %v1228
        %v1250 = vadd.f32 %v1179, %v1228
        %v1251 = vadd.f32 %v1180, %v1228
        %v1252 = vadd.f32 %v1181, %v1228
        %v1253 = vadd.f32 %v1182, %v1228
        %v1254 = vadd.f32 %v1183, %v1228
        %v1255 = vadd.f32 %v1184, %v1228
        %v1256 = vadd.f32 %v1185, %v1228
        %v1257 = vadd.f32 %v1186, %v1228
        %v1258 = vadd.f32 %v1187, %v1228
        %v1259 = vadd.f32 %v1188, %v1228
        %v1260 = vadd.f32 %v1189, %v1228
        %v1261 = vadd.f32 %v1190, %v1228
        %v1262 = vadd.f32 %v1191, %v1228
        %v1263 = vadd.f32 %v1192, %v1228
        %v1264 = vadd.f32 %v1193, %v1228
        %v1265 = vadd.f32 %v1194, %v1228
        %v1266 = vadd.f32 %v1195, %v1228
        %v1267 = vadd.f32 %v1196, %v1228
        %v1268 = vadd.f32 %v1197, %v1228
        %v1269 = vadd.f32 %v1198, %v1228
        %v1270 = vadd.f32 %v1199, %v1228
        %v1271 = vadd.f32 %v1200, %v1228
        %v1272 = vadd.f32 %v1201, %v1228
        %v1273 = vadd.f32 %v1202, %v1228
        %v1274 = vadd.f32 %v1203, %v1228
        %v1275 = vadd.f32 %v1204, %v1228
        %v1276 = vadd.f32 %v1205, %v1228
        %v1277 = vadd.f32 %v1206, %v1228
        %v1278 = vadd.f32 %v1207, %v1228
        %v1279 = vadd.f32 %v1208, %v1228
        %v1280 = vadd.f32 %v1209, %v1228
        %v1281 = vadd.f32 %v1210, %v1228
        %v1282 = vadd.f32 %v1211, %v1228
        %v1283 = vadd.f32 %v1212, %v1228
        %v1284 = vadd.f32 %v1213, %v1228
        %v1285 = vadd.f32 %v1214, %v1228
        %v1286 = vadd.f32 %v1215, %v1228
        %v1287 = vadd.f32 %v1216, %v1228
        %v1288 = vadd.f32 %v1217, %v1228
        %v1289 = vadd.f32 %v1218, %v1228
        %v1290 = vadd.f32 %v1219, %v1228
        %v1291 = vadd.f32 %v1220, %v1228
        %v1292 = vadd.f32 %v1221, %v1228
        %v1293 = vadd.f32 %v1222, %v1228
        %vm1294 = vcmp.ge.f32.partialorder %v1230, 0.0
        %vm1295 = vcmp.ge.f32.partialorder %v1231, 0.0
        %vm1296 = vcmp.ge.f32.partialorder %v1232, 0.0
        %vm1297 = vcmp.ge.f32.partialorder %v1233, 0.0
        %vm1298 = vcmp.ge.f32.partialorder %v1234, 0.0
        %vm1299 = vcmp.ge.f32.partialorder %v1235, 0.0
        %vm1300 = vcmp.ge.f32.partialorder %v1236, 0.0
        %vm1301 = vcmp.ge.f32.partialorder %v1237, 0.0
        %vm1302 = vcmp.ge.f32.partialorder %v1238, 0.0
        %vm1303 = vcmp.ge.f32.partialorder %v1239, 0.0
        %vm1304 = vcmp.ge.f32.partialorder %v1240, 0.0
        %vm1305 = vcmp.ge.f32.partialorder %v1241, 0.0
        %vm1306 = vcmp.ge.f32.partialorder %v1242, 0.0
        %vm1307 = vcmp.ge.f32.partialorder %v1243, 0.0
        %vm1308 = vcmp.ge.f32.partialorder %v1244, 0.0
        %vm1309 = vcmp.ge.f32.partialorder %v1245, 0.0
        %vm1310 = vcmp.ge.f32.partialorder %v1246, 0.0
        %vm1311 = vcmp.ge.f32.partialorder %v1247, 0.0
        %vm1312 = vcmp.ge.f32.partialorder %v1248, 0.0
        %vm1313 = vcmp.ge.f32.partialorder %v1249, 0.0
        %vm1314 = vcmp.ge.f32.partialorder %v1250, 0.0
        %vm1315 = vcmp.ge.f32.partialorder %v1251, 0.0
        %vm1316 = vcmp.ge.f32.partialorder %v1252, 0.0
        %vm1317 = vcmp.ge.f32.partialorder %v1253, 0.0
        %vm1318 = vcmp.ge.f32.partialorder %v1254, 0.0
        %vm1319 = vcmp.ge.f32.partialorder %v1255, 0.0
        %vm1320 = vcmp.ge.f32.partialorder %v1256, 0.0
        %vm1321 = vcmp.ge.f32.partialorder %v1257, 0.0
        %vm1322 = vcmp.ge.f32.partialorder %v1258, 0.0
        %vm1323 = vcmp.ge.f32.partialorder %v1259, 0.0
        %vm1324 = vcmp.ge.f32.partialorder %v1260, 0.0
        %vm1325 = vcmp.ge.f32.partialorder %v1261, 0.0
        %vm1326 = vcmp.ge.f32.partialorder %v1262, 0.0
        %vm1327 = vcmp.ge.f32.partialorder %v1263, 0.0
        %vm1328 = vcmp.ge.f32.partialorder %v1264, 0.0
        %vm1329 = vcmp.ge.f32.partialorder %v1265, 0.0
        %vm1330 = vcmp.ge.f32.partialorder %v1266, 0.0
        %vm1331 = vcmp.ge.f32.partialorder %v1267, 0.0
        %vm1332 = vcmp.ge.f32.partialorder %v1268, 0.0
        %vm1333 = vcmp.ge.f32.partialorder %v1269, 0.0
        %vm1334 = vcmp.ge.f32.partialorder %v1270, 0.0
        %vm1335 = vcmp.ge.f32.partialorder %v1271, 0.0
        %vm1336 = vcmp.ge.f32.partialorder %v1272, 0.0
        %vm1337 = vcmp.ge.f32.partialorder %v1273, 0.0
        %vm1338 = vcmp.ge.f32.partialorder %v1274, 0.0
        %vm1339 = vcmp.ge.f32.partialorder %v1275, 0.0
        %vm1340 = vcmp.ge.f32.partialorder %v1276, 0.0
        %vm1341 = vcmp.ge.f32.partialorder %v1277, 0.0
        %vm1342 = vcmp.ge.f32.partialorder %v1278, 0.0
        %vm1343 = vcmp.ge.f32.partialorder %v1279, 0.0
        %vm1344 = vcmp.ge.f32.partialorder %v1280, 0.0
        %vm1345 = vcmp.ge.f32.partialorder %v1281, 0.0
        %vm1346 = vcmp.ge.f32.partialorder %v1282, 0.0
        %vm1347 = vcmp.ge.f32.partialorder %v1283, 0.0
        %vm1348 = vcmp.ge.f32.partialorder %v1284, 0.0
        %vm1349 = vcmp.ge.f32.partialorder %v1285, 0.0
        %vm1350 = vcmp.ge.f32.partialorder %v1286, 0.0
        %vm1351 = vcmp.ge.f32.partialorder %v1287, 0.0
        %vm1352 = vcmp.ge.f32.partialorder %v1288, 0.0
        %vm1353 = vcmp.ge.f32.partialorder %v1289, 0.0
        %vm1354 = vcmp.ge.f32.partialorder %v1290, 0.0
        %vm1355 = vcmp.ge.f32.partialorder %v1291, 0.0
        %vm1356 = vcmp.ge.f32.partialorder %v1292, 0.0
        %vm1357 = vcmp.ge.f32.partialorder %v1293, 0.0
        %v1358 = vmul.f32 %v1230, 0.2
        %v1359 = vmul.f32 %v1231, 0.2
        %v1360 = vmul.f32 %v1232, 0.2
        %v1361 = vmul.f32 %v1233, 0.2
        %v1362 = vmul.f32 %v1234, 0.2
        %v1363 = vmul.f32 %v1235, 0.2
        %v1364 = vmul.f32 %v1236, 0.2
        %v1365 = vmul.f32 %v1237, 0.2
        %v1366 = vmul.f32 %v1238, 0.2
        %v1367 = vmul.f32 %v1239, 0.2
        %v1368 = vmul.f32 %v1240, 0.2
        %v1369 = vmul.f32 %v1241, 0.2
        %v1370 = vmul.f32 %v1242, 0.2
        %v1371 = vmul.f32 %v1243, 0.2
        %v1372 = vmul.f32 %v1244, 0.2
        %v1373 = vmul.f32 %v1245, 0.2
        %v1374 = vmul.f32 %v1246, 0.2
        %v1375 = vmul.f32 %v1247, 0.2
        %v1376 = vmul.f32 %v1248, 0.2
        %v1377 = vmul.f32 %v1249, 0.2
        %v1378 = vmul.f32 %v1250, 0.2
        %v1379 = vmul.f32 %v1251, 0.2
        %v1380 = vmul.f32 %v1252, 0.2
        %v1381 = vmul.f32 %v1253, 0.2
        %v1382 = vmul.f32 %v1254, 0.2
        %v1383 = vmul.f32 %v1255, 0.2
        %v1384 = vmul.f32 %v1256, 0.2
        %v1385 = vmul.f32 %v1257, 0.2
        %v1386 = vmul.f32 %v1258, 0.2
        %v1387 = vmul.f32 %v1259, 0.2
        %v1388 = vmul.f32 %v1260, 0.2
        %v1389 = vmul.f32 %v1261, 0.2
        %v1390 = vmul.f32 %v1262, 0.2
        %v1391 = vmul.f32 %v1263, 0.2
        %v1392 = vmul.f32 %v1264, 0.2
        %v1393 = vmul.f32 %v1265, 0.2
        %v1394 = vmul.f32 %v1266, 0.2
        %v1395 = vmul.f32 %v1267, 0.2
        %v1396 = vmul.f32 %v1268, 0.2
        %v1397 = vmul.f32 %v1269, 0.2
        %v1398 = vmul.f32 %v1270, 0.2
        %v1399 = vmul.f32 %v1271, 0.2
        %v1400 = vmul.f32 %v1272, 0.2
        %v1401 = vmul.f32 %v1273, 0.2
        %v1402 = vmul.f32 %v1274, 0.2
        %v1403 = vmul.f32 %v1275, 0.2
        %v1404 = vmul.f32 %v1276, 0.2
        %v1405 = vmul.f32 %v1277, 0.2
        %v1406 = vmul.f32 %v1278, 0.2
        %v1407 = vmul.f32 %v1279, 0.2
        %v1408 = vmul.f32 %v1280, 0.2
        %v1409 = vmul.f32 %v1281, 0.2
        %v1410 = vmul.f32 %v1282, 0.2
        %v1411 = vmul.f32 %v1283, 0.2
        %v1412 = vmul.f32 %v1284, 0.2
        %v1413 = vmul.f32 %v1285, 0.2
        %v1414 = vmul.f32 %v1286, 0.2
        %v1415 = vmul.f32 %v1287, 0.2
        %v1416 = vmul.f32 %v1288, 0.2
        %v1417 = vmul.f32 %v1289, 0.2
        %v1418 = vmul.f32 %v1290, 0.2
        %v1419 = vmul.f32 %v1291, 0.2
        %v1420 = vmul.f32 %v1292, 0.2
        %v1421 = vmul.f32 %v1293, 0.2
        %v1422 = vsel %vm1294, %v1230, %v1358
        %v1423 = vsel %vm1295, %v1231, %v1359
        %v1424 = vsel %vm1296, %v1232, %v1360
        %v1425 = vsel %vm1297, %v1233, %v1361
        %v1426 = vsel %vm1298, %v1234, %v1362
        %v1427 = vsel %vm1299, %v1235, %v1363
        %v1428 = vsel %vm1300, %v1236, %v1364
        %v1429 = vsel %vm1301, %v1237, %v1365
        %v1430 = vsel %vm1302, %v1238, %v1366
        %v1431 = vsel %vm1303, %v1239, %v1367
        %v1432 = vsel %vm1304, %v1240, %v1368
        %v1433 = vsel %vm1305, %v1241, %v1369
        %v1434 = vsel %vm1306, %v1242, %v1370
        %v1435 = vsel %vm1307, %v1243, %v1371
        %v1436 = vsel %vm1308, %v1244, %v1372
        %v1437 = vsel %vm1309, %v1245, %v1373
        %v1438 = vsel %vm1310, %v1246, %v1374
        %v1439 = vsel %vm1311, %v1247, %v1375
        %v1440 = vsel %vm1312, %v1248, %v1376
        %v1441 = vsel %vm1313, %v1249, %v1377
        %v1442 = vsel %vm1314, %v1250, %v1378
        %v1443 = vsel %vm1315, %v1251, %v1379
        %v1444 = vsel %vm1316, %v1252, %v1380
        %v1445 = vsel %vm1317, %v1253, %v1381
        %v1446 = vsel %vm1318, %v1254, %v1382
        %v1447 = vsel %vm1319, %v1255, %v1383
        %v1448 = vsel %vm1320, %v1256, %v1384
        %v1449 = vsel %vm1321, %v1257, %v1385
        %v1450 = vsel %vm1322, %v1258, %v1386
        %v1451 = vsel %vm1323, %v1259, %v1387
        %v1452 = vsel %vm1324, %v1260, %v1388
        %v1453 = vsel %vm1325, %v1261, %v1389
        %v1454 = vsel %vm1326, %v1262, %v1390
        %v1455 = vsel %vm1327, %v1263, %v1391
        %v1456 = vsel %vm1328, %v1264, %v1392
        %v1457 = vsel %vm1329, %v1265, %v1393
        %v1458 = vsel %vm1330, %v1266, %v1394
        %v1459 = vsel %vm1331, %v1267, %v1395
        %v1460 = vsel %vm1332, %v1268, %v1396
        %v1461 = vsel %vm1333, %v1269, %v1397
        %v1462 = vsel %vm1334, %v1270, %v1398
        %v1463 = vsel %vm1335, %v1271, %v1399
        %v1464 = vsel %vm1336, %v1272, %v1400
        %v1465 = vsel %vm1337, %v1273, %v1401
        %v1466 = vsel %vm1338, %v1274, %v1402
        %v1467 = vsel %vm1339, %v1275, %v1403
        %v1468 = vsel %vm1340, %v1276, %v1404
        %v1469 = vsel %vm1341, %v1277, %v1405
        %v1470 = vsel %vm1342, %v1278, %v1406
        %v1471 = vsel %vm1343, %v1279, %v1407
        %v1472 = vsel %vm1344, %v1280, %v1408
        %v1473 = vsel %vm1345, %v1281, %v1409
        %v1474 = vsel %vm1346, %v1282, %v1410
        %v1475 = vsel %vm1347, %v1283, %v1411
        %v1476 = vsel %vm1348, %v1284, %v1412
        %v1477 = vsel %vm1349, %v1285, %v1413
        %v1478 = vsel %vm1350, %v1286, %v1414
        %v1479 = vsel %vm1351, %v1287, %v1415
        %v1480 = vsel %vm1352, %v1288, %v1416
        %v1481 = vsel %vm1353, %v1289, %v1417
        %v1482 = vsel %vm1354, %v1290, %v1418
        %v1483 = vsel %vm1355, %v1291, %v1419
        %v1484 = vsel %vm1356, %v1292, %v1420
        %v1485 = vsel %vm1357, %v1293, %v1421
        %v1486 = vpack.c.bf16 %v1423, %v1422
        %v1487 = vpack.c.bf16 %v1425, %v1424
        %v1488 = vpack.c.bf16 %v1427, %v1426
        %v1489 = vpack.c.bf16 %v1429, %v1428
        %v1490 = vpack.c.bf16 %v1431, %v1430
        %v1491 = vpack.c.bf16 %v1433, %v1432
        %v1492 = vpack.c.bf16 %v1435, %v1434
        %v1493 = vpack.c.bf16 %v1437, %v1436
        %v1494 = vpack.c.bf16 %v1439, %v1438
        %v1495 = vpack.c.bf16 %v1441, %v1440
        %v1496 = vpack.c.bf16 %v1443, %v1442
        %v1497 = vpack.c.bf16 %v1445, %v1444
        %v1498 = vpack.c.bf16 %v1447, %v1446
        %v1499 = vpack.c.bf16 %v1449, %v1448
        %v1500 = vpack.c.bf16 %v1451, %v1450
        %v1501 = vpack.c.bf16 %v1453, %v1452
        %v1502 = vpack.c.bf16 %v1455, %v1454
        %v1503 = vpack.c.bf16 %v1457, %v1456
        %v1504 = vpack.c.bf16 %v1459, %v1458
        %v1505 = vpack.c.bf16 %v1461, %v1460
        %v1506 = vpack.c.bf16 %v1463, %v1462
        %v1507 = vpack.c.bf16 %v1465, %v1464
        %v1508 = vpack.c.bf16 %v1467, %v1466
        %v1509 = vpack.c.bf16 %v1469, %v1468
        %v1510 = vpack.c.bf16 %v1471, %v1470
        %v1511 = vpack.c.bf16 %v1473, %v1472
        %v1512 = vpack.c.bf16 %v1475, %v1474
        %v1513 = vpack.c.bf16 %v1477, %v1476
        %v1514 = vpack.c.bf16 %v1479, %v1478
        %v1515 = vpack.c.bf16 %v1481, %v1480
        %v1516 = vpack.c.bf16 %v1483, %v1482
        %v1517 = vpack.c.bf16 %v1485, %v1484
        %v1550 = vunpack.c.l.b16 %v1486
        %v1551 = vunpack.c.h.b16 %v1486
        %v1552 = vunpack.c.l.b16 %v1487
        %v1553 = vunpack.c.h.b16 %v1487
        %v1554 = vunpack.c.l.b16 %v1488
        %v1555 = vunpack.c.h.b16 %v1488
        %v1556 = vunpack.c.l.b16 %v1489
        %v1557 = vunpack.c.h.b16 %v1489
        %v1558 = vunpack.c.l.b16 %v1490
        %v1559 = vunpack.c.h.b16 %v1490
        %v1560 = vunpack.c.l.b16 %v1491
        %v1561 = vunpack.c.h.b16 %v1491
        %v1562 = vunpack.c.l.b16 %v1492
        %v1563 = vunpack.c.h.b16 %v1492
        %v1564 = vunpack.c.l.b16 %v1493
        %v1565 = vunpack.c.h.b16 %v1493
        %v1566 = vunpack.c.l.b16 %v1494
        %v1567 = vunpack.c.h.b16 %v1494
        %v1568 = vunpack.c.l.b16 %v1495
        %v1569 = vunpack.c.h.b16 %v1495
        %v1570 = vunpack.c.l.b16 %v1496
        %v1571 = vunpack.c.h.b16 %v1496
        %v1572 = vunpack.c.l.b16 %v1497
        %v1573 = vunpack.c.h.b16 %v1497
        %v1574 = vunpack.c.l.b16 %v1498
        %v1575 = vunpack.c.h.b16 %v1498
        %v1576 = vunpack.c.l.b16 %v1499
        %v1577 = vunpack.c.h.b16 %v1499
        %v1578 = vunpack.c.l.b16 %v1500
        %v1579 = vunpack.c.h.b16 %v1500
        %v1580 = vunpack.c.l.b16 %v1501
        %v1581 = vunpack.c.h.b16 %v1501
        %v1582 = vunpack.c.l.b16 %v1502
        %v1583 = vunpack.c.h.b16 %v1502
        %v1584 = vunpack.c.l.b16 %v1503
        %v1585 = vunpack.c.h.b16 %v1503
        %v1586 = vunpack.c.l.b16 %v1504
        %v1587 = vunpack.c.h.b16 %v1504
        %v1588 = vunpack.c.l.b16 %v1505
        %v1589 = vunpack.c.h.b16 %v1505
        %v1590 = vunpack.c.l.b16 %v1506
        %v1591 = vunpack.c.h.b16 %v1506
        %v1592 = vunpack.c.l.b16 %v1507
        %v1593 = vunpack.c.h.b16 %v1507
        %v1594 = vunpack.c.l.b16 %v1508
        %v1595 = vunpack.c.h.b16 %v1508
        %v1596 = vunpack.c.l.b16 %v1509
        %v1597 = vunpack.c.h.b16 %v1509
        %v1598 = vunpack.c.l.b16 %v1510
        %v1599 = vunpack.c.h.b16 %v1510
        %v1600 = vunpack.c.l.b16 %v1511
        %v1601 = vunpack.c.h.b16 %v1511
        %v1602 = vunpack.c.l.b16 %v1512
        %v1603 = vunpack.c.h.b16 %v1512
        %v1604 = vunpack.c.l.b16 %v1513
        %v1605 = vunpack.c.h.b16 %v1513
        %v1606 = vunpack.c.l.b16 %v1514
        %v1607 = vunpack.c.h.b16 %v1514
        %v1608 = vunpack.c.l.b16 %v1515
        %v1609 = vunpack.c.h.b16 %v1515
        %v1610 = vunpack.c.l.b16 %v1516
        %v1611 = vunpack.c.h.b16 %v1516
        %v1612 = vunpack.c.l.b16 %v1517
        %v1613 = vunpack.c.h.b16 %v1517
        %v1614 = vpack.c.b16 %v1550, %v1550
        %v1615 = vpack.c.b16 %v1551, %v1551
        %v1616 = vpack.c.b16 %v1552, %v1552
        %v1617 = vpack.c.b16 %v1553, %v1553
        %v1618 = vpack.c.b16 %v1554, %v1554
        %v1619 = vpack.c.b16 %v1555, %v1555
        %v1620 = vpack.c.b16 %v1556, %v1556
        %v1621 = vpack.c.b16 %v1557, %v1557
        %v1622 = vpack.c.b16 %v1558, %v1558
        %v1623 = vpack.c.b16 %v1559, %v1559
        %v1624 = vpack.c.b16 %v1560, %v1560
        %v1625 = vpack.c.b16 %v1561, %v1561
        %v1626 = vpack.c.b16 %v1562, %v1562
        %v1627 = vpack.c.b16 %v1563, %v1563
        %v1628 = vpack.c.b16 %v1564, %v1564
        %v1629 = vpack.c.b16 %v1565, %v1565
        %v1630 = vpack.c.b16 %v1566, %v1566
        %v1631 = vpack.c.b16 %v1567, %v1567
        %v1632 = vpack.c.b16 %v1568, %v1568
        %v1633 = vpack.c.b16 %v1569, %v1569
        %v1634 = vpack.c.b16 %v1570, %v1570
        %v1635 = vpack.c.b16 %v1571, %v1571
        %v1636 = vpack.c.b16 %v1572, %v1572
        %v1637 = vpack.c.b16 %v1573, %v1573
        %v1638 = vpack.c.b16 %v1574, %v1574
        %v1639 = vpack.c.b16 %v1575, %v1575
        %v1640 = vpack.c.b16 %v1576, %v1576
        %v1641 = vpack.c.b16 %v1577, %v1577
        %v1642 = vpack.c.b16 %v1578, %v1578
        %v1643 = vpack.c.b16 %v1579, %v1579
        %v1644 = vpack.c.b16 %v1580, %v1580
        %v1645 = vpack.c.b16 %v1581, %v1581
        %v1646 = vpack.c.b16 %v1582, %v1582
        %v1647 = vpack.c.b16 %v1583, %v1583
        %v1648 = vpack.c.b16 %v1584, %v1584
        %v1649 = vpack.c.b16 %v1585, %v1585
        %v1650 = vpack.c.b16 %v1586, %v1586
        %v1651 = vpack.c.b16 %v1587, %v1587
        %v1652 = vpack.c.b16 %v1588, %v1588
        %v1653 = vpack.c.b16 %v1589, %v1589
        %v1654 = vpack.c.b16 %v1590, %v1590
        %v1655 = vpack.c.b16 %v1591, %v1591
        %v1656 = vpack.c.b16 %v1592, %v1592
        %v1657 = vpack.c.b16 %v1593, %v1593
        %v1658 = vpack.c.b16 %v1594, %v1594
        %v1659 = vpack.c.b16 %v1595, %v1595
        %v1660 = vpack.c.b16 %v1596, %v1596
        %v1661 = vpack.c.b16 %v1597, %v1597
        %v1662 = vpack.c.b16 %v1598, %v1598
        %v1663 = vpack.c.b16 %v1599, %v1599
        %v1664 = vpack.c.b16 %v1600, %v1600
        %v1665 = vpack.c.b16 %v1601, %v1601
        %v1666 = vpack.c.b16 %v1602, %v1602
        %v1667 = vpack.c.b16 %v1603, %v1603
        %v1668 = vpack.c.b16 %v1604, %v1604
        %v1669 = vpack.c.b16 %v1605, %v1605
        %v1670 = vpack.c.b16 %v1606, %v1606
        %v1671 = vpack.c.b16 %v1607, %v1607
        %v1672 = vpack.c.b16 %v1608, %v1608
        %v1673 = vpack.c.b16 %v1609, %v1609
        %v1674 = vpack.c.b16 %v1610, %v1610
        %v1675 = vpack.c.b16 %v1611, %v1611
        %v1676 = vpack.c.b16 %v1612, %v1612
        %v1677 = vpack.c.b16 %v1613, %v1613
        %vm1742 = vcmask 60416
        %1743 = vst.msk [vmem:[%s257] sm:$0xf] %vm1742, %v1614
        %1744 = vst.msk [vmem:[%s257 + $0x4] sm:$0xf] %vm1742, %v1615
        %1745 = vst.msk [vmem:[%s257 + $0x8] sm:$0xf] %vm1742, %v1616
        %1746 = vst.msk [vmem:[%s257 + $0xc] sm:$0xf] %vm1742, %v1617
        %1747 = vst.msk [vmem:[%s257 + $0x10] sm:$0xf] %vm1742, %v1618
        %1748 = vst.msk [vmem:[%s257 + $0x14] sm:$0xf] %vm1742, %v1619
        %1749 = vst.msk [vmem:[%s257 + $0x18] sm:$0xf] %vm1742, %v1620
        %1750 = vst.msk [vmem:[%s257 + $0x1c] sm:$0xf] %vm1742, %v1621
        %1751 = vst.msk [vmem:[%s257 + $0x20] sm:$0xf] %vm1742, %v1622
        %1752 = vst.msk [vmem:[%s257 + $0x24] sm:$0xf] %vm1742, %v1623
        %1753 = vst.msk [vmem:[%s257 + $0x28] sm:$0xf] %vm1742, %v1624
        %1754 = vst.msk [vmem:[%s257 + $0x2c] sm:$0xf] %vm1742, %v1625
        %1755 = vst.msk [vmem:[%s257 + $0x30] sm:$0xf] %vm1742, %v1626
        %1756 = vst.msk [vmem:[%s257 + $0x34] sm:$0xf] %vm1742, %v1627
        %1757 = vst.msk [vmem:[%s257 + $0x38] sm:$0xf] %vm1742, %v1628
        %1758 = vst.msk [vmem:[%s257 + $0x3c] sm:$0xf] %vm1742, %v1629
        %1759 = vst.msk [vmem:[%s257 + $0x40] sm:$0xf] %vm1742, %v1630
        %1760 = vst.msk [vmem:[%s257 + $0x44] sm:$0xf] %vm1742, %v1631
        %1761 = vst.msk [vmem:[%s257 + $0x48] sm:$0xf] %vm1742, %v1632
        %1762 = vst.msk [vmem:[%s257 + $0x4c] sm:$0xf] %vm1742, %v1633
        %1763 = vst.msk [vmem:[%s257 + $0x50] sm:$0xf] %vm1742, %v1634
        %1764 = vst.msk [vmem:[%s257 + $0x54] sm:$0xf] %vm1742, %v1635
        %1765 = vst.msk [vmem:[%s257 + $0x58] sm:$0xf] %vm1742, %v1636
        %1766 = vst.msk [vmem:[%s257 + $0x5c] sm:$0xf] %vm1742, %v1637
        %1767 = vst.msk [vmem:[%s257 + $0x60] sm:$0xf] %vm1742, %v1638
        %1768 = vst.msk [vmem:[%s257 + $0x64] sm:$0xf] %vm1742, %v1639
        %1769 = vst.msk [vmem:[%s257 + $0x68] sm:$0xf] %vm1742, %v1640
        %1770 = vst.msk [vmem:[%s257 + $0x6c] sm:$0xf] %vm1742, %v1641
        %1771 = vst.msk [vmem:[%s257 + $0x70] sm:$0xf] %vm1742, %v1642
        %1772 = vst.msk [vmem:[%s257 + $0x74] sm:$0xf] %vm1742, %v1643
        %1773 = vst.msk [vmem:[%s257 + $0x78] sm:$0xf] %vm1742, %v1644
        %1774 = vst.msk [vmem:[%s257 + $0x7c] sm:$0xf] %vm1742, %v1645
        %1775 = vst.msk [vmem:[%s257 + $0x80] sm:$0xf] %vm1742, %v1646
        %1776 = vst.msk [vmem:[%s257 + $0x84] sm:$0xf] %vm1742, %v1647
        %1777 = vst.msk [vmem:[%s257 + $0x88] sm:$0xf] %vm1742, %v1648
        %1778 = vst.msk [vmem:[%s257 + $0x8c] sm:$0xf] %vm1742, %v1649
        %1779 = vst.msk [vmem:[%s257 + $0x90] sm:$0xf] %vm1742, %v1650
        %1780 = vst.msk [vmem:[%s257 + $0x94] sm:$0xf] %vm1742, %v1651
        %1781 = vst.msk [vmem:[%s257 + $0x98] sm:$0xf] %vm1742, %v1652
        %1782 = vst.msk [vmem:[%s257 + $0x9c] sm:$0xf] %vm1742, %v1653
        %1783 = vst.msk [vmem:[%s257 + $0xa0] sm:$0xf] %vm1742, %v1654
        %1784 = vst.msk [vmem:[%s257 + $0xa4] sm:$0xf] %vm1742, %v1655
        %1785 = vst.msk [vmem:[%s257 + $0xa8] sm:$0xf] %vm1742, %v1656
        %1786 = vst.msk [vmem:[%s257 + $0xac] sm:$0xf] %vm1742, %v1657
        %1787 = vst.msk [vmem:[%s257 + $0xb0] sm:$0xf] %vm1742, %v1658
        %1788 = vst.msk [vmem:[%s257 + $0xb4] sm:$0xf] %vm1742, %v1659
        %1789 = vst.msk [vmem:[%s257 + $0xb8] sm:$0xf] %vm1742, %v1660
        %1790 = vst.msk [vmem:[%s257 + $0xbc] sm:$0xf] %vm1742, %v1661
        %1791 = vst.msk [vmem:[%s257 + $0xc0] sm:$0xf] %vm1742, %v1662
        %1792 = vst.msk [vmem:[%s257 + $0xc4] sm:$0xf] %vm1742, %v1663
        %1793 = vst.msk [vmem:[%s257 + $0xc8] sm:$0xf] %vm1742, %v1664
        %1794 = vst.msk [vmem:[%s257 + $0xcc] sm:$0xf] %vm1742, %v1665
        %1795 = vst.msk [vmem:[%s257 + $0xd0] sm:$0xf] %vm1742, %v1666
        %1796 = vst.msk [vmem:[%s257 + $0xd4] sm:$0xf] %vm1742, %v1667
        %1797 = vst.msk [vmem:[%s257 + $0xd8] sm:$0xf] %vm1742, %v1668
        %1798 = vst.msk [vmem:[%s257 + $0xdc] sm:$0xf] %vm1742, %v1669
        %1799 = vst.msk [vmem:[%s257 + $0xe0] sm:$0xf] %vm1742, %v1670
        %1800 = vst.msk [vmem:[%s257 + $0xe4] sm:$0xf] %vm1742, %v1671
        %1801 = vst.msk [vmem:[%s257 + $0xe8] sm:$0xf] %vm1742, %v1672
        %1802 = vst.msk [vmem:[%s257 + $0xec] sm:$0xf] %vm1742, %v1673
        %1803 = vst.msk [vmem:[%s257 + $0xf0] sm:$0xf] %vm1742, %v1674
        %1804 = vst.msk [vmem:[%s257 + $0xf4] sm:$0xf] %vm1742, %v1675
        %1805 = vst.msk [vmem:[%s257 + $0xf8] sm:$0xf] %vm1742, %v1676
        %1806 = vst.msk [vmem:[%s257 + $0xfc] sm:$0xf] %vm1742, %v1677
      $region40: #{discriminator_forward.4} parent=31 // pred_fallthru
        _
      %s1807 = smul.u32 64, %s19
      %p1808 = scmp.lt.s32.totalorder %s1807, 255
      %s1809 = scalar_select %p1808, %s1807, 255
      %p1810 = scmp.lt.s32.totalorder %s20, 0
      %s1811 = scalar_select %p1810, %s20, 0
      %s1812 = sadd.s32 %s1811, %s1809
      %s1813 = smul.addr %s1812, 4
      %s1814 = scalar_lea.vmem %s3, %s1813
      // Predicated region
      $region41: #{discriminator_forward.4} parent=31 // pred_check
        %p1815 = pneg %p135
      $region42: #{discriminator_forward.4} parent=31 // pred_check_branch
        %1817 = sbr.rel (%p1815) target = $region44
      $region43: #{discriminator_forward.4} parent=31 // pred_region
        %s1818 = smul.u32 64, %s19
      $region44: #{discriminator_forward.4} parent=31 // pred_fallthru
        _
    $region32: #{discriminator_forward.4} parent=5 // pred_fallthru
      _
    %p1819 = scmp.le.s32.totalorder 2, %s9
    // Predicated region
    $region45: #{discriminator_forward.4} parent=5 // pred_check
      %p1820 = pneg %p1819
    $region46: #{discriminator_forward.4} parent=5 // pred_check_branch
      %1822 = sbr.rel (%p1820) target = $region48
    $region47: #{discriminator_forward.4} parent=5 // pred_region
      %s1823 = ssub.s32 %s9, 2
      // Predicated region
      $region49: #{discriminator_forward.4} parent=47 // pred_check
        %p1824 = pneg %p141
      $region50: #{discriminator_forward.4} parent=47 // pred_check_branch
        %1826 = sbr.rel (%p1824) target = $region52
      $region51: #{discriminator_forward.4} parent=47 // pred_region
        %s1827 = smul.u32 64, %s22
        %p1828 = scmp.lt.s32.totalorder %s1827, 255
        %s1829 = scalar_select %p1828, %s1827, 255
        %p1830 = scmp.lt.s32.totalorder %s23, 0
        %s1831 = scalar_select %p1830, %s23, 0
        %s1832 = sadd.s32 %s1831, %s1829
        %s1833 = smul.addr %s1832, 4
        %s1834 = scalar_lea.vmem %s3, %s1833
      $region52: #{discriminator_forward.4} parent=47 // pred_fallthru
        _
    $region48: #{discriminator_forward.4} parent=5 // pred_fallthru
      _
  $region6: #{discriminator_forward.4} parent=0 // loop_footer
    %s13 = sadd.s32 1, %s9
  $region7: #{discriminator_forward.4} parent=0 // loop_footer_branch
    %8 = sbr.rel target = $region3
  $region8: #{discriminator_forward.4} parent=0 // loop_exit
    _

// kernel: discriminator_forward.5
$region0: #{discriminator_forward.5}
  #allocation0 [shape = 'u32[]', space=smem, size = 0x4, offset = 0x4, fixed_abs, tag = 'smem constant byte address 0x4 - core index']
  #allocation1 [shape = 'u32[144,128]{1,0:T(1,128)}', space=vmem, size = 0x12000, scoped, tag = 'internal scratch']
  #allocation2 [shape = 'f32[512,16]{1,0:T(8,128)}', space=vmem, size = 0x40000, scoped, tag = 'scratch operand']
  %s0 = inlined_call_operand.vmem [shape: bf16[512,128], index: 0, kind: input, shape index: {}]
  %s1 = inlined_call_operand.vmem [shape: bf16[128,16], index: 1, kind: input, shape index: {}]
  %s2 = inlined_call_operand.vmem [shape: f32[1,16], index: 2, kind: input, shape index: {}]
  %s3 = inlined_call_operand.vmem [shape: bf16[512,16], index: 3, kind: output, shape index: {0}]
  %s4 = inlined_call_operand.vmem [shape: f32[1,2,16], index: 4, kind: output, shape index: {1}]
  %5 = xla_tuple %s3, %s4
  %s6 = sld [smem:[#allocation0]]
  $region38: #{discriminator_forward.5} parent=0
    _
  %s8 = ssub.s32 1, %s6
  %s9 = scalar_select 0, %s8, %s6
  // Predicated region
  $region2: #{discriminator_forward.5} parent=0 // pred_check
    _
  $region3: #{discriminator_forward.5} parent=0 // pred_check_branch
    %11 = sbr.rel (0) target = $region5
  $region4: #{discriminator_forward.5} parent=0 // pred_region
    _
  $region5: #{discriminator_forward.5} parent=0 // pred_fallthru
    _
  // Predicated region
  $region6: #{discriminator_forward.5} parent=0 // pred_check
    _
  $region7: #{discriminator_forward.5} parent=0 // pred_check_branch
    %13 = sbr.rel (0) target = $region9
  $region8: #{discriminator_forward.5} parent=0 // pred_region
    _
  $region9: #{discriminator_forward.5} parent=0 // pred_fallthru
    _
  // Predicated region
  $region10: #{discriminator_forward.5} parent=0 // pred_check
    _
  $region11: #{discriminator_forward.5} parent=0 // pred_check_branch
    %15 = sbr.rel (0) target = $region13
  $region12: #{discriminator_forward.5} parent=0 // pred_region
    _
  $region13: #{discriminator_forward.5} parent=0 // pred_fallthru
    _
  %p17 = scmp.eq.s32.totalorder 0, 0
  // Predicated region
  $region14: #{discriminator_forward.5} parent=0 // pred_check
    %p18 = pneg %p17
  $region15: #{discriminator_forward.5} parent=0 // pred_check_branch
    %20 = sbr.rel (%p18) target = $region17
  $region16: #{discriminator_forward.5} parent=0 // pred_region
    %vm21 = vcmask 130048
    %22 = vst.msk [vmem:[#allocation2] sm:$0xff] %vm21, 0.0
    %23 = vst.msk [vmem:[#allocation2 + $0x8] sm:$0xff] %vm21, 0.0
    %24 = vst.msk [vmem:[#allocation2 + $0x10] sm:$0xff] %vm21, 0.0
    %25 = vst.msk [vmem:[#allocation2 + $0x18] sm:$0xff] %vm21, 0.0
    %26 = vst.msk [vmem:[#allocation2 + $0x20] sm:$0xff] %vm21, 0.0
    %27 = vst.msk [vmem:[#allocation2 + $0x28] sm:$0xff] %vm21, 0.0
    %28 = vst.msk [vmem:[#allocation2 + $0x30] sm:$0xff] %vm21, 0.0
    %29 = vst.msk [vmem:[#allocation2 + $0x38] sm:$0xff] %vm21, 0.0
    %30 = vst.msk [vmem:[#allocation2 + $0x40] sm:$0xff] %vm21, 0.0
    %31 = vst.msk [vmem:[#allocation2 + $0x48] sm:$0xff] %vm21, 0.0
    %32 = vst.msk [vmem:[#allocation2 + $0x50] sm:$0xff] %vm21, 0.0
    %33 = vst.msk [vmem:[#allocation2 + $0x58] sm:$0xff] %vm21, 0.0
    %34 = vst.msk [vmem:[#allocation2 + $0x60] sm:$0xff] %vm21, 0.0
    %35 = vst.msk [vmem:[#allocation2 + $0x68] sm:$0xff] %vm21, 0.0
    %36 = vst.msk [vmem:[#allocation2 + $0x70] sm:$0xff] %vm21, 0.0
    %37 = vst.msk [vmem:[#allocation2 + $0x78] sm:$0xff] %vm21, 0.0
    %38 = vst.msk [vmem:[#allocation2 + $0x80] sm:$0xff] %vm21, 0.0
    %39 = vst.msk [vmem:[#allocation2 + $0x88] sm:$0xff] %vm21, 0.0
    %40 = vst.msk [vmem:[#allocation2 + $0x90] sm:$0xff] %vm21, 0.0
    %41 = vst.msk [vmem:[#allocation2 + $0x98] sm:$0xff] %vm21, 0.0
    %42 = vst.msk [vmem:[#allocation2 + $0xa0] sm:$0xff] %vm21, 0.0
    %43 = vst.msk [vmem:[#allocation2 + $0xa8] sm:$0xff] %vm21, 0.0
    %44 = vst.msk [vmem:[#allocation2 + $0xb0] sm:$0xff] %vm21, 0.0
    %45 = vst.msk [vmem:[#allocation2 + $0xb8] sm:$0xff] %vm21, 0.0
    %46 = vst.msk [vmem:[#allocation2 + $0xc0] sm:$0xff] %vm21, 0.0
    %47 = vst.msk [vmem:[#allocation2 + $0xc8] sm:$0xff] %vm21, 0.0
    %48 = vst.msk [vmem:[#allocation2 + $0xd0] sm:$0xff] %vm21, 0.0
    %49 = vst.msk [vmem:[#allocation2 + $0xd8] sm:$0xff] %vm21, 0.0
    %50 = vst.msk [vmem:[#allocation2 + $0xe0] sm:$0xff] %vm21, 0.0
    %51 = vst.msk [vmem:[#allocation2 + $0xe8] sm:$0xff] %vm21, 0.0
    %52 = vst.msk [vmem:[#allocation2 + $0xf0] sm:$0xff] %vm21, 0.0
    %53 = vst.msk [vmem:[#allocation2 + $0xf8] sm:$0xff] %vm21, 0.0
    %54 = vst.msk [vmem:[#allocation2 + $0x100] sm:$0xff] %vm21, 0.0
    %55 = vst.msk [vmem:[#allocation2 + $0x108] sm:$0xff] %vm21, 0.0
    %56 = vst.msk [vmem:[#allocation2 + $0x110] sm:$0xff] %vm21, 0.0
    %57 = vst.msk [vmem:[#allocation2 + $0x118] sm:$0xff] %vm21, 0.0
    %58 = vst.msk [vmem:[#allocation2 + $0x120] sm:$0xff] %vm21, 0.0
    %59 = vst.msk [vmem:[#allocation2 + $0x128] sm:$0xff] %vm21, 0.0
    %60 = vst.msk [vmem:[#allocation2 + $0x130] sm:$0xff] %vm21, 0.0
    %61 = vst.msk [vmem:[#allocation2 + $0x138] sm:$0xff] %vm21, 0.0
    %62 = vst.msk [vmem:[#allocation2 + $0x140] sm:$0xff] %vm21, 0.0
    %63 = vst.msk [vmem:[#allocation2 + $0x148] sm:$0xff] %vm21, 0.0
    %64 = vst.msk [vmem:[#allocation2 + $0x150] sm:$0xff] %vm21, 0.0
    %65 = vst.msk [vmem:[#allocation2 + $0x158] sm:$0xff] %vm21, 0.0
    %66 = vst.msk [vmem:[#allocation2 + $0x160] sm:$0xff] %vm21, 0.0
    %67 = vst.msk [vmem:[#allocation2 + $0x168] sm:$0xff] %vm21, 0.0
    %68 = vst.msk [vmem:[#allocation2 + $0x170] sm:$0xff] %vm21, 0.0
    %69 = vst.msk [vmem:[#allocation2 + $0x178] sm:$0xff] %vm21, 0.0
    %70 = vst.msk [vmem:[#allocation2 + $0x180] sm:$0xff] %vm21, 0.0
    %71 = vst.msk [vmem:[#allocation2 + $0x188] sm:$0xff] %vm21, 0.0
    %72 = vst.msk [vmem:[#allocation2 + $0x190] sm:$0xff] %vm21, 0.0
    %73 = vst.msk [vmem:[#allocation2 + $0x198] sm:$0xff] %vm21, 0.0
    %74 = vst.msk [vmem:[#allocation2 + $0x1a0] sm:$0xff] %vm21, 0.0
    %75 = vst.msk [vmem:[#allocation2 + $0x1a8] sm:$0xff] %vm21, 0.0
    %76 = vst.msk [vmem:[#allocation2 + $0x1b0] sm:$0xff] %vm21, 0.0
    %77 = vst.msk [vmem:[#allocation2 + $0x1b8] sm:$0xff] %vm21, 0.0
    %78 = vst.msk [vmem:[#allocation2 + $0x1c0] sm:$0xff] %vm21, 0.0
    %79 = vst.msk [vmem:[#allocation2 + $0x1c8] sm:$0xff] %vm21, 0.0
    %80 = vst.msk [vmem:[#allocation2 + $0x1d0] sm:$0xff] %vm21, 0.0
    %81 = vst.msk [vmem:[#allocation2 + $0x1d8] sm:$0xff] %vm21, 0.0
    %82 = vst.msk [vmem:[#allocation2 + $0x1e0] sm:$0xff] %vm21, 0.0
    %83 = vst.msk [vmem:[#allocation2 + $0x1e8] sm:$0xff] %vm21, 0.0
    %84 = vst.msk [vmem:[#allocation2 + $0x1f0] sm:$0xff] %vm21, 0.0
    %85 = vst.msk [vmem:[#allocation2 + $0x1f8] sm:$0xff] %vm21, 0.0
  $region17: #{discriminator_forward.5} parent=0 // pred_fallthru
    _
  %v86 = vld [vmem:[#allocation2] sm:$0xff]
  %v87 = vld [vmem:[#allocation2 + $0x8] sm:$0xff]
  %v88 = vld [vmem:[#allocation2 + $0x10] sm:$0xff]
  %v89 = vld [vmem:[#allocation2 + $0x18] sm:$0xff]
  %v90 = vld [vmem:[#allocation2 + $0x20] sm:$0xff]
  %v91 = vld [vmem:[#allocation2 + $0x28] sm:$0xff]
  %v92 = vld [vmem:[#allocation2 + $0x30] sm:$0xff]
  %v93 = vld [vmem:[#allocation2 + $0x38] sm:$0xff]
  %v94 = vld [vmem:[#allocation2 + $0x40] sm:$0xff]
  %v95 = vld [vmem:[#allocation2 + $0x48] sm:$0xff]
  %v96 = vld [vmem:[#allocation2 + $0x50] sm:$0xff]
  %v97 = vld [vmem:[#allocation2 + $0x58] sm:$0xff]
  %v98 = vld [vmem:[#allocation2 + $0x60] sm:$0xff]
  %v99 = vld [vmem:[#allocation2 + $0x68] sm:$0xff]
  %v100 = vld [vmem:[#allocation2 + $0x70] sm:$0xff]
  %v101 = vld [vmem:[#allocation2 + $0x78] sm:$0xff]
  %v102 = vld [vmem:[#allocation2 + $0x80] sm:$0xff]
  %v103 = vld [vmem:[#allocation2 + $0x88] sm:$0xff]
  %v104 = vld [vmem:[#allocation2 + $0x90] sm:$0xff]
  %v105 = vld [vmem:[#allocation2 + $0x98] sm:$0xff]
  %v106 = vld [vmem:[#allocation2 + $0xa0] sm:$0xff]
  %v107 = vld [vmem:[#allocation2 + $0xa8] sm:$0xff]
  %v108 = vld [vmem:[#allocation2 + $0xb0] sm:$0xff]
  %v109 = vld [vmem:[#allocation2 + $0xb8] sm:$0xff]
  %v110 = vld [vmem:[#allocation2 + $0xc0] sm:$0xff]
  %v111 = vld [vmem:[#allocation2 + $0xc8] sm:$0xff]
  %v112 = vld [vmem:[#allocation2 + $0xd0] sm:$0xff]
  %v113 = vld [vmem:[#allocation2 + $0xd8] sm:$0xff]
  %v114 = vld [vmem:[#allocation2 + $0xe0] sm:$0xff]
  %v115 = vld [vmem:[#allocation2 + $0xe8] sm:$0xff]
  %v116 = vld [vmem:[#allocation2 + $0xf0] sm:$0xff]
  %v117 = vld [vmem:[#allocation2 + $0xf8] sm:$0xff]
  %v118 = vld [vmem:[#allocation2 + $0x100] sm:$0xff]
  %v119 = vld [vmem:[#allocation2 + $0x108] sm:$0xff]
  %v120 = vld [vmem:[#allocation2 + $0x110] sm:$0xff]
  %v121 = vld [vmem:[#allocation2 + $0x118] sm:$0xff]
  %v122 = vld [vmem:[#allocation2 + $0x120] sm:$0xff]
  %v123 = vld [vmem:[#allocation2 + $0x128] sm:$0xff]
  %v124 = vld [vmem:[#allocation2 + $0x130] sm:$0xff]
  %v125 = vld [vmem:[#allocation2 + $0x138] sm:$0xff]
  %v126 = vld [vmem:[#allocation2 + $0x140] sm:$0xff]
  %v127 = vld [vmem:[#allocation2 + $0x148] sm:$0xff]
  %v128 = vld [vmem:[#allocation2 + $0x150] sm:$0xff]
  %v129 = vld [vmem:[#allocation2 + $0x158] sm:$0xff]
  %v130 = vld [vmem:[#allocation2 + $0x160] sm:$0xff]
  %v131 = vld [vmem:[#allocation2 + $0x168] sm:$0xff]
  %v132 = vld [vmem:[#allocation2 + $0x170] sm:$0xff]
  %v133 = vld [vmem:[#allocation2 + $0x178] sm:$0xff]
  %v134 = vld [vmem:[#allocation2 + $0x180] sm:$0xff]
  %v135 = vld [vmem:[#allocation2 + $0x188] sm:$0xff]
  %v136 = vld [vmem:[#allocation2 + $0x190] sm:$0xff]
  %v137 = vld [vmem:[#allocation2 + $0x198] sm:$0xff]
  %v138 = vld [vmem:[#allocation2 + $0x1a0] sm:$0xff]
  %v139 = vld [vmem:[#allocation2 + $0x1a8] sm:$0xff]
  %v140 = vld [vmem:[#allocation2 + $0x1b0] sm:$0xff]
  %v141 = vld [vmem:[#allocation2 + $0x1b8] sm:$0xff]
  %v142 = vld [vmem:[#allocation2 + $0x1c0] sm:$0xff]
  %v143 = vld [vmem:[#allocation2 + $0x1c8] sm:$0xff]
  %v144 = vld [vmem:[#allocation2 + $0x1d0] sm:$0xff]
  %v145 = vld [vmem:[#allocation2 + $0x1d8] sm:$0xff]
  %v146 = vld [vmem:[#allocation2 + $0x1e0] sm:$0xff]
  %v147 = vld [vmem:[#allocation2 + $0x1e8] sm:$0xff]
  %v148 = vld [vmem:[#allocation2 + $0x1f0] sm:$0xff]
  %v149 = vld [vmem:[#allocation2 + $0x1f8] sm:$0xff]
  %v150 = vld [vmem:[%s0] sm:$0xf]
  %v151 = vld [vmem:[%s0 + $0x4] sm:$0xf]
  %v152 = vld [vmem:[%s0 + $0x8] sm:$0xf]
  %v153 = vld [vmem:[%s0 + $0xc] sm:$0xf]
  %v154 = vld [vmem:[%s0 + $0x10] sm:$0xf]
  %v155 = vld [vmem:[%s0 + $0x14] sm:$0xf]
  %v156 = vld [vmem:[%s0 + $0x18] sm:$0xf]
  %v157 = vld [vmem:[%s0 + $0x1c] sm:$0xf]
  %v158 = vld [vmem:[%s0 + $0x20] sm:$0xf]
  %v159 = vld [vmem:[%s0 + $0x24] sm:$0xf]
  %v160 = vld [vmem:[%s0 + $0x28] sm:$0xf]
  %v161 = vld [vmem:[%s0 + $0x2c] sm:$0xf]
  %v162 = vld [vmem:[%s0 + $0x30] sm:$0xf]
  %v163 = vld [vmem:[%s0 + $0x34] sm:$0xf]
  %v164 = vld [vmem:[%s0 + $0x38] sm:$0xf]
  %v165 = vld [vmem:[%s0 + $0x3c] sm:$0xf]
  %v166 = vld [vmem:[%s0 + $0x40] sm:$0xf]
  %v167 = vld [vmem:[%s0 + $0x44] sm:$0xf]
  %v168 = vld [vmem:[%s0 + $0x48] sm:$0xf]
  %v169 = vld [vmem:[%s0 + $0x4c] sm:$0xf]
  %v170 = vld [vmem:[%s0 + $0x50] sm:$0xf]
  %v171 = vld [vmem:[%s0 + $0x54] sm:$0xf]
  %v172 = vld [vmem:[%s0 + $0x58] sm:$0xf]
  %v173 = vld [vmem:[%s0 + $0x5c] sm:$0xf]
  %v174 = vld [vmem:[%s0 + $0x60] sm:$0xf]
  %v175 = vld [vmem:[%s0 + $0x64] sm:$0xf]
  %v176 = vld [vmem:[%s0 + $0x68] sm:$0xf]
  %v177 = vld [vmem:[%s0 + $0x6c] sm:$0xf]
  %v178 = vld [vmem:[%s0 + $0x70] sm:$0xf]
  %v179 = vld [vmem:[%s0 + $0x74] sm:$0xf]
  %v180 = vld [vmem:[%s0 + $0x78] sm:$0xf]
  %v181 = vld [vmem:[%s0 + $0x7c] sm:$0xf]
  %v182 = vld [vmem:[%s0 + $0x80] sm:$0xf]
  %v183 = vld [vmem:[%s0 + $0x84] sm:$0xf]
  %v184 = vld [vmem:[%s0 + $0x88] sm:$0xf]
  %v185 = vld [vmem:[%s0 + $0x8c] sm:$0xf]
  %v186 = vld [vmem:[%s0 + $0x90] sm:$0xf]
  %v187 = vld [vmem:[%s0 + $0x94] sm:$0xf]
  %v188 = vld [vmem:[%s0 + $0x98] sm:$0xf]
  %v189 = vld [vmem:[%s0 + $0x9c] sm:$0xf]
  %v190 = vld [vmem:[%s0 + $0xa0] sm:$0xf]
  %v191 = vld [vmem:[%s0 + $0xa4] sm:$0xf]
  %v192 = vld [vmem:[%s0 + $0xa8] sm:$0xf]
  %v193 = vld [vmem:[%s0 + $0xac] sm:$0xf]
  %v194 = vld [vmem:[%s0 + $0xb0] sm:$0xf]
  %v195 = vld [vmem:[%s0 + $0xb4] sm:$0xf]
  %v196 = vld [vmem:[%s0 + $0xb8] sm:$0xf]
  %v197 = vld [vmem:[%s0 + $0xbc] sm:$0xf]
  %v198 = vld [vmem:[%s0 + $0xc0] sm:$0xf]
  %v199 = vld [vmem:[%s0 + $0xc4] sm:$0xf]
  %v200 = vld [vmem:[%s0 + $0xc8] sm:$0xf]
  %v201 = vld [vmem:[%s0 + $0xcc] sm:$0xf]
  %v202 = vld [vmem:[%s0 + $0xd0] sm:$0xf]
  %v203 = vld [vmem:[%s0 + $0xd4] sm:$0xf]
  %v204 = vld [vmem:[%s0 + $0xd8] sm:$0xf]
  %v205 = vld [vmem:[%s0 + $0xdc] sm:$0xf]
  %v206 = vld [vmem:[%s0 + $0xe0] sm:$0xf]
  %v207 = vld [vmem:[%s0 + $0xe4] sm:$0xf]
  %v208 = vld [vmem:[%s0 + $0xe8] sm:$0xf]
  %v209 = vld [vmem:[%s0 + $0xec] sm:$0xf]
  %v210 = vld [vmem:[%s0 + $0xf0] sm:$0xf]
  %v211 = vld [vmem:[%s0 + $0xf4] sm:$0xf]
  %v212 = vld [vmem:[%s0 + $0xf8] sm:$0xf]
  %v213 = vld [vmem:[%s0 + $0xfc] sm:$0xf]
  %v214 = vld [vmem:[%s1] sm:$0xf]
  %v215 = vld [vmem:[%s1 + $0x4] sm:$0xf]
  %v216 = vld [vmem:[%s1 + $0x8] sm:$0xf]
  %v217 = vld [vmem:[%s1 + $0xc] sm:$0xf]
  %v218 = vld [vmem:[%s1 + $0x10] sm:$0xf]
  %v219 = vld [vmem:[%s1 + $0x14] sm:$0xf]
  %v220 = vld [vmem:[%s1 + $0x18] sm:$0xf]
  %v221 = vld [vmem:[%s1 + $0x1c] sm:$0xf]
  %v222 = vld [vmem:[%s1 + $0x20] sm:$0xf]
  %v223 = vld [vmem:[%s1 + $0x24] sm:$0xf]
  %v224 = vld [vmem:[%s1 + $0x28] sm:$0xf]
  %v225 = vld [vmem:[%s1 + $0x2c] sm:$0xf]
  %v226 = vld [vmem:[%s1 + $0x30] sm:$0xf]
  %v227 = vld [vmem:[%s1 + $0x34] sm:$0xf]
  %v228 = vld [vmem:[%s1 + $0x38] sm:$0xf]
  %v229 = vld [vmem:[%s1 + $0x3c] sm:$0xf]
  %v294 = vunpack.c.l.b16 %v150
  %v295 = vunpack.c.l.b16 %v151
  %v296 = vunpack.c.l.b16 %v152
  %v297 = vunpack.c.l.b16 %v153
  %v298 = vunpack.c.l.b16 %v154
  %v299 = vunpack.c.l.b16 %v155
  %v300 = vunpack.c.l.b16 %v156
  %v301 = vunpack.c.l.b16 %v157
  %v302 = vunpack.c.l.b16 %v158
  %v303 = vunpack.c.l.b16 %v159
  %v304 = vunpack.c.l.b16 %v160
  %v305 = vunpack.c.l.b16 %v161
  %v306 = vunpack.c.l.b16 %v162
  %v307 = vunpack.c.l.b16 %v163
  %v308 = vunpack.c.l.b16 %v164
  %v309 = vunpack.c.l.b16 %v165
  %v310 = vunpack.c.l.b16 %v166
  %v311 = vunpack.c.l.b16 %v167
  %v312 = vunpack.c.l.b16 %v168
  %v313 = vunpack.c.l.b16 %v169
  %v314 = vunpack.c.l.b16 %v170
  %v315 = vunpack.c.l.b16 %v171
  %v316 = vunpack.c.l.b16 %v172
  %v317 = vunpack.c.l.b16 %v173
  %v318 = vunpack.c.l.b16 %v174
  %v319 = vunpack.c.l.b16 %v175
  %v320 = vunpack.c.l.b16 %v176
  %v321 = vunpack.c.l.b16 %v177
  %v322 = vunpack.c.l.b16 %v178
  %v323 = vunpack.c.l.b16 %v179
  %v324 = vunpack.c.l.b16 %v180
  %v325 = vunpack.c.l.b16 %v181
  %v326 = vunpack.c.l.b16 %v182
  %v327 = vunpack.c.l.b16 %v183
  %v328 = vunpack.c.l.b16 %v184
  %v329 = vunpack.c.l.b16 %v185
  %v330 = vunpack.c.l.b16 %v186
  %v331 = vunpack.c.l.b16 %v187
  %v332 = vunpack.c.l.b16 %v188
  %v333 = vunpack.c.l.b16 %v189
  %v334 = vunpack.c.l.b16 %v190
  %v335 = vunpack.c.l.b16 %v191
  %v336 = vunpack.c.l.b16 %v192
  %v337 = vunpack.c.l.b16 %v193
  %v338 = vunpack.c.l.b16 %v194
  %v339 = vunpack.c.l.b16 %v195
  %v340 = vunpack.c.l.b16 %v196
  %v341 = vunpack.c.l.b16 %v197
  %v342 = vunpack.c.l.b16 %v198
  %v343 = vunpack.c.l.b16 %v199
  %v344 = vunpack.c.l.b16 %v200
  %v345 = vunpack.c.l.b16 %v201
  %v346 = vunpack.c.l.b16 %v202
  %v347 = vunpack.c.l.b16 %v203
  %v348 = vunpack.c.l.b16 %v204
  %v349 = vunpack.c.l.b16 %v205
  %v350 = vunpack.c.l.b16 %v206
  %v351 = vunpack.c.l.b16 %v207
  %v352 = vunpack.c.l.b16 %v208
  %v353 = vunpack.c.l.b16 %v209
  %v354 = vunpack.c.l.b16 %v210
  %v355 = vunpack.c.l.b16 %v211
  %v356 = vunpack.c.l.b16 %v212
  %v357 = vunpack.c.l.b16 %v213
  %v358 = vpack.c.b16 %v295, %v294
  %v359 = vpack.c.b16 %v297, %v296
  %v360 = vpack.c.b16 %v299, %v298
  %v361 = vpack.c.b16 %v301, %v300
  %v362 = vpack.c.b16 %v303, %v302
  %v363 = vpack.c.b16 %v305, %v304
  %v364 = vpack.c.b16 %v307, %v306
  %v365 = vpack.c.b16 %v309, %v308
  %v366 = vpack.c.b16 %v311, %v310
  %v367 = vpack.c.b16 %v313, %v312
  %v368 = vpack.c.b16 %v315, %v314
  %v369 = vpack.c.b16 %v317, %v316
  %v370 = vpack.c.b16 %v319, %v318
  %v371 = vpack.c.b16 %v321, %v320
  %v372 = vpack.c.b16 %v323, %v322
  %v373 = vpack.c.b16 %v325, %v324
  %v374 = vpack.c.b16 %v327, %v326
  %v375 = vpack.c.b16 %v329, %v328
  %v376 = vpack.c.b16 %v331, %v330
  %v377 = vpack.c.b16 %v333, %v332
  %v378 = vpack.c.b16 %v335, %v334
  %v379 = vpack.c.b16 %v337, %v336
  %v380 = vpack.c.b16 %v339, %v338
  %v381 = vpack.c.b16 %v341, %v340
  %v382 = vpack.c.b16 %v343, %v342
  %v383 = vpack.c.b16 %v345, %v344
  %v384 = vpack.c.b16 %v347, %v346
  %v385 = vpack.c.b16 %v349, %v348
  %v386 = vpack.c.b16 %v351, %v350
  %v387 = vpack.c.b16 %v353, %v352
  %v388 = vpack.c.b16 %v355, %v354
  %v389 = vpack.c.b16 %v357, %v356
  %v438 = vunpack.c.l.b16 %v214
  %v439 = vunpack.c.l.b16 %v215
  %v440 = vunpack.c.l.b16 %v216
  %v441 = vunpack.c.l.b16 %v217
  %v442 = vunpack.c.l.b16 %v218
  %v443 = vunpack.c.l.b16 %v219
  %v444 = vunpack.c.l.b16 %v220
  %v445 = vunpack.c.l.b16 %v221
  %v446 = vunpack.c.l.b16 %v222
  %v447 = vunpack.c.l.b16 %v223
  %v448 = vunpack.c.l.b16 %v224
  %v449 = vunpack.c.l.b16 %v225
  %v450 = vunpack.c.l.b16 %v226
  %v451 = vunpack.c.l.b16 %v227
  %v452 = vunpack.c.l.b16 %v228
  %v453 = vunpack.c.l.b16 %v229
  %v454 = vpack.c.b16 %v439, %v438
  %v455 = vpack.c.b16 %v441, %v440
  %v456 = vpack.c.b16 %v443, %v442
  %v457 = vpack.c.b16 %v445, %v444
  %v458 = vpack.c.b16 %v447, %v446
  %v459 = vpack.c.b16 %v449, %v448
  %v460 = vpack.c.b16 %v451, %v450
  %v461 = vpack.c.b16 %v453, %v452
  %470 = vmatprep.subr.bf16.mxu0 0
  %471 = vmatpush1.bf16.msra.mxu0 %v454
  %472 = vmatprep.subr.bf16.mxu0 0
  %473 = vmatpush1.bf16.msra.mxu0 %v455
  %474 = vmatprep.subr.bf16.mxu0 0
  %475 = vmatpush1.bf16.msra.mxu0 %v456
  %476 = vmatprep.subr.bf16.mxu0 0
  %477 = vmatpush1.bf16.msra.mxu0 %v457
  %478 = vmatprep.subr.bf16.mxu0 0
  %479 = vmatpush1.bf16.msra.mxu0 %v458
  %480 = vmatprep.subr.bf16.mxu0 0
  %481 = vmatpush1.bf16.msra.mxu0 %v459
  %482 = vmatprep.subr.bf16.mxu0 0
  %483 = vmatpush1.bf16.msra.mxu0 %v460
  %484 = vmatprep.subr.bf16.mxu0 0
  %485 = vmatpush1.bf16.msra.mxu0 %v461
  %486 = vmatprep.subr.bf16.mxu0 0
  %487 = vmatpush1.bf16.msra.mxu0 0
  %488 = vmatprep.subr.bf16.mxu0 0
  %489 = vmatpush1.bf16.msra.mxu0 0
  %490 = vmatprep.subr.bf16.mxu0 0
  %491 = vmatpush1.bf16.msra.mxu0 0
  %492 = vmatprep.subr.bf16.mxu0 0
  %493 = vmatpush1.bf16.msra.mxu0 0
  %494 = vmatprep.subr.bf16.mxu0 0
  %495 = vmatpush1.bf16.msra.mxu0 0
  %496 = vmatprep.subr.bf16.mxu0 0
  %497 = vmatpush1.bf16.msra.mxu0 0
  %498 = vmatprep.subr.bf16.mxu0 0
  %499 = vmatpush1.bf16.msra.mxu0 0
  %500 = vmatprep.subr.bf16.mxu0 0
  %501 = vmatpush1.bf16.msra.mxu0 0
  %502 = vmatprep.mubr.bf16.mxu0 0
  %503 = vmatmul.mubr.bf16.gmra.mrb[0].mxu0 %v358
  %v504 = vpop.f32.mrb[0].mxu0
  %v505 = vadd.f32 0.0, %v504
  %v506 = vpop.f32.mrb[0].mxu0
  %v507 = vpop.f32.mrb[0].mxu0
  %v508 = vadd.f32 0.0, %v507
  %v509 = vpop.f32.mrb[0].mxu0
  %510 = vmatprep.mubr.bf16.mxu0 0
  %511 = vmatmul.mubr.bf16.gmra.mrb[0].mxu0 %v359
  %v512 = vpop.f32.mrb[0].mxu0
  %v513 = vadd.f32 0.0, %v512
  %v514 = vpop.f32.mrb[0].mxu0
  %v515 = vpop.f32.mrb[0].mxu0
  %v516 = vadd.f32 0.0, %v515
  %v517 = vpop.f32.mrb[0].mxu0
  %518 = vmatprep.mubr.bf16.mxu0 0
  %519 = vmatmul.mubr.bf16.gmra.mrb[0].mxu0 %v360
  %v520 = vpop.f32.mrb[0].mxu0
  %v521 = vadd.f32 0.0, %v520
  %v522 = vpop.f32.mrb[0].mxu0
  %v523 = vpop.f32.mrb[0].mxu0
  %v524 = vadd.f32 0.0, %v523
  %v525 = vpop.f32.mrb[0].mxu0
  %526 = vmatprep.mubr.bf16.mxu0 0
  %527 = vmatmul.mubr.bf16.gmra.mrb[0].mxu0 %v361
  %v528 = vpop.f32.mrb[0].mxu0
  %v529 = vadd.f32 0.0, %v528
  %v530 = vpop.f32.mrb[0].mxu0
  %v531 = vpop.f32.mrb[0].mxu0
  %v532 = vadd.f32 0.0, %v531
  %v533 = vpop.f32.mrb[0].mxu0
  %534 = vmatprep.mubr.bf16.mxu0 0
  %535 = vmatmul.mubr.bf16.gmra.mrb[0].mxu0 %v362
  %v536 = vpop.f32.mrb[0].mxu0
  %v537 = vadd.f32 0.0, %v536
  %v538 = vpop.f32.mrb[0].mxu0
  %v539 = vpop.f32.mrb[0].mxu0
  %v540 = vadd.f32 0.0, %v539
  %v541 = vpop.f32.mrb[0].mxu0
  %542 = vmatprep.mubr.bf16.mxu0 0
  %543 = vmatmul.mubr.bf16.gmra.mrb[0].mxu0 %v363
  %v544 = vpop.f32.mrb[0].mxu0
  %v545 = vadd.f32 0.0, %v544
  %v546 = vpop.f32.mrb[0].mxu0
  %v547 = vpop.f32.mrb[0].mxu0
  %v548 = vadd.f32 0.0, %v547
  %v549 = vpop.f32.mrb[0].mxu0
  %550 = vmatprep.mubr.bf16.mxu0 0
  %551 = vmatmul.mubr.bf16.gmra.mrb[0].mxu0 %v364
  %v552 = vpop.f32.mrb[0].mxu0
  %v553 = vadd.f32 0.0, %v552
  %v554 = vpop.f32.mrb[0].mxu0
  %v555 = vpop.f32.mrb[0].mxu0
  %v556 = vadd.f32 0.0, %v555
  %v557 = vpop.f32.mrb[0].mxu0
  %558 = vmatprep.mubr.bf16.mxu0 0
  %559 = vmatmul.mubr.bf16.gmra.mrb[0].mxu0 %v365
  %v560 = vpop.f32.mrb[0].mxu0
  %v561 = vadd.f32 0.0, %v560
  %v562 = vpop.f32.mrb[0].mxu0
  %v563 = vpop.f32.mrb[0].mxu0
  %v564 = vadd.f32 0.0, %v563
  %v565 = vpop.f32.mrb[0].mxu0
  %566 = vmatprep.mubr.bf16.mxu0 0
  %567 = vmatmul.mubr.bf16.gmra.mrb[0].mxu0 %v366
  %v568 = vpop.f32.mrb[0].mxu0
  %v569 = vadd.f32 0.0, %v568
  %v570 = vpop.f32.mrb[0].mxu0
  %v571 = vpop.f32.mrb[0].mxu0
  %v572 = vadd.f32 0.0, %v571
  %v573 = vpop.f32.mrb[0].mxu0
  %574 = vmatprep.mubr.bf16.mxu0 0
  %575 = vmatmul.mubr.bf16.gmra.mrb[0].mxu0 %v367
  %v576 = vpop.f32.mrb[0].mxu0
  %v577 = vadd.f32 0.0, %v576
  %v578 = vpop.f32.mrb[0].mxu0
  %v579 = vpop.f32.mrb[0].mxu0
  %v580 = vadd.f32 0.0, %v579
  %v581 = vpop.f32.mrb[0].mxu0
  %582 = vmatprep.mubr.bf16.mxu0 0
  %583 = vmatmul.mubr.bf16.gmra.mrb[0].mxu0 %v368
  %v584 = vpop.f32.mrb[0].mxu0
  %v585 = vadd.f32 0.0, %v584
  %v586 = vpop.f32.mrb[0].mxu0
  %v587 = vpop.f32.mrb[0].mxu0
  %v588 = vadd.f32 0.0, %v587
  %v589 = vpop.f32.mrb[0].mxu0
  %590 = vmatprep.mubr.bf16.mxu0 0
  %591 = vmatmul.mubr.bf16.gmra.mrb[0].mxu0 %v369
  %v592 = vpop.f32.mrb[0].mxu0
  %v593 = vadd.f32 0.0, %v592
  %v594 = vpop.f32.mrb[0].mxu0
  %v595 = vpop.f32.mrb[0].mxu0
  %v596 = vadd.f32 0.0, %v595
  %v597 = vpop.f32.mrb[0].mxu0
  %598 = vmatprep.mubr.bf16.mxu0 0
  %599 = vmatmul.mubr.bf16.gmra.mrb[0].mxu0 %v370
  %v600 = vpop.f32.mrb[0].mxu0
  %v601 = vadd.f32 0.0, %v600
  %v602 = vpop.f32.mrb[0].mxu0
  %v603 = vpop.f32.mrb[0].mxu0
  %v604 = vadd.f32 0.0, %v603
  %v605 = vpop.f32.mrb[0].mxu0
  %606 = vmatprep.mubr.bf16.mxu0 0
  %607 = vmatmul.mubr.bf16.gmra.mrb[0].mxu0 %v371
  %v608 = vpop.f32.mrb[0].mxu0
  %v609 = vadd.f32 0.0, %v608
  %v610 = vpop.f32.mrb[0].mxu0
  %v611 = vpop.f32.mrb[0].mxu0
  %v612 = vadd.f32 0.0, %v611
  %v613 = vpop.f32.mrb[0].mxu0
  %614 = vmatprep.mubr.bf16.mxu0 0
  %615 = vmatmul.mubr.bf16.gmra.mrb[0].mxu0 %v372
  %v616 = vpop.f32.mrb[0].mxu0
  %v617 = vadd.f32 0.0, %v616
  %v618 = vpop.f32.mrb[0].mxu0
  %v619 = vpop.f32.mrb[0].mxu0
  %v620 = vadd.f32 0.0, %v619
  %v621 = vpop.f32.mrb[0].mxu0
  %622 = vmatprep.mubr.bf16.mxu0 0
  %623 = vmatmul.mubr.bf16.gmra.mrb[0].mxu0 %v373
  %v624 = vpop.f32.mrb[0].mxu0
  %v625 = vadd.f32 0.0, %v624
  %v626 = vpop.f32.mrb[0].mxu0
  %v627 = vpop.f32.mrb[0].mxu0
  %v628 = vadd.f32 0.0, %v627
  %v629 = vpop.f32.mrb[0].mxu0
  %630 = vmatprep.mubr.bf16.mxu0 0
  %631 = vmatmul.mubr.bf16.gmra.mrb[0].mxu0 %v374
  %v632 = vpop.f32.mrb[0].mxu0
  %v633 = vadd.f32 0.0, %v632
  %v634 = vpop.f32.mrb[0].mxu0
  %v635 = vpop.f32.mrb[0].mxu0
  %v636 = vadd.f32 0.0, %v635
  %v637 = vpop.f32.mrb[0].mxu0
  %638 = vmatprep.mubr.bf16.mxu0 0
  %639 = vmatmul.mubr.bf16.gmra.mrb[0].mxu0 %v375
  %v640 = vpop.f32.mrb[0].mxu0
  %v641 = vadd.f32 0.0, %v640
  %v642 = vpop.f32.mrb[0].mxu0
  %v643 = vpop.f32.mrb[0].mxu0
  %v644 = vadd.f32 0.0, %v643
  %v645 = vpop.f32.mrb[0].mxu0
  %646 = vmatprep.mubr.bf16.mxu0 0
  %647 = vmatmul.mubr.bf16.gmra.mrb[0].mxu0 %v376
  %v648 = vpop.f32.mrb[0].mxu0
  %v649 = vadd.f32 0.0, %v648
  %v650 = vpop.f32.mrb[0].mxu0
  %v651 = vpop.f32.mrb[0].mxu0
  %v652 = vadd.f32 0.0, %v651
  %v653 = vpop.f32.mrb[0].mxu0
  %654 = vmatprep.mubr.bf16.mxu0 0
  %655 = vmatmul.mubr.bf16.gmra.mrb[0].mxu0 %v377
  %v656 = vpop.f32.mrb[0].mxu0
  %v657 = vadd.f32 0.0, %v656
  %v658 = vpop.f32.mrb[0].mxu0
  %v659 = vpop.f32.mrb[0].mxu0
  %v660 = vadd.f32 0.0, %v659
  %v661 = vpop.f32.mrb[0].mxu0
  %662 = vmatprep.mubr.bf16.mxu0 0
  %663 = vmatmul.mubr.bf16.gmra.mrb[0].mxu0 %v378
  %v664 = vpop.f32.mrb[0].mxu0
  %v665 = vadd.f32 0.0, %v664
  %v666 = vpop.f32.mrb[0].mxu0
  %v667 = vpop.f32.mrb[0].mxu0
  %v668 = vadd.f32 0.0, %v667
  %v669 = vpop.f32.mrb[0].mxu0
  %670 = vmatprep.mubr.bf16.mxu0 0
  %671 = vmatmul.mubr.bf16.gmra.mrb[0].mxu0 %v379
  %v672 = vpop.f32.mrb[0].mxu0
  %v673 = vadd.f32 0.0, %v672
  %v674 = vpop.f32.mrb[0].mxu0
  %v675 = vpop.f32.mrb[0].mxu0
  %v676 = vadd.f32 0.0, %v675
  %v677 = vpop.f32.mrb[0].mxu0
  %678 = vmatprep.mubr.bf16.mxu0 0
  %679 = vmatmul.mubr.bf16.gmra.mrb[0].mxu0 %v380
  %v680 = vpop.f32.mrb[0].mxu0
  %v681 = vadd.f32 0.0, %v680
  %v682 = vpop.f32.mrb[0].mxu0
  %v683 = vpop.f32.mrb[0].mxu0
  %v684 = vadd.f32 0.0, %v683
  %v685 = vpop.f32.mrb[0].mxu0
  %686 = vmatprep.mubr.bf16.mxu0 0
  %687 = vmatmul.mubr.bf16.gmra.mrb[0].mxu0 %v381
  %v688 = vpop.f32.mrb[0].mxu0
  %v689 = vadd.f32 0.0, %v688
  %v690 = vpop.f32.mrb[0].mxu0
  %v691 = vpop.f32.mrb[0].mxu0
  %v692 = vadd.f32 0.0, %v691
  %v693 = vpop.f32.mrb[0].mxu0
  %694 = vmatprep.mubr.bf16.mxu0 0
  %695 = vmatmul.mubr.bf16.gmra.mrb[0].mxu0 %v382
  %v696 = vpop.f32.mrb[0].mxu0
  %v697 = vadd.f32 0.0, %v696
  %v698 = vpop.f32.mrb[0].mxu0
  %v699 = vpop.f32.mrb[0].mxu0
  %v700 = vadd.f32 0.0, %v699
  %v701 = vpop.f32.mrb[0].mxu0
  %702 = vmatprep.mubr.bf16.mxu0 0
  %703 = vmatmul.mubr.bf16.gmra.mrb[0].mxu0 %v383
  %v704 = vpop.f32.mrb[0].mxu0
  %v705 = vadd.f32 0.0, %v704
  %v706 = vpop.f32.mrb[0].mxu0
  %v707 = vpop.f32.mrb[0].mxu0
  %v708 = vadd.f32 0.0, %v707
  %v709 = vpop.f32.mrb[0].mxu0
  %710 = vmatprep.mubr.bf16.mxu0 0
  %711 = vmatmul.mubr.bf16.gmra.mrb[0].mxu0 %v384
  %v712 = vpop.f32.mrb[0].mxu0
  %v713 = vadd.f32 0.0, %v712
  %v714 = vpop.f32.mrb[0].mxu0
  %v715 = vpop.f32.mrb[0].mxu0
  %v716 = vadd.f32 0.0, %v715
  %v717 = vpop.f32.mrb[0].mxu0
  %718 = vmatprep.mubr.bf16.mxu0 0
  %719 = vmatmul.mubr.bf16.gmra.mrb[0].mxu0 %v385
  %v720 = vpop.f32.mrb[0].mxu0
  %v721 = vadd.f32 0.0, %v720
  %v722 = vpop.f32.mrb[0].mxu0
  %v723 = vpop.f32.mrb[0].mxu0
  %v724 = vadd.f32 0.0, %v723
  %v725 = vpop.f32.mrb[0].mxu0
  %726 = vmatprep.mubr.bf16.mxu0 0
  %727 = vmatmul.mubr.bf16.gmra.mrb[0].mxu0 %v386
  %v728 = vpop.f32.mrb[0].mxu0
  %v729 = vadd.f32 0.0, %v728
  %v730 = vpop.f32.mrb[0].mxu0
  %v731 = vpop.f32.mrb[0].mxu0
  %v732 = vadd.f32 0.0, %v731
  %v733 = vpop.f32.mrb[0].mxu0
  %734 = vmatprep.mubr.bf16.mxu0 0
  %735 = vmatmul.mubr.bf16.gmra.mrb[0].mxu0 %v387
  %v736 = vpop.f32.mrb[0].mxu0
  %v737 = vadd.f32 0.0, %v736
  %v738 = vpop.f32.mrb[0].mxu0
  %v739 = vpop.f32.mrb[0].mxu0
  %v740 = vadd.f32 0.0, %v739
  %v741 = vpop.f32.mrb[0].mxu0
  %742 = vmatprep.mubr.bf16.mxu0 0
  %743 = vmatmul.mubr.bf16.gmra.mrb[0].mxu0 %v388
  %v744 = vpop.f32.mrb[0].mxu0
  %v745 = vadd.f32 0.0, %v744
  %v746 = vpop.f32.mrb[0].mxu0
  %v747 = vpop.f32.mrb[0].mxu0
  %v748 = vadd.f32 0.0, %v747
  %v749 = vpop.f32.mrb[0].mxu0
  %750 = vmatprep.mubr.bf16.mxu0 0
  %751 = vmatmul.mubr.bf16.gmra.mrb[0].mxu0 %v389
  %v752 = vpop.f32.mrb[0].mxu0
  %v753 = vadd.f32 0.0, %v752
  %v754 = vpop.f32.mrb[0].mxu0
  %v755 = vpop.f32.mrb[0].mxu0
  %v756 = vadd.f32 0.0, %v755
  %v757 = vpop.f32.mrb[0].mxu0
  %758 = vdwg.mxu0
  %v759 = vadd.f32 %v86, %v505
  %v760 = vadd.f32 %v87, %v508
  %v761 = vadd.f32 %v88, %v513
  %v762 = vadd.f32 %v89, %v516
  %v763 = vadd.f32 %v90, %v521
  %v764 = vadd.f32 %v91, %v524
  %v765 = vadd.f32 %v92, %v529
  %v766 = vadd.f32 %v93, %v532
  %v767 = vadd.f32 %v94, %v537
  %v768 = vadd.f32 %v95, %v540
  %v769 = vadd.f32 %v96, %v545
  %v770 = vadd.f32 %v97, %v548
  %v771 = vadd.f32 %v98, %v553
  %v772 = vadd.f32 %v99, %v556
  %v773 = vadd.f32 %v100, %v561
  %v774 = vadd.f32 %v101, %v564
  %v775 = vadd.f32 %v102, %v569
  %v776 = vadd.f32 %v103, %v572
  %v777 = vadd.f32 %v104, %v577
  %v778 = vadd.f32 %v105, %v580
  %v779 = vadd.f32 %v106, %v585
  %v780 = vadd.f32 %v107, %v588
  %v781 = vadd.f32 %v108, %v593
  %v782 = vadd.f32 %v109, %v596
  %v783 = vadd.f32 %v110, %v601
  %v784 = vadd.f32 %v111, %v604
  %v785 = vadd.f32 %v112, %v609
  %v786 = vadd.f32 %v113, %v612
  %v787 = vadd.f32 %v114, %v617
  %v788 = vadd.f32 %v115, %v620
  %v789 = vadd.f32 %v116, %v625
  %v790 = vadd.f32 %v117, %v628
  %v791 = vadd.f32 %v118, %v633
  %v792 = vadd.f32 %v119, %v636
  %v793 = vadd.f32 %v120, %v641
  %v794 = vadd.f32 %v121, %v644
  %v795 = vadd.f32 %v122, %v649
  %v796 = vadd.f32 %v123, %v652
  %v797 = vadd.f32 %v124, %v657
  %v798 = vadd.f32 %v125, %v660
  %v799 = vadd.f32 %v126, %v665
  %v800 = vadd.f32 %v127, %v668
  %v801 = vadd.f32 %v128, %v673
  %v802 = vadd.f32 %v129, %v676
  %v803 = vadd.f32 %v130, %v681
  %v804 = vadd.f32 %v131, %v684
  %v805 = vadd.f32 %v132, %v689
  %v806 = vadd.f32 %v133, %v692
  %v807 = vadd.f32 %v134, %v697
  %v808 = vadd.f32 %v135, %v700
  %v809 = vadd.f32 %v136, %v705
  %v810 = vadd.f32 %v137, %v708
  %v811 = vadd.f32 %v138, %v713
  %v812 = vadd.f32 %v139, %v716
  %v813 = vadd.f32 %v140, %v721
  %v814 = vadd.f32 %v141, %v724
  %v815 = vadd.f32 %v142, %v729
  %v816 = vadd.f32 %v143, %v732
  %v817 = vadd.f32 %v144, %v737
  %v818 = vadd.f32 %v145, %v740
  %v819 = vadd.f32 %v146, %v745
  %v820 = vadd.f32 %v147, %v748
  %v821 = vadd.f32 %v148, %v753
  %v822 = vadd.f32 %v149, %v756
  %vm823 = vcmask 130048
  %824 = vst.msk [vmem:[#allocation2] sm:$0xff] %vm823, %v759
  %825 = vst.msk [vmem:[#allocation2 + $0x8] sm:$0xff] %vm823, %v760
  %826 = vst.msk [vmem:[#allocation2 + $0x10] sm:$0xff] %vm823, %v761
  %827 = vst.msk [vmem:[#allocation2 + $0x18] sm:$0xff] %vm823, %v762
  %828 = vst.msk [vmem:[#allocation2 + $0x20] sm:$0xff] %vm823, %v763
  %829 = vst.msk [vmem:[#allocation2 + $0x28] sm:$0xff] %vm823, %v764
  %830 = vst.msk [vmem:[#allocation2 + $0x30] sm:$0xff] %vm823, %v765
  %831 = vst.msk [vmem:[#allocation2 + $0x38] sm:$0xff] %vm823, %v766
  %832 = vst.msk [vmem:[#allocation2 + $0x40] sm:$0xff] %vm823, %v767
  %833 = vst.msk [vmem:[#allocation2 + $0x48] sm:$0xff] %vm823, %v768
  %834 = vst.msk [vmem:[#allocation2 + $0x50] sm:$0xff] %vm823, %v769
  %835 = vst.msk [vmem:[#allocation2 + $0x58] sm:$0xff] %vm823, %v770
  %836 = vst.msk [vmem:[#allocation2 + $0x60] sm:$0xff] %vm823, %v771
  %837 = vst.msk [vmem:[#allocation2 + $0x68] sm:$0xff] %vm823, %v772
  %838 = vst.msk [vmem:[#allocation2 + $0x70] sm:$0xff] %vm823, %v773
  %839 = vst.msk [vmem:[#allocation2 + $0x78] sm:$0xff] %vm823, %v774
  %840 = vst.msk [vmem:[#allocation2 + $0x80] sm:$0xff] %vm823, %v775
  %841 = vst.msk [vmem:[#allocation2 + $0x88] sm:$0xff] %vm823, %v776
  %842 = vst.msk [vmem:[#allocation2 + $0x90] sm:$0xff] %vm823, %v777
  %843 = vst.msk [vmem:[#allocation2 + $0x98] sm:$0xff] %vm823, %v778
  %844 = vst.msk [vmem:[#allocation2 + $0xa0] sm:$0xff] %vm823, %v779
  %845 = vst.msk [vmem:[#allocation2 + $0xa8] sm:$0xff] %vm823, %v780
  %846 = vst.msk [vmem:[#allocation2 + $0xb0] sm:$0xff] %vm823, %v781
  %847 = vst.msk [vmem:[#allocation2 + $0xb8] sm:$0xff] %vm823, %v782
  %848 = vst.msk [vmem:[#allocation2 + $0xc0] sm:$0xff] %vm823, %v783
  %849 = vst.msk [vmem:[#allocation2 + $0xc8] sm:$0xff] %vm823, %v784
  %850 = vst.msk [vmem:[#allocation2 + $0xd0] sm:$0xff] %vm823, %v785
  %851 = vst.msk [vmem:[#allocation2 + $0xd8] sm:$0xff] %vm823, %v786
  %852 = vst.msk [vmem:[#allocation2 + $0xe0] sm:$0xff] %vm823, %v787
  %853 = vst.msk [vmem:[#allocation2 + $0xe8] sm:$0xff] %vm823, %v788
  %854 = vst.msk [vmem:[#allocation2 + $0xf0] sm:$0xff] %vm823, %v789
  %855 = vst.msk [vmem:[#allocation2 + $0xf8] sm:$0xff] %vm823, %v790
  %856 = vst.msk [vmem:[#allocation2 + $0x100] sm:$0xff] %vm823, %v791
  %857 = vst.msk [vmem:[#allocation2 + $0x108] sm:$0xff] %vm823, %v792
  %858 = vst.msk [vmem:[#allocation2 + $0x110] sm:$0xff] %vm823, %v793
  %859 = vst.msk [vmem:[#allocation2 + $0x118] sm:$0xff] %vm823, %v794
  %860 = vst.msk [vmem:[#allocation2 + $0x120] sm:$0xff] %vm823, %v795
  %861 = vst.msk [vmem:[#allocation2 + $0x128] sm:$0xff] %vm823, %v796
  %862 = vst.msk [vmem:[#allocation2 + $0x130] sm:$0xff] %vm823, %v797
  %863 = vst.msk [vmem:[#allocation2 + $0x138] sm:$0xff] %vm823, %v798
  %864 = vst.msk [vmem:[#allocation2 + $0x140] sm:$0xff] %vm823, %v799
  %865 = vst.msk [vmem:[#allocation2 + $0x148] sm:$0xff] %vm823, %v800
  %866 = vst.msk [vmem:[#allocation2 + $0x150] sm:$0xff] %vm823, %v801
  %867 = vst.msk [vmem:[#allocation2 + $0x158] sm:$0xff] %vm823, %v802
  %868 = vst.msk [vmem:[#allocation2 + $0x160] sm:$0xff] %vm823, %v803
  %869 = vst.msk [vmem:[#allocation2 + $0x168] sm:$0xff] %vm823, %v804
  %870 = vst.msk [vmem:[#allocation2 + $0x170] sm:$0xff] %vm823, %v805
  %871 = vst.msk [vmem:[#allocation2 + $0x178] sm:$0xff] %vm823, %v806
  %872 = vst.msk [vmem:[#allocation2 + $0x180] sm:$0xff] %vm823, %v807
  %873 = vst.msk [vmem:[#allocation2 + $0x188] sm:$0xff] %vm823, %v808
  %874 = vst.msk [vmem:[#allocation2 + $0x190] sm:$0xff] %vm823, %v809
  %875 = vst.msk [vmem:[#allocation2 + $0x198] sm:$0xff] %vm823, %v810
  %876 = vst.msk [vmem:[#allocation2 + $0x1a0] sm:$0xff] %vm823, %v811
  %877 = vst.msk [vmem:[#allocation2 + $0x1a8] sm:$0xff] %vm823, %v812
  %878 = vst.msk [vmem:[#allocation2 + $0x1b0] sm:$0xff] %vm823, %v813
  %879 = vst.msk [vmem:[#allocation2 + $0x1b8] sm:$0xff] %vm823, %v814
  %880 = vst.msk [vmem:[#allocation2 + $0x1c0] sm:$0xff] %vm823, %v815
  %881 = vst.msk [vmem:[#allocation2 + $0x1c8] sm:$0xff] %vm823, %v816
  %882 = vst.msk [vmem:[#allocation2 + $0x1d0] sm:$0xff] %vm823, %v817
  %883 = vst.msk [vmem:[#allocation2 + $0x1d8] sm:$0xff] %vm823, %v818
  %884 = vst.msk [vmem:[#allocation2 + $0x1e0] sm:$0xff] %vm823, %v819
  %885 = vst.msk [vmem:[#allocation2 + $0x1e8] sm:$0xff] %vm823, %v820
  %886 = vst.msk [vmem:[#allocation2 + $0x1f0] sm:$0xff] %vm823, %v821
  %887 = vst.msk [vmem:[#allocation2 + $0x1f8] sm:$0xff] %vm823, %v822
  // Predicated region
  $region18: #{discriminator_forward.5} parent=0 // pred_check
    %p888 = pneg %p17
  $region19: #{discriminator_forward.5} parent=0 // pred_check_branch
    %890 = sbr.rel (%p888) target = $region21
  $region20: #{discriminator_forward.5} parent=0 // pred_region
    %v891 = vld [vmem:[#allocation2] sm:$0xff]
    %v892 = vld [vmem:[#allocation2 + $0x8] sm:$0xff]
    %v893 = vld [vmem:[#allocation2 + $0x10] sm:$0xff]
    %v894 = vld [vmem:[#allocation2 + $0x18] sm:$0xff]
    %v895 = vld [vmem:[#allocation2 + $0x20] sm:$0xff]
    %v896 = vld [vmem:[#allocation2 + $0x28] sm:$0xff]
    %v897 = vld [vmem:[#allocation2 + $0x30] sm:$0xff]
    %v898 = vld [vmem:[#allocation2 + $0x38] sm:$0xff]
    %v899 = vld [vmem:[#allocation2 + $0x40] sm:$0xff]
    %v900 = vld [vmem:[#allocation2 + $0x48] sm:$0xff]
    %v901 = vld [vmem:[#allocation2 + $0x50] sm:$0xff]
    %v902 = vld [vmem:[#allocation2 + $0x58] sm:$0xff]
    %v903 = vld [vmem:[#allocation2 + $0x60] sm:$0xff]
    %v904 = vld [vmem:[#allocation2 + $0x68] sm:$0xff]
    %v905 = vld [vmem:[#allocation2 + $0x70] sm:$0xff]
    %v906 = vld [vmem:[#allocation2 + $0x78] sm:$0xff]
    %v907 = vld [vmem:[#allocation2 + $0x80] sm:$0xff]
    %v908 = vld [vmem:[#allocation2 + $0x88] sm:$0xff]
    %v909 = vld [vmem:[#allocation2 + $0x90] sm:$0xff]
    %v910 = vld [vmem:[#allocation2 + $0x98] sm:$0xff]
    %v911 = vld [vmem:[#allocation2 + $0xa0] sm:$0xff]
    %v912 = vld [vmem:[#allocation2 + $0xa8] sm:$0xff]
    %v913 = vld [vmem:[#allocation2 + $0xb0] sm:$0xff]
    %v914 = vld [vmem:[#allocation2 + $0xb8] sm:$0xff]
    %v915 = vld [vmem:[#allocation2 + $0xc0] sm:$0xff]
    %v916 = vld [vmem:[#allocation2 + $0xc8] sm:$0xff]
    %v917 = vld [vmem:[#allocation2 + $0xd0] sm:$0xff]
    %v918 = vld [vmem:[#allocation2 + $0xd8] sm:$0xff]
    %v919 = vld [vmem:[#allocation2 + $0xe0] sm:$0xff]
    %v920 = vld [vmem:[#allocation2 + $0xe8] sm:$0xff]
    %v921 = vld [vmem:[#allocation2 + $0xf0] sm:$0xff]
    %v922 = vld [vmem:[#allocation2 + $0xf8] sm:$0xff]
    %v923 = vld [vmem:[#allocation2 + $0x100] sm:$0xff]
    %v924 = vld [vmem:[#allocation2 + $0x108] sm:$0xff]
    %v925 = vld [vmem:[#allocation2 + $0x110] sm:$0xff]
    %v926 = vld [vmem:[#allocation2 + $0x118] sm:$0xff]
    %v927 = vld [vmem:[#allocation2 + $0x120] sm:$0xff]
    %v928 = vld [vmem:[#allocation2 + $0x128] sm:$0xff]
    %v929 = vld [vmem:[#allocation2 + $0x130] sm:$0xff]
    %v930 = vld [vmem:[#allocation2 + $0x138] sm:$0xff]
    %v931 = vld [vmem:[#allocation2 + $0x140] sm:$0xff]
    %v932 = vld [vmem:[#allocation2 + $0x148] sm:$0xff]
    %v933 = vld [vmem:[#allocation2 + $0x150] sm:$0xff]
    %v934 = vld [vmem:[#allocation2 + $0x158] sm:$0xff]
    %v935 = vld [vmem:[#allocation2 + $0x160] sm:$0xff]
    %v936 = vld [vmem:[#allocation2 + $0x168] sm:$0xff]
    %v937 = vld [vmem:[#allocation2 + $0x170] sm:$0xff]
    %v938 = vld [vmem:[#allocation2 + $0x178] sm:$0xff]
    %v939 = vld [vmem:[#allocation2 + $0x180] sm:$0xff]
    %v940 = vld [vmem:[#allocation2 + $0x188] sm:$0xff]
    %v941 = vld [vmem:[#allocation2 + $0x190] sm:$0xff]
    %v942 = vld [vmem:[#allocation2 + $0x198] sm:$0xff]
    %v943 = vld [vmem:[#allocation2 + $0x1a0] sm:$0xff]
    %v944 = vld [vmem:[#allocation2 + $0x1a8] sm:$0xff]
    %v945 = vld [vmem:[#allocation2 + $0x1b0] sm:$0xff]
    %v946 = vld [vmem:[#allocation2 + $0x1b8] sm:$0xff]
    %v947 = vld [vmem:[#allocation2 + $0x1c0] sm:$0xff]
    %v948 = vld [vmem:[#allocation2 + $0x1c8] sm:$0xff]
    %v949 = vld [vmem:[#allocation2 + $0x1d0] sm:$0xff]
    %v950 = vld [vmem:[#allocation2 + $0x1d8] sm:$0xff]
    %v951 = vld [vmem:[#allocation2 + $0x1e0] sm:$0xff]
    %v952 = vld [vmem:[#allocation2 + $0x1e8] sm:$0xff]
    %v953 = vld [vmem:[#allocation2 + $0x1f0] sm:$0xff]
    %v954 = vld [vmem:[#allocation2 + $0x1f8] sm:$0xff]
    %v955 = vld [vmem:[%s2] sm:$0x1]
    %v957 = vlaneseq
    %v958 = vshrl.u32 %v957, 7
    %v959 = vsub.s32 0, %v958
    %v960 = vrot.slane %v955, %v959
    %v962 = vadd.f32 %v891, %v960
    %v963 = vadd.f32 %v892, %v960
    %v964 = vadd.f32 %v893, %v960
    %v965 = vadd.f32 %v894, %v960
    %v966 = vadd.f32 %v895, %v960
    %v967 = vadd.f32 %v896, %v960
    %v968 = vadd.f32 %v897, %v960
    %v969 = vadd.f32 %v898, %v960
    %v970 = vadd.f32 %v899, %v960
    %v971 = vadd.f32 %v900, %v960
    %v972 = vadd.f32 %v901, %v960
    %v973 = vadd.f32 %v902, %v960
    %v974 = vadd.f32 %v903, %v960
    %v975 = vadd.f32 %v904, %v960
    %v976 = vadd.f32 %v905, %v960
    %v977 = vadd.f32 %v906, %v960
    %v978 = vadd.f32 %v907, %v960
    %v979 = vadd.f32 %v908, %v960
    %v980 = vadd.f32 %v909, %v960
    %v981 = vadd.f32 %v910, %v960
    %v982 = vadd.f32 %v911, %v960
    %v983 = vadd.f32 %v912, %v960
    %v984 = vadd.f32 %v913, %v960
    %v985 = vadd.f32 %v914, %v960
    %v986 = vadd.f32 %v915, %v960
    %v987 = vadd.f32 %v916, %v960
    %v988 = vadd.f32 %v917, %v960
    %v989 = vadd.f32 %v918, %v960
    %v990 = vadd.f32 %v919, %v960
    %v991 = vadd.f32 %v920, %v960
    %v992 = vadd.f32 %v921, %v960
    %v993 = vadd.f32 %v922, %v960
    %v994 = vadd.f32 %v923, %v960
    %v995 = vadd.f32 %v924, %v960
    %v996 = vadd.f32 %v925, %v960
    %v997 = vadd.f32 %v926, %v960
    %v998 = vadd.f32 %v927, %v960
    %v999 = vadd.f32 %v928, %v960
    %v1000 = vadd.f32 %v929, %v960
    %v1001 = vadd.f32 %v930, %v960
    %v1002 = vadd.f32 %v931, %v960
    %v1003 = vadd.f32 %v932, %v960
    %v1004 = vadd.f32 %v933, %v960
    %v1005 = vadd.f32 %v934, %v960
    %v1006 = vadd.f32 %v935, %v960
    %v1007 = vadd.f32 %v936, %v960
    %v1008 = vadd.f32 %v937, %v960
    %v1009 = vadd.f32 %v938, %v960
    %v1010 = vadd.f32 %v939, %v960
    %v1011 = vadd.f32 %v940, %v960
    %v1012 = vadd.f32 %v941, %v960
    %v1013 = vadd.f32 %v942, %v960
    %v1014 = vadd.f32 %v943, %v960
    %v1015 = vadd.f32 %v944, %v960
    %v1016 = vadd.f32 %v945, %v960
    %v1017 = vadd.f32 %v946, %v960
    %v1018 = vadd.f32 %v947, %v960
    %v1019 = vadd.f32 %v948, %v960
    %v1020 = vadd.f32 %v949, %v960
    %v1021 = vadd.f32 %v950, %v960
    %v1022 = vadd.f32 %v951, %v960
    %v1023 = vadd.f32 %v952, %v960
    %v1024 = vadd.f32 %v953, %v960
    %v1025 = vadd.f32 %v954, %v960
    %v1026 = vpack.c.bf16 %v963, %v962
    %v1027 = vpack.c.bf16 %v965, %v964
    %v1028 = vpack.c.bf16 %v967, %v966
    %v1029 = vpack.c.bf16 %v969, %v968
    %v1030 = vpack.c.bf16 %v971, %v970
    %v1031 = vpack.c.bf16 %v973, %v972
    %v1032 = vpack.c.bf16 %v975, %v974
    %v1033 = vpack.c.bf16 %v977, %v976
    %v1034 = vpack.c.bf16 %v979, %v978
    %v1035 = vpack.c.bf16 %v981, %v980
    %v1036 = vpack.c.bf16 %v983, %v982
    %v1037 = vpack.c.bf16 %v985, %v984
    %v1038 = vpack.c.bf16 %v987, %v986
    %v1039 = vpack.c.bf16 %v989, %v988
    %v1040 = vpack.c.bf16 %v991, %v990
    %v1041 = vpack.c.bf16 %v993, %v992
    %v1042 = vpack.c.bf16 %v995, %v994
    %v1043 = vpack.c.bf16 %v997, %v996
    %v1044 = vpack.c.bf16 %v999, %v998
    %v1045 = vpack.c.bf16 %v1001, %v1000
    %v1046 = vpack.c.bf16 %v1003, %v1002
    %v1047 = vpack.c.bf16 %v1005, %v1004
    %v1048 = vpack.c.bf16 %v1007, %v1006
    %v1049 = vpack.c.bf16 %v1009, %v1008
    %v1050 = vpack.c.bf16 %v1011, %v1010
    %v1051 = vpack.c.bf16 %v1013, %v1012
    %v1052 = vpack.c.bf16 %v1015, %v1014
    %v1053 = vpack.c.bf16 %v1017, %v1016
    %v1054 = vpack.c.bf16 %v1019, %v1018
    %v1055 = vpack.c.bf16 %v1021, %v1020
    %v1056 = vpack.c.bf16 %v1023, %v1022
    %v1057 = vpack.c.bf16 %v1025, %v1024
    %v1090 = vunpack.c.l.b16 %v1026
    %v1091 = vunpack.c.h.b16 %v1026
    %v1092 = vunpack.c.l.b16 %v1027
    %v1093 = vunpack.c.h.b16 %v1027
    %v1094 = vunpack.c.l.b16 %v1028
    %v1095 = vunpack.c.h.b16 %v1028
    %v1096 = vunpack.c.l.b16 %v1029
    %v1097 = vunpack.c.h.b16 %v1029
    %v1098 = vunpack.c.l.b16 %v1030
    %v1099 = vunpack.c.h.b16 %v1030
    %v1100 = vunpack.c.l.b16 %v1031
    %v1101 = vunpack.c.h.b16 %v1031
    %v1102 = vunpack.c.l.b16 %v1032
    %v1103 = vunpack.c.h.b16 %v1032
    %v1104 = vunpack.c.l.b16 %v1033
    %v1105 = vunpack.c.h.b16 %v1033
    %v1106 = vunpack.c.l.b16 %v1034
    %v1107 = vunpack.c.h.b16 %v1034
    %v1108 = vunpack.c.l.b16 %v1035
    %v1109 = vunpack.c.h.b16 %v1035
    %v1110 = vunpack.c.l.b16 %v1036
    %v1111 = vunpack.c.h.b16 %v1036
    %v1112 = vunpack.c.l.b16 %v1037
    %v1113 = vunpack.c.h.b16 %v1037
    %v1114 = vunpack.c.l.b16 %v1038
    %v1115 = vunpack.c.h.b16 %v1038
    %v1116 = vunpack.c.l.b16 %v1039
    %v1117 = vunpack.c.h.b16 %v1039
    %v1118 = vunpack.c.l.b16 %v1040
    %v1119 = vunpack.c.h.b16 %v1040
    %v1120 = vunpack.c.l.b16 %v1041
    %v1121 = vunpack.c.h.b16 %v1041
    %v1122 = vunpack.c.l.b16 %v1042
    %v1123 = vunpack.c.h.b16 %v1042
    %v1124 = vunpack.c.l.b16 %v1043
    %v1125 = vunpack.c.h.b16 %v1043
    %v1126 = vunpack.c.l.b16 %v1044
    %v1127 = vunpack.c.h.b16 %v1044
    %v1128 = vunpack.c.l.b16 %v1045
    %v1129 = vunpack.c.h.b16 %v1045
    %v1130 = vunpack.c.l.b16 %v1046
    %v1131 = vunpack.c.h.b16 %v1046
    %v1132 = vunpack.c.l.b16 %v1047
    %v1133 = vunpack.c.h.b16 %v1047
    %v1134 = vunpack.c.l.b16 %v1048
    %v1135 = vunpack.c.h.b16 %v1048
    %v1136 = vunpack.c.l.b16 %v1049
    %v1137 = vunpack.c.h.b16 %v1049
    %v1138 = vunpack.c.l.b16 %v1050
    %v1139 = vunpack.c.h.b16 %v1050
    %v1140 = vunpack.c.l.b16 %v1051
    %v1141 = vunpack.c.h.b16 %v1051
    %v1142 = vunpack.c.l.b16 %v1052
    %v1143 = vunpack.c.h.b16 %v1052
    %v1144 = vunpack.c.l.b16 %v1053
    %v1145 = vunpack.c.h.b16 %v1053
    %v1146 = vunpack.c.l.b16 %v1054
    %v1147 = vunpack.c.h.b16 %v1054
    %v1148 = vunpack.c.l.b16 %v1055
    %v1149 = vunpack.c.h.b16 %v1055
    %v1150 = vunpack.c.l.b16 %v1056
    %v1151 = vunpack.c.h.b16 %v1056
    %v1152 = vunpack.c.l.b16 %v1057
    %v1153 = vunpack.c.h.b16 %v1057
    %v1154 = vpack.c.b16 %v1090, %v1090
    %v1155 = vpack.c.b16 %v1091, %v1091
    %v1156 = vpack.c.b16 %v1092, %v1092
    %v1157 = vpack.c.b16 %v1093, %v1093
    %v1158 = vpack.c.b16 %v1094, %v1094
    %v1159 = vpack.c.b16 %v1095, %v1095
    %v1160 = vpack.c.b16 %v1096, %v1096
    %v1161 = vpack.c.b16 %v1097, %v1097
    %v1162 = vpack.c.b16 %v1098, %v1098
    %v1163 = vpack.c.b16 %v1099, %v1099
    %v1164 = vpack.c.b16 %v1100, %v1100
    %v1165 = vpack.c.b16 %v1101, %v1101
    %v1166 = vpack.c.b16 %v1102, %v1102
    %v1167 = vpack.c.b16 %v1103, %v1103
    %v1168 = vpack.c.b16 %v1104, %v1104
    %v1169 = vpack.c.b16 %v1105, %v1105
    %v1170 = vpack.c.b16 %v1106, %v1106
    %v1171 = vpack.c.b16 %v1107, %v1107
    %v1172 = vpack.c.b16 %v1108, %v1108
    %v1173 = vpack.c.b16 %v1109, %v1109
    %v1174 = vpack.c.b16 %v1110, %v1110
    %v1175 = vpack.c.b16 %v1111, %v1111
    %v1176 = vpack.c.b16 %v1112, %v1112
    %v1177 = vpack.c.b16 %v1113, %v1113
    %v1178 = vpack.c.b16 %v1114, %v1114
    %v1179 = vpack.c.b16 %v1115, %v1115
    %v1180 = vpack.c.b16 %v1116, %v1116
    %v1181 = vpack.c.b16 %v1117, %v1117
    %v1182 = vpack.c.b16 %v1118, %v1118
    %v1183 = vpack.c.b16 %v1119, %v1119
    %v1184 = vpack.c.b16 %v1120, %v1120
    %v1185 = vpack.c.b16 %v1121, %v1121
    %v1186 = vpack.c.b16 %v1122, %v1122
    %v1187 = vpack.c.b16 %v1123, %v1123
    %v1188 = vpack.c.b16 %v1124, %v1124
    %v1189 = vpack.c.b16 %v1125, %v1125
    %v1190 = vpack.c.b16 %v1126, %v1126
    %v1191 = vpack.c.b16 %v1127, %v1127
    %v1192 = vpack.c.b16 %v1128, %v1128
    %v1193 = vpack.c.b16 %v1129, %v1129
    %v1194 = vpack.c.b16 %v1130, %v1130
    %v1195 = vpack.c.b16 %v1131, %v1131
    %v1196 = vpack.c.b16 %v1132, %v1132
    %v1197 = vpack.c.b16 %v1133, %v1133
    %v1198 = vpack.c.b16 %v1134, %v1134
    %v1199 = vpack.c.b16 %v1135, %v1135
    %v1200 = vpack.c.b16 %v1136, %v1136
    %v1201 = vpack.c.b16 %v1137, %v1137
    %v1202 = vpack.c.b16 %v1138, %v1138
    %v1203 = vpack.c.b16 %v1139, %v1139
    %v1204 = vpack.c.b16 %v1140, %v1140
    %v1205 = vpack.c.b16 %v1141, %v1141
    %v1206 = vpack.c.b16 %v1142, %v1142
    %v1207 = vpack.c.b16 %v1143, %v1143
    %v1208 = vpack.c.b16 %v1144, %v1144
    %v1209 = vpack.c.b16 %v1145, %v1145
    %v1210 = vpack.c.b16 %v1146, %v1146
    %v1211 = vpack.c.b16 %v1147, %v1147
    %v1212 = vpack.c.b16 %v1148, %v1148
    %v1213 = vpack.c.b16 %v1149, %v1149
    %v1214 = vpack.c.b16 %v1150, %v1150
    %v1215 = vpack.c.b16 %v1151, %v1151
    %v1216 = vpack.c.b16 %v1152, %v1152
    %v1217 = vpack.c.b16 %v1153, %v1153
    %vm1282 = vcmask 125952
    %1283 = vst.msk [vmem:[%s3] sm:$0xf] %vm1282, %v1154
    %1284 = vst.msk [vmem:[%s3 + $0x4] sm:$0xf] %vm1282, %v1155
    %1285 = vst.msk [vmem:[%s3 + $0x8] sm:$0xf] %vm1282, %v1156
    %1286 = vst.msk [vmem:[%s3 + $0xc] sm:$0xf] %vm1282, %v1157
    %1287 = vst.msk [vmem:[%s3 + $0x10] sm:$0xf] %vm1282, %v1158
    %1288 = vst.msk [vmem:[%s3 + $0x14] sm:$0xf] %vm1282, %v1159
    %1289 = vst.msk [vmem:[%s3 + $0x18] sm:$0xf] %vm1282, %v1160
    %1290 = vst.msk [vmem:[%s3 + $0x1c] sm:$0xf] %vm1282, %v1161
    %1291 = vst.msk [vmem:[%s3 + $0x20] sm:$0xf] %vm1282, %v1162
    %1292 = vst.msk [vmem:[%s3 + $0x24] sm:$0xf] %vm1282, %v1163
    %1293 = vst.msk [vmem:[%s3 + $0x28] sm:$0xf] %vm1282, %v1164
    %1294 = vst.msk [vmem:[%s3 + $0x2c] sm:$0xf] %vm1282, %v1165
    %1295 = vst.msk [vmem:[%s3 + $0x30] sm:$0xf] %vm1282, %v1166
    %1296 = vst.msk [vmem:[%s3 + $0x34] sm:$0xf] %vm1282, %v1167
    %1297 = vst.msk [vmem:[%s3 + $0x38] sm:$0xf] %vm1282, %v1168
    %1298 = vst.msk [vmem:[%s3 + $0x3c] sm:$0xf] %vm1282, %v1169
    %1299 = vst.msk [vmem:[%s3 + $0x40] sm:$0xf] %vm1282, %v1170
    %1300 = vst.msk [vmem:[%s3 + $0x44] sm:$0xf] %vm1282, %v1171
    %1301 = vst.msk [vmem:[%s3 + $0x48] sm:$0xf] %vm1282, %v1172
    %1302 = vst.msk [vmem:[%s3 + $0x4c] sm:$0xf] %vm1282, %v1173
    %1303 = vst.msk [vmem:[%s3 + $0x50] sm:$0xf] %vm1282, %v1174
    %1304 = vst.msk [vmem:[%s3 + $0x54] sm:$0xf] %vm1282, %v1175
    %1305 = vst.msk [vmem:[%s3 + $0x58] sm:$0xf] %vm1282, %v1176
    %1306 = vst.msk [vmem:[%s3 + $0x5c] sm:$0xf] %vm1282, %v1177
    %1307 = vst.msk [vmem:[%s3 + $0x60] sm:$0xf] %vm1282, %v1178
    %1308 = vst.msk [vmem:[%s3 + $0x64] sm:$0xf] %vm1282, %v1179
    %1309 = vst.msk [vmem:[%s3 + $0x68] sm:$0xf] %vm1282, %v1180
    %1310 = vst.msk [vmem:[%s3 + $0x6c] sm:$0xf] %vm1282, %v1181
    %1311 = vst.msk [vmem:[%s3 + $0x70] sm:$0xf] %vm1282, %v1182
    %1312 = vst.msk [vmem:[%s3 + $0x74] sm:$0xf] %vm1282, %v1183
    %1313 = vst.msk [vmem:[%s3 + $0x78] sm:$0xf] %vm1282, %v1184
    %1314 = vst.msk [vmem:[%s3 + $0x7c] sm:$0xf] %vm1282, %v1185
    %1315 = vst.msk [vmem:[%s3 + $0x80] sm:$0xf] %vm1282, %v1186
    %1316 = vst.msk [vmem:[%s3 + $0x84] sm:$0xf] %vm1282, %v1187
    %1317 = vst.msk [vmem:[%s3 + $0x88] sm:$0xf] %vm1282, %v1188
    %1318 = vst.msk [vmem:[%s3 + $0x8c] sm:$0xf] %vm1282, %v1189
    %1319 = vst.msk [vmem:[%s3 + $0x90] sm:$0xf] %vm1282, %v1190
    %1320 = vst.msk [vmem:[%s3 + $0x94] sm:$0xf] %vm1282, %v1191
    %1321 = vst.msk [vmem:[%s3 + $0x98] sm:$0xf] %vm1282, %v1192
    %1322 = vst.msk [vmem:[%s3 + $0x9c] sm:$0xf] %vm1282, %v1193
    %1323 = vst.msk [vmem:[%s3 + $0xa0] sm:$0xf] %vm1282, %v1194
    %1324 = vst.msk [vmem:[%s3 + $0xa4] sm:$0xf] %vm1282, %v1195
    %1325 = vst.msk [vmem:[%s3 + $0xa8] sm:$0xf] %vm1282, %v1196
    %1326 = vst.msk [vmem:[%s3 + $0xac] sm:$0xf] %vm1282, %v1197
    %1327 = vst.msk [vmem:[%s3 + $0xb0] sm:$0xf] %vm1282, %v1198
    %1328 = vst.msk [vmem:[%s3 + $0xb4] sm:$0xf] %vm1282, %v1199
    %1329 = vst.msk [vmem:[%s3 + $0xb8] sm:$0xf] %vm1282, %v1200
    %1330 = vst.msk [vmem:[%s3 + $0xbc] sm:$0xf] %vm1282, %v1201
    %1331 = vst.msk [vmem:[%s3 + $0xc0] sm:$0xf] %vm1282, %v1202
    %1332 = vst.msk [vmem:[%s3 + $0xc4] sm:$0xf] %vm1282, %v1203
    %1333 = vst.msk [vmem:[%s3 + $0xc8] sm:$0xf] %vm1282, %v1204
    %1334 = vst.msk [vmem:[%s3 + $0xcc] sm:$0xf] %vm1282, %v1205
    %1335 = vst.msk [vmem:[%s3 + $0xd0] sm:$0xf] %vm1282, %v1206
    %1336 = vst.msk [vmem:[%s3 + $0xd4] sm:$0xf] %vm1282, %v1207
    %1337 = vst.msk [vmem:[%s3 + $0xd8] sm:$0xf] %vm1282, %v1208
    %1338 = vst.msk [vmem:[%s3 + $0xdc] sm:$0xf] %vm1282, %v1209
    %1339 = vst.msk [vmem:[%s3 + $0xe0] sm:$0xf] %vm1282, %v1210
    %1340 = vst.msk [vmem:[%s3 + $0xe4] sm:$0xf] %vm1282, %v1211
    %1341 = vst.msk [vmem:[%s3 + $0xe8] sm:$0xf] %vm1282, %v1212
    %1342 = vst.msk [vmem:[%s3 + $0xec] sm:$0xf] %vm1282, %v1213
    %1343 = vst.msk [vmem:[%s3 + $0xf0] sm:$0xf] %vm1282, %v1214
    %1344 = vst.msk [vmem:[%s3 + $0xf4] sm:$0xf] %vm1282, %v1215
    %1345 = vst.msk [vmem:[%s3 + $0xf8] sm:$0xf] %vm1282, %v1216
    %1346 = vst.msk [vmem:[%s3 + $0xfc] sm:$0xf] %vm1282, %v1217
    %v1347 = vsel %vm823, %v962, 0.0
    %v1348 = vsel %vm823, %v963, 0.0
    %v1349 = vadd.f32 %v1347, %v1348
    %v1350 = vsel %vm823, %v964, 0.0
    %v1351 = vadd.f32 %v1349, %v1350
    %v1352 = vsel %vm823, %v965, 0.0
    %v1353 = vadd.f32 %v1351, %v1352
    %v1354 = vsel %vm823, %v966, 0.0
    %v1355 = vadd.f32 %v1353, %v1354
    %v1356 = vsel %vm823, %v967, 0.0
    %v1357 = vadd.f32 %v1355, %v1356
    %v1358 = vsel %vm823, %v968, 0.0
    %v1359 = vadd.f32 %v1357, %v1358
    %v1360 = vsel %vm823, %v969, 0.0
    %v1361 = vadd.f32 %v1359, %v1360
    %v1362 = vsel %vm823, %v970, 0.0
    %v1363 = vadd.f32 %v1361, %v1362
    %v1364 = vsel %vm823, %v971, 0.0
    %v1365 = vadd.f32 %v1363, %v1364
    %v1366 = vsel %vm823, %v972, 0.0
    %v1367 = vadd.f32 %v1365, %v1366
    %v1368 = vsel %vm823, %v973, 0.0
    %v1369 = vadd.f32 %v1367, %v1368
    %v1370 = vsel %vm823, %v974, 0.0
    %v1371 = vadd.f32 %v1369, %v1370
    %v1372 = vsel %vm823, %v975, 0.0
    %v1373 = vadd.f32 %v1371, %v1372
    %v1374 = vsel %vm823, %v976, 0.0
    %v1375 = vadd.f32 %v1373, %v1374
    %v1376 = vsel %vm823, %v977, 0.0
    %v1377 = vadd.f32 %v1375, %v1376
    %v1378 = vsel %vm823, %v978, 0.0
    %v1379 = vadd.f32 %v1377, %v1378
    %v1380 = vsel %vm823, %v979, 0.0
    %v1381 = vadd.f32 %v1379, %v1380
    %v1382 = vsel %vm823, %v980, 0.0
    %v1383 = vadd.f32 %v1381, %v1382
    %v1384 = vsel %vm823, %v981, 0.0
    %v1385 = vadd.f32 %v1383, %v1384
    %v1386 = vsel %vm823, %v982, 0.0
    %v1387 = vadd.f32 %v1385, %v1386
    %v1388 = vsel %vm823, %v983, 0.0
    %v1389 = vadd.f32 %v1387, %v1388
    %v1390 = vsel %vm823, %v984, 0.0
    %v1391 = vadd.f32 %v1389, %v1390
    %v1392 = vsel %vm823, %v985, 0.0
    %v1393 = vadd.f32 %v1391, %v1392
    %v1394 = vsel %vm823, %v986, 0.0
    %v1395 = vadd.f32 %v1393, %v1394
    %v1396 = vsel %vm823, %v987, 0.0
    %v1397 = vadd.f32 %v1395, %v1396
    %v1398 = vsel %vm823, %v988, 0.0
    %v1399 = vadd.f32 %v1397, %v1398
    %v1400 = vsel %vm823, %v989, 0.0
    %v1401 = vadd.f32 %v1399, %v1400
    %v1402 = vsel %vm823, %v990, 0.0
    %v1403 = vadd.f32 %v1401, %v1402
    %v1404 = vsel %vm823, %v991, 0.0
    %v1405 = vadd.f32 %v1403, %v1404
    %v1406 = vsel %vm823, %v992, 0.0
    %v1407 = vadd.f32 %v1405, %v1406
    %v1408 = vsel %vm823, %v993, 0.0
    %v1409 = vadd.f32 %v1407, %v1408
    %v1410 = vsel %vm823, %v994, 0.0
    %v1411 = vadd.f32 %v1409, %v1410
    %v1412 = vsel %vm823, %v995, 0.0
    %v1413 = vadd.f32 %v1411, %v1412
    %v1414 = vsel %vm823, %v996, 0.0
    %v1415 = vadd.f32 %v1413, %v1414
    %v1416 = vsel %vm823, %v997, 0.0
    %v1417 = vadd.f32 %v1415, %v1416
    %v1418 = vsel %vm823, %v998, 0.0
    %v1419 = vadd.f32 %v1417, %v1418
    %v1420 = vsel %vm823, %v999, 0.0
    %v1421 = vadd.f32 %v1419, %v1420
    %v1422 = vsel %vm823, %v1000, 0.0
    %v1423 = vadd.f32 %v1421, %v1422
    %v1424 = vsel %vm823, %v1001, 0.0
    %v1425 = vadd.f32 %v1423, %v1424
    %v1426 = vsel %vm823, %v1002, 0.0
    %v1427 = vadd.f32 %v1425, %v1426
    %v1428 = vsel %vm823, %v1003, 0.0
    %v1429 = vadd.f32 %v1427, %v1428
    %v1430 = vsel %vm823, %v1004, 0.0
    %v1431 = vadd.f32 %v1429, %v1430
    %v1432 = vsel %vm823, %v1005, 0.0
    %v1433 = vadd.f32 %v1431, %v1432
    %v1434 = vsel %vm823, %v1006, 0.0
    %v1435 = vadd.f32 %v1433, %v1434
    %v1436 = vsel %vm823, %v1007, 0.0
    %v1437 = vadd.f32 %v1435, %v1436
    %v1438 = vsel %vm823, %v1008, 0.0
    %v1439 = vadd.f32 %v1437, %v1438
    %v1440 = vsel %vm823, %v1009, 0.0
    %v1441 = vadd.f32 %v1439, %v1440
    %v1442 = vsel %vm823, %v1010, 0.0
    %v1443 = vadd.f32 %v1441, %v1442
    %v1444 = vsel %vm823, %v1011, 0.0
    %v1445 = vadd.f32 %v1443, %v1444
    %v1446 = vsel %vm823, %v1012, 0.0
    %v1447 = vadd.f32 %v1445, %v1446
    %v1448 = vsel %vm823, %v1013, 0.0
    %v1449 = vadd.f32 %v1447, %v1448
    %v1450 = vsel %vm823, %v1014, 0.0
    %v1451 = vadd.f32 %v1449, %v1450
    %v1452 = vsel %vm823, %v1015, 0.0
    %v1453 = vadd.f32 %v1451, %v1452
    %v1454 = vsel %vm823, %v1016, 0.0
    %v1455 = vadd.f32 %v1453, %v1454
    %v1456 = vsel %vm823, %v1017, 0.0
    %v1457 = vadd.f32 %v1455, %v1456
    %v1458 = vsel %vm823, %v1018, 0.0
    %v1459 = vadd.f32 %v1457, %v1458
    %v1460 = vsel %vm823, %v1019, 0.0
    %v1461 = vadd.f32 %v1459, %v1460
    %v1462 = vsel %vm823, %v1020, 0.0
    %v1463 = vadd.f32 %v1461, %v1462
    %v1464 = vsel %vm823, %v1021, 0.0
    %v1465 = vadd.f32 %v1463, %v1464
    %v1466 = vsel %vm823, %v1022, 0.0
    %v1467 = vadd.f32 %v1465, %v1466
    %v1468 = vsel %vm823, %v1023, 0.0
    %v1469 = vadd.f32 %v1467, %v1468
    %v1470 = vsel %vm823, %v1024, 0.0
    %v1471 = vadd.f32 %v1469, %v1470
    %v1472 = vsel %vm823, %v1025, 0.0
    %v1473 = vadd.f32 %v1471, %v1472
    %v1474 = vrot.slane %v1473, 4
    %v1475 = vadd.f32 %v1473, %v1474
    %v1476 = vrot.slane %v1475, 2
    %v1477 = vadd.f32 %v1475, %v1476
    %v1478 = vrot.slane %v1477, 1
    %v1479 = vadd.f32 %v1477, %v1478
    %v1480 = vmul.f32 %v962, %v962
    %v1481 = vmul.f32 %v963, %v963
    %v1482 = vmul.f32 %v964, %v964
    %v1483 = vmul.f32 %v965, %v965
    %v1484 = vmul.f32 %v966, %v966
    %v1485 = vmul.f32 %v967, %v967
    %v1486 = vmul.f32 %v968, %v968
    %v1487 = vmul.f32 %v969, %v969
    %v1488 = vmul.f32 %v970, %v970
    %v1489 = vmul.f32 %v971, %v971
    %v1490 = vmul.f32 %v972, %v972
    %v1491 = vmul.f32 %v973, %v973
    %v1492 = vmul.f32 %v974, %v974
    %v1493 = vmul.f32 %v975, %v975
    %v1494 = vmul.f32 %v976, %v976
    %v1495 = vmul.f32 %v977, %v977
    %v1496 = vmul.f32 %v978, %v978
    %v1497 = vmul.f32 %v979, %v979
    %v1498 = vmul.f32 %v980, %v980
    %v1499 = vmul.f32 %v981, %v981
    %v1500 = vmul.f32 %v982, %v982
    %v1501 = vmul.f32 %v983, %v983
    %v1502 = vmul.f32 %v984, %v984
    %v1503 = vmul.f32 %v985, %v985
    %v1504 = vmul.f32 %v986, %v986
    %v1505 = vmul.f32 %v987, %v987
    %v1506 = vmul.f32 %v988, %v988
    %v1507 = vmul.f32 %v989, %v989
    %v1508 = vmul.f32 %v990, %v990
    %v1509 = vmul.f32 %v991, %v991
    %v1510 = vmul.f32 %v992, %v992
    %v1511 = vmul.f32 %v993, %v993
    %v1512 = vmul.f32 %v994, %v994
    %v1513 = vmul.f32 %v995, %v995
    %v1514 = vmul.f32 %v996, %v996
    %v1515 = vmul.f32 %v997, %v997
    %v1516 = vmul.f32 %v998, %v998
    %v1517 = vmul.f32 %v999, %v999
    %v1518 = vmul.f32 %v1000, %v1000
    %v1519 = vmul.f32 %v1001, %v1001
    %v1520 = vmul.f32 %v1002, %v1002
    %v1521 = vmul.f32 %v1003, %v1003
    %v1522 = vmul.f32 %v1004, %v1004
    %v1523 = vmul.f32 %v1005, %v1005
    %v1524 = vmul.f32 %v1006, %v1006
    %v1525 = vmul.f32 %v1007, %v1007
    %v1526 = vmul.f32 %v1008, %v1008
    %v1527 = vmul.f32 %v1009, %v1009
    %v1528 = vmul.f32 %v1010, %v1010
    %v1529 = vmul.f32 %v1011, %v1011
    %v1530 = vmul.f32 %v1012, %v1012
    %v1531 = vmul.f32 %v1013, %v1013
    %v1532 = vmul.f32 %v1014, %v1014
    %v1533 = vmul.f32 %v1015, %v1015
    %v1534 = vmul.f32 %v1016, %v1016
    %v1535 = vmul.f32 %v1017, %v1017
    %v1536 = vmul.f32 %v1018, %v1018
    %v1537 = vmul.f32 %v1019, %v1019
    %v1538 = vmul.f32 %v1020, %v1020
    %v1539 = vmul.f32 %v1021, %v1021
    %v1540 = vmul.f32 %v1022, %v1022
    %v1541 = vmul.f32 %v1023, %v1023
    %v1542 = vmul.f32 %v1024, %v1024
    %v1543 = vmul.f32 %v1025, %v1025
    %v1544 = vsel %vm823, %v1480, 0.0
    %v1545 = vsel %vm823, %v1481, 0.0
    %v1546 = vadd.f32 %v1544, %v1545
    %v1547 = vsel %vm823, %v1482, 0.0
    %v1548 = vadd.f32 %v1546, %v1547
    %v1549 = vsel %vm823, %v1483, 0.0
    %v1550 = vadd.f32 %v1548, %v1549
    %v1551 = vsel %vm823, %v1484, 0.0
    %v1552 = vadd.f32 %v1550, %v1551
    %v1553 = vsel %vm823, %v1485, 0.0
    %v1554 = vadd.f32 %v1552, %v1553
    %v1555 = vsel %vm823, %v1486, 0.0
    %v1556 = vadd.f32 %v1554, %v1555
    %v1557 = vsel %vm823, %v1487, 0.0
    %v1558 = vadd.f32 %v1556, %v1557
    %v1559 = vsel %vm823, %v1488, 0.0
    %v1560 = vadd.f32 %v1558, %v1559
    %v1561 = vsel %vm823, %v1489, 0.0
    %v1562 = vadd.f32 %v1560, %v1561
    %v1563 = vsel %vm823, %v1490, 0.0
    %v1564 = vadd.f32 %v1562, %v1563
    %v1565 = vsel %vm823, %v1491, 0.0
    %v1566 = vadd.f32 %v1564, %v1565
    %v1567 = vsel %vm823, %v1492, 0.0
    %v1568 = vadd.f32 %v1566, %v1567
    %v1569 = vsel %vm823, %v1493, 0.0
    %v1570 = vadd.f32 %v1568, %v1569
    %v1571 = vsel %vm823, %v1494, 0.0
    %v1572 = vadd.f32 %v1570, %v1571
    %v1573 = vsel %vm823, %v1495, 0.0
    %v1574 = vadd.f32 %v1572, %v1573
    %v1575 = vsel %vm823, %v1496, 0.0
    %v1576 = vadd.f32 %v1574, %v1575
    %v1577 = vsel %vm823, %v1497, 0.0
    %v1578 = vadd.f32 %v1576, %v1577
    %v1579 = vsel %vm823, %v1498, 0.0
    %v1580 = vadd.f32 %v1578, %v1579
    %v1581 = vsel %vm823, %v1499, 0.0
    %v1582 = vadd.f32 %v1580, %v1581
    %v1583 = vsel %vm823, %v1500, 0.0
    %v1584 = vadd.f32 %v1582, %v1583
    %v1585 = vsel %vm823, %v1501, 0.0
    %v1586 = vadd.f32 %v1584, %v1585
    %v1587 = vsel %vm823, %v1502, 0.0
    %v1588 = vadd.f32 %v1586, %v1587
    %v1589 = vsel %vm823, %v1503, 0.0
    %v1590 = vadd.f32 %v1588, %v1589
    %v1591 = vsel %vm823, %v1504, 0.0
    %v1592 = vadd.f32 %v1590, %v1591
    %v1593 = vsel %vm823, %v1505, 0.0
    %v1594 = vadd.f32 %v1592, %v1593
    %v1595 = vsel %vm823, %v1506, 0.0
    %v1596 = vadd.f32 %v1594, %v1595
    %v1597 = vsel %vm823, %v1507, 0.0
    %v1598 = vadd.f32 %v1596, %v1597
    %v1599 = vsel %vm823, %v1508, 0.0
    %v1600 = vadd.f32 %v1598, %v1599
    %v1601 = vsel %vm823, %v1509, 0.0
    %v1602 = vadd.f32 %v1600, %v1601
    %v1603 = vsel %vm823, %v1510, 0.0
    %v1604 = vadd.f32 %v1602, %v1603
    %v1605 = vsel %vm823, %v1511, 0.0
    %v1606 = vadd.f32 %v1604, %v1605
    %v1607 = vsel %vm823, %v1512, 0.0
    %v1608 = vadd.f32 %v1606, %v1607
    %v1609 = vsel %vm823, %v1513, 0.0
    %v1610 = vadd.f32 %v1608, %v1609
    %v1611 = vsel %vm823, %v1514, 0.0
    %v1612 = vadd.f32 %v1610, %v1611
    %v1613 = vsel %vm823, %v1515, 0.0
    %v1614 = vadd.f32 %v1612, %v1613
    %v1615 = vsel %vm823, %v1516, 0.0
    %v1616 = vadd.f32 %v1614, %v1615
    %v1617 = vsel %vm823, %v1517, 0.0
    %v1618 = vadd.f32 %v1616, %v1617
    %v1619 = vsel %vm823, %v1518, 0.0
    %v1620 = vadd.f32 %v1618, %v1619
    %v1621 = vsel %vm823, %v1519, 0.0
    %v1622 = vadd.f32 %v1620, %v1621
    %v1623 = vsel %vm823, %v1520, 0.0
    %v1624 = vadd.f32 %v1622, %v1623
    %v1625 = vsel %vm823, %v1521, 0.0
    %v1626 = vadd.f32 %v1624, %v1625
    %v1627 = vsel %vm823, %v1522, 0.0
    %v1628 = vadd.f32 %v1626, %v1627
    %v1629 = vsel %vm823, %v1523, 0.0
    %v1630 = vadd.f32 %v1628, %v1629
    %v1631 = vsel %vm823, %v1524, 0.0
    %v1632 = vadd.f32 %v1630, %v1631
    %v1633 = vsel %vm823, %v1525, 0.0
    %v1634 = vadd.f32 %v1632, %v1633
    %v1635 = vsel %vm823, %v1526, 0.0
    %v1636 = vadd.f32 %v1634, %v1635
    %v1637 = vsel %vm823, %v1527, 0.0
    %v1638 = vadd.f32 %v1636, %v1637
    %v1639 = vsel %vm823, %v1528, 0.0
    %v1640 = vadd.f32 %v1638, %v1639
    %v1641 = vsel %vm823, %v1529, 0.0
    %v1642 = vadd.f32 %v1640, %v1641
    %v1643 = vsel %vm823, %v1530, 0.0
    %v1644 = vadd.f32 %v1642, %v1643
    %v1645 = vsel %vm823, %v1531, 0.0
    %v1646 = vadd.f32 %v1644, %v1645
    %v1647 = vsel %vm823, %v1532, 0.0
    %v1648 = vadd.f32 %v1646, %v1647
    %v1649 = vsel %vm823, %v1533, 0.0
    %v1650 = vadd.f32 %v1648, %v1649
    %v1651 = vsel %vm823, %v1534, 0.0
    %v1652 = vadd.f32 %v1650, %v1651
    %v1653 = vsel %vm823, %v1535, 0.0
    %v1654 = vadd.f32 %v1652, %v1653
    %v1655 = vsel %vm823, %v1536, 0.0
    %v1656 = vadd.f32 %v1654, %v1655
    %v1657 = vsel %vm823, %v1537, 0.0
    %v1658 = vadd.f32 %v1656, %v1657
    %v1659 = vsel %vm823, %v1538, 0.0
    %v1660 = vadd.f32 %v1658, %v1659
    %v1661 = vsel %vm823, %v1539, 0.0
    %v1662 = vadd.f32 %v1660, %v1661
    %v1663 = vsel %vm823, %v1540, 0.0
    %v1664 = vadd.f32 %v1662, %v1663
    %v1665 = vsel %vm823, %v1541, 0.0
    %v1666 = vadd.f32 %v1664, %v1665
    %v1667 = vsel %vm823, %v1542, 0.0
    %v1668 = vadd.f32 %v1666, %v1667
    %v1669 = vsel %vm823, %v1543, 0.0
    %v1670 = vadd.f32 %v1668, %v1669
    %v1671 = vrot.slane %v1670, 4
    %v1672 = vadd.f32 %v1670, %v1671
    %v1673 = vrot.slane %v1672, 2
    %v1674 = vadd.f32 %v1672, %v1673
    %v1675 = vrot.slane %v1674, 1
    %v1676 = vadd.f32 %v1674, %v1675
    %vm1677 = vcmask 1040384
    %v1678 = vsel %vm1677, %v1479, %v1676
    %vm1679 = vcmask 123904
    %1680 = vst.msk [vmem:[%s4] sm:$0x3] %vm1679, %v1678
  $region21: #{discriminator_forward.5} parent=0 // pred_fallthru
    _
  // Predicated region
  $region22: #{discriminator_forward.5} parent=0 // pred_check
    _
  $region23: #{discriminator_forward.5} parent=0 // pred_check_branch
    %1682 = sbr.rel (0) target = $region25
  $region24: #{discriminator_forward.5} parent=0 // pred_region
    _
  $region25: #{discriminator_forward.5} parent=0 // pred_fallthru
    _
  // Predicated region
  $region26: #{discriminator_forward.5} parent=0 // pred_check
    _
  $region27: #{discriminator_forward.5} parent=0 // pred_check_branch
    %1684 = sbr.rel (0) target = $region29
  $region28: #{discriminator_forward.5} parent=0 // pred_region
    _
  $region29: #{discriminator_forward.5} parent=0 // pred_fallthru
    _
  // Predicated region
  $region30: #{discriminator_forward.5} parent=0 // pred_check
    _
  $region31: #{discriminator_forward.5} parent=0 // pred_check_branch
    %1686 = sbr.rel (0) target = $region33
  $region32: #{discriminator_forward.5} parent=0 // pred_region
    _
  $region33: #{discriminator_forward.5} parent=0 // pred_fallthru
    _
  // Predicated region
  $region34: #{discriminator_forward.5} parent=0 // pred_check
    _
  $region35: #{discriminator_forward.5} parent=0 // pred_check_branch
    %1688 = sbr.rel (0) target = $region37
  $region36: #{discriminator_forward.5} parent=0 // pred_region
    _
  $region37: #{discriminator_forward.5} parent=0 // pred_fallthru
    _

// kernel: discriminator_forward.6
$region0: #{discriminator_forward.6}
  #allocation0 [shape = 'u32[]', space=smem, size = 0x4, offset = 0x4, fixed_abs, tag = 'smem constant byte address 0x4 - core index']
  #allocation1 [shape = 'u32[144,128]{1,0:T(1,128)}', space=vmem, size = 0x12000, scoped, tag = 'internal scratch']
  #allocation2 [shape = 'f32[128,32]{1,0:T(8,128)}', space=vmem, size = 0x10000, scoped, tag = 'scratch operand']
  %s0 = inlined_call_operand.vmem [shape: bf16[128,256], index: 0, kind: input, shape index: {}]
  %s1 = inlined_call_operand.vmem [shape: bf16[256,32], index: 1, kind: input, shape index: {}]
  %s2 = inlined_call_operand.vmem [shape: f32[1,32], index: 2, kind: input, shape index: {}]
  %s3 = inlined_call_operand.vmem [shape: bf16[128,32], index: 3, kind: output, shape index: {0}]
  %s4 = inlined_call_operand.vmem [shape: f32[1,2,32], index: 4, kind: output, shape index: {1}]
  %5 = xla_tuple %s3, %s4
  %s6 = sld [smem:[#allocation0]]
  $region38: #{discriminator_forward.6} parent=0
    _
  %s8 = ssub.s32 1, %s6
  %s9 = scalar_select 0, %s8, %s6
  // Predicated region
  $region2: #{discriminator_forward.6} parent=0 // pred_check
    _
  $region3: #{discriminator_forward.6} parent=0 // pred_check_branch
    %11 = sbr.rel (0) target = $region5
  $region4: #{discriminator_forward.6} parent=0 // pred_region
    _
  $region5: #{discriminator_forward.6} parent=0 // pred_fallthru
    _
  // Predicated region
  $region6: #{discriminator_forward.6} parent=0 // pred_check
    _
  $region7: #{discriminator_forward.6} parent=0 // pred_check_branch
    %13 = sbr.rel (0) target = $region9
  $region8: #{discriminator_forward.6} parent=0 // pred_region
    _
  $region9: #{discriminator_forward.6} parent=0 // pred_fallthru
    _
  // Predicated region
  $region10: #{discriminator_forward.6} parent=0 // pred_check
    _
  $region11: #{discriminator_forward.6} parent=0 // pred_check_branch
    %15 = sbr.rel (0) target = $region13
  $region12: #{discriminator_forward.6} parent=0 // pred_region
    _
  $region13: #{discriminator_forward.6} parent=0 // pred_fallthru
    _
  %p17 = scmp.eq.s32.totalorder 0, 0
  // Predicated region
  $region14: #{discriminator_forward.6} parent=0 // pred_check
    %p18 = pneg %p17
  $region15: #{discriminator_forward.6} parent=0 // pred_check_branch
    %20 = sbr.rel (%p18) target = $region17
  $region16: #{discriminator_forward.6} parent=0 // pred_region
    %vm21 = vcmask 261120
    %22 = vst.msk [vmem:[#allocation2] sm:$0xff] %vm21, 0.0
    %23 = vst.msk [vmem:[#allocation2 + $0x8] sm:$0xff] %vm21, 0.0
    %24 = vst.msk [vmem:[#allocation2 + $0x10] sm:$0xff] %vm21, 0.0
    %25 = vst.msk [vmem:[#allocation2 + $0x18] sm:$0xff] %vm21, 0.0
    %26 = vst.msk [vmem:[#allocation2 + $0x20] sm:$0xff] %vm21, 0.0
    %27 = vst.msk [vmem:[#allocation2 + $0x28] sm:$0xff] %vm21, 0.0
    %28 = vst.msk [vmem:[#allocation2 + $0x30] sm:$0xff] %vm21, 0.0
    %29 = vst.msk [vmem:[#allocation2 + $0x38] sm:$0xff] %vm21, 0.0
    %30 = vst.msk [vmem:[#allocation2 + $0x40] sm:$0xff] %vm21, 0.0
    %31 = vst.msk [vmem:[#allocation2 + $0x48] sm:$0xff] %vm21, 0.0
    %32 = vst.msk [vmem:[#allocation2 + $0x50] sm:$0xff] %vm21, 0.0
    %33 = vst.msk [vmem:[#allocation2 + $0x58] sm:$0xff] %vm21, 0.0
    %34 = vst.msk [vmem:[#allocation2 + $0x60] sm:$0xff] %vm21, 0.0
    %35 = vst.msk [vmem:[#allocation2 + $0x68] sm:$0xff] %vm21, 0.0
    %36 = vst.msk [vmem:[#allocation2 + $0x70] sm:$0xff] %vm21, 0.0
    %37 = vst.msk [vmem:[#allocation2 + $0x78] sm:$0xff] %vm21, 0.0
  $region17: #{discriminator_forward.6} parent=0 // pred_fallthru
    _
  %v38 = vld [vmem:[#allocation2] sm:$0xff]
  %v39 = vld [vmem:[#allocation2 + $0x8] sm:$0xff]
  %v40 = vld [vmem:[#allocation2 + $0x10] sm:$0xff]
  %v41 = vld [vmem:[#allocation2 + $0x18] sm:$0xff]
  %v42 = vld [vmem:[#allocation2 + $0x20] sm:$0xff]
  %v43 = vld [vmem:[#allocation2 + $0x28] sm:$0xff]
  %v44 = vld [vmem:[#allocation2 + $0x30] sm:$0xff]
  %v45 = vld [vmem:[#allocation2 + $0x38] sm:$0xff]
  %v46 = vld [vmem:[#allocation2 + $0x40] sm:$0xff]
  %v47 = vld [vmem:[#allocation2 + $0x48] sm:$0xff]
  %v48 = vld [vmem:[#allocation2 + $0x50] sm:$0xff]
  %v49 = vld [vmem:[#allocation2 + $0x58] sm:$0xff]
  %v50 = vld [vmem:[#allocation2 + $0x60] sm:$0xff]
  %v51 = vld [vmem:[#allocation2 + $0x68] sm:$0xff]
  %v52 = vld [vmem:[#allocation2 + $0x70] sm:$0xff]
  %v53 = vld [vmem:[#allocation2 + $0x78] sm:$0xff]
  %v54 = vld [vmem:[%s0] sm:$0xff]
  %v55 = vld [vmem:[%s0 + $0x8] sm:$0xff]
  %v56 = vld [vmem:[%s0 + $0x10] sm:$0xff]
  %v57 = vld [vmem:[%s0 + $0x18] sm:$0xff]
  %v58 = vld [vmem:[%s0 + $0x20] sm:$0xff]
  %v59 = vld [vmem:[%s0 + $0x28] sm:$0xff]
  %v60 = vld [vmem:[%s0 + $0x30] sm:$0xff]
  %v61 = vld [vmem:[%s0 + $0x38] sm:$0xff]
  %v62 = vld [vmem:[%s0 + $0x40] sm:$0xff]
  %v63 = vld [vmem:[%s0 + $0x48] sm:$0xff]
  %v64 = vld [vmem:[%s0 + $0x50] sm:$0xff]
  %v65 = vld [vmem:[%s0 + $0x58] sm:$0xff]
  %v66 = vld [vmem:[%s0 + $0x60] sm:$0xff]
  %v67 = vld [vmem:[%s0 + $0x68] sm:$0xff]
  %v68 = vld [vmem:[%s0 + $0x70] sm:$0xff]
  %v69 = vld [vmem:[%s0 + $0x78] sm:$0xff]
  %v70 = vld [vmem:[%s1] sm:$0xf]
  %v71 = vld [vmem:[%s1 + $0x4] sm:$0xf]
  %v72 = vld [vmem:[%s1 + $0x8] sm:$0xf]
  %v73 = vld [vmem:[%s1 + $0xc] sm:$0xf]
  %v74 = vld [vmem:[%s1 + $0x10] sm:$0xf]
  %v75 = vld [vmem:[%s1 + $0x14] sm:$0xf]
  %v76 = vld [vmem:[%s1 + $0x18] sm:$0xf]
  %v77 = vld [vmem:[%s1 + $0x1c] sm:$0xf]
  %v78 = vld [vmem:[%s1 + $0x20] sm:$0xf]
  %v79 = vld [vmem:[%s1 + $0x24] sm:$0xf]
  %v80 = vld [vmem:[%s1 + $0x28] sm:$0xf]
  %v81 = vld [vmem:[%s1 + $0x2c] sm:$0xf]
  %v82 = vld [vmem:[%s1 + $0x30] sm:$0xf]
  %v83 = vld [vmem:[%s1 + $0x34] sm:$0xf]
  %v84 = vld [vmem:[%s1 + $0x38] sm:$0xf]
  %v85 = vld [vmem:[%s1 + $0x3c] sm:$0xf]
  %v86 = vld [vmem:[%s1 + $0x40] sm:$0xf]
  %v87 = vld [vmem:[%s1 + $0x44] sm:$0xf]
  %v88 = vld [vmem:[%s1 + $0x48] sm:$0xf]
  %v89 = vld [vmem:[%s1 + $0x4c] sm:$0xf]
  %v90 = vld [vmem:[%s1 + $0x50] sm:$0xf]
  %v91 = vld [vmem:[%s1 + $0x54] sm:$0xf]
  %v92 = vld [vmem:[%s1 + $0x58] sm:$0xf]
  %v93 = vld [vmem:[%s1 + $0x5c] sm:$0xf]
  %v94 = vld [vmem:[%s1 + $0x60] sm:$0xf]
  %v95 = vld [vmem:[%s1 + $0x64] sm:$0xf]
  %v96 = vld [vmem:[%s1 + $0x68] sm:$0xf]
  %v97 = vld [vmem:[%s1 + $0x6c] sm:$0xf]
  %v98 = vld [vmem:[%s1 + $0x70] sm:$0xf]
  %v99 = vld [vmem:[%s1 + $0x74] sm:$0xf]
  %v100 = vld [vmem:[%s1 + $0x78] sm:$0xf]
  %v101 = vld [vmem:[%s1 + $0x7c] sm:$0xf]
  %v118 = vunpack.c.l.b16 %v54
  %v119 = vunpack.c.h.b16 %v54
  %v120 = vunpack.c.l.b16 %v55
  %v121 = vunpack.c.h.b16 %v55
  %v122 = vunpack.c.l.b16 %v56
  %v123 = vunpack.c.h.b16 %v56
  %v124 = vunpack.c.l.b16 %v57
  %v125 = vunpack.c.h.b16 %v57
  %v126 = vunpack.c.l.b16 %v58
  %v127 = vunpack.c.h.b16 %v58
  %v128 = vunpack.c.l.b16 %v59
  %v129 = vunpack.c.h.b16 %v59
  %v130 = vunpack.c.l.b16 %v60
  %v131 = vunpack.c.h.b16 %v60
  %v132 = vunpack.c.l.b16 %v61
  %v133 = vunpack.c.h.b16 %v61
  %v134 = vunpack.c.l.b16 %v62
  %v135 = vunpack.c.h.b16 %v62
  %v136 = vunpack.c.l.b16 %v63
  %v137 = vunpack.c.h.b16 %v63
  %v138 = vunpack.c.l.b16 %v64
  %v139 = vunpack.c.h.b16 %v64
  %v140 = vunpack.c.l.b16 %v65
  %v141 = vunpack.c.h.b16 %v65
  %v142 = vunpack.c.l.b16 %v66
  %v143 = vunpack.c.h.b16 %v66
  %v144 = vunpack.c.l.b16 %v67
  %v145 = vunpack.c.h.b16 %v67
  %v146 = vunpack.c.l.b16 %v68
  %v147 = vunpack.c.h.b16 %v68
  %v148 = vunpack.c.l.b16 %v69
  %v149 = vunpack.c.h.b16 %v69
  %v150 = vpack.c.b16 %v120, %v118
  %v151 = vpack.c.b16 %v121, %v119
  %v152 = vpack.c.b16 %v124, %v122
  %v153 = vpack.c.b16 %v125, %v123
  %v154 = vpack.c.b16 %v128, %v126
  %v155 = vpack.c.b16 %v129, %v127
  %v156 = vpack.c.b16 %v132, %v130
  %v157 = vpack.c.b16 %v133, %v131
  %v158 = vpack.c.b16 %v136, %v134
  %v159 = vpack.c.b16 %v137, %v135
  %v160 = vpack.c.b16 %v140, %v138
  %v161 = vpack.c.b16 %v141, %v139
  %v162 = vpack.c.b16 %v144, %v142
  %v163 = vpack.c.b16 %v145, %v143
  %v164 = vpack.c.b16 %v148, %v146
  %v165 = vpack.c.b16 %v149, %v147
  %v214 = vunpack.c.l.b16 %v70
  %v215 = vunpack.c.l.b16 %v71
  %v216 = vunpack.c.l.b16 %v72
  %v217 = vunpack.c.l.b16 %v73
  %v218 = vunpack.c.l.b16 %v74
  %v219 = vunpack.c.l.b16 %v75
  %v220 = vunpack.c.l.b16 %v76
  %v221 = vunpack.c.l.b16 %v77
  %v222 = vunpack.c.l.b16 %v78
  %v223 = vunpack.c.l.b16 %v79
  %v224 = vunpack.c.l.b16 %v80
  %v225 = vunpack.c.l.b16 %v81
  %v226 = vunpack.c.l.b16 %v82
  %v227 = vunpack.c.l.b16 %v83
  %v228 = vunpack.c.l.b16 %v84
  %v229 = vunpack.c.l.b16 %v85
  %v230 = vunpack.c.l.b16 %v86
  %v231 = vunpack.c.l.b16 %v87
  %v232 = vunpack.c.l.b16 %v88
  %v233 = vunpack.c.l.b16 %v89
  %v234 = vunpack.c.l.b16 %v90
  %v235 = vunpack.c.l.b16 %v91
  %v236 = vunpack.c.l.b16 %v92
  %v237 = vunpack.c.l.b16 %v93
  %v238 = vunpack.c.l.b16 %v94
  %v239 = vunpack.c.l.b16 %v95
  %v240 = vunpack.c.l.b16 %v96
  %v241 = vunpack.c.l.b16 %v97
  %v242 = vunpack.c.l.b16 %v98
  %v243 = vunpack.c.l.b16 %v99
  %v244 = vunpack.c.l.b16 %v100
  %v245 = vunpack.c.l.b16 %v101
  %v246 = vpack.c.b16 %v215, %v214
  %v247 = vpack.c.b16 %v217, %v216
  %v248 = vpack.c.b16 %v219, %v218
  %v249 = vpack.c.b16 %v221, %v220
  %v250 = vpack.c.b16 %v223, %v222
  %v251 = vpack.c.b16 %v225, %v224
  %v252 = vpack.c.b16 %v227, %v226
  %v253 = vpack.c.b16 %v229, %v228
  %v254 = vpack.c.b16 %v231, %v230
  %v255 = vpack.c.b16 %v233, %v232
  %v256 = vpack.c.b16 %v235, %v234
  %v257 = vpack.c.b16 %v237, %v236
  %v258 = vpack.c.b16 %v239, %v238
  %v259 = vpack.c.b16 %v241, %v240
  %v260 = vpack.c.b16 %v243, %v242
  %v261 = vpack.c.b16 %v245, %v244
  %278 = vmatprep.subr.bf16.mxu0 0
  %279 = vmatpush1.bf16.msra.mxu0 %v246
  %280 = vmatprep.subr.bf16.mxu0 0
  %281 = vmatpush1.bf16.msra.mxu0 %v247
  %282 = vmatprep.subr.bf16.mxu0 0
  %283 = vmatpush1.bf16.msra.mxu0 %v248
  %284 = vmatprep.subr.bf16.mxu0 0
  %285 = vmatpush1.bf16.msra.mxu0 %v249
  %286 = vmatprep.subr.bf16.mxu0 0
  %287 = vmatpush1.bf16.msra.mxu0 %v250
  %288 = vmatprep.subr.bf16.mxu0 0
  %289 = vmatpush1.bf16.msra.mxu0 %v251
  %290 = vmatprep.subr.bf16.mxu0 0
  %291 = vmatpush1.bf16.msra.mxu0 %v252
  %292 = vmatprep.subr.bf16.mxu0 0
  %293 = vmatpush1.bf16.msra.mxu0 %v253
  %294 = vmatprep.subr.bf16.mxu0 0
  %295 = vmatpush1.bf16.msra.mxu0 %v254
  %296 = vmatprep.subr.bf16.mxu0 0
  %297 = vmatpush1.bf16.msra.mxu0 %v255
  %298 = vmatprep.subr.bf16.mxu0 0
  %299 = vmatpush1.bf16.msra.mxu0 %v256
  %300 = vmatprep.subr.bf16.mxu0 0
  %301 = vmatpush1.bf16.msra.mxu0 %v257
  %302 = vmatprep.subr.bf16.mxu0 0
  %303 = vmatpush1.bf16.msra.mxu0 %v258
  %304 = vmatprep.subr.bf16.mxu0 0
  %305 = vmatpush1.bf16.msra.mxu0 %v259
  %306 = vmatprep.subr.bf16.mxu0 0
  %307 = vmatpush1.bf16.msra.mxu0 %v260
  %308 = vmatprep.subr.bf16.mxu0 0
  %309 = vmatpush1.bf16.msra.mxu0 %v261
  %310 = vmatprep.mubr.bf16.mxu0 %v151
  %311 = vmatmul.mubr.bf16.gmra.mrb[0].mxu0 %v150
  %v312 = vpop.f32.mrb[0].mxu0
  %v313 = vadd.f32 0.0, %v312
  %v314 = vpop.f32.mrb[0].mxu0
  %v315 = vpop.f32.mrb[0].mxu0
  %v316 = vadd.f32 0.0, %v315
  %v317 = vpop.f32.mrb[0].mxu0
  %318 = vmatprep.mubr.bf16.mxu0 %v153
  %319 = vmatmul.mubr.bf16.gmra.mrb[0].mxu0 %v152
  %v320 = vpop.f32.mrb[0].mxu0
  %v321 = vadd.f32 0.0, %v320
  %v322 = vpop.f32.mrb[0].mxu0
  %v323 = vpop.f32.mrb[0].mxu0
  %v324 = vadd.f32 0.0, %v323
  %v325 = vpop.f32.mrb[0].mxu0
  %326 = vmatprep.mubr.bf16.mxu0 %v155
  %327 = vmatmul.mubr.bf16.gmra.mrb[0].mxu0 %v154
  %v328 = vpop.f32.mrb[0].mxu0
  %v329 = vadd.f32 0.0, %v328
  %v330 = vpop.f32.mrb[0].mxu0
  %v331 = vpop.f32.mrb[0].mxu0
  %v332 = vadd.f32 0.0, %v331
  %v333 = vpop.f32.mrb[0].mxu0
  %334 = vmatprep.mubr.bf16.mxu0 %v157
  %335 = vmatmul.mubr.bf16.gmra.mrb[0].mxu0 %v156
  %v336 = vpop.f32.mrb[0].mxu0
  %v337 = vadd.f32 0.0, %v336
  %v338 = vpop.f32.mrb[0].mxu0
  %v339 = vpop.f32.mrb[0].mxu0
  %v340 = vadd.f32 0.0, %v339
  %v341 = vpop.f32.mrb[0].mxu0
  %342 = vmatprep.mubr.bf16.mxu0 %v159
  %343 = vmatmul.mubr.bf16.gmra.mrb[0].mxu0 %v158
  %v344 = vpop.f32.mrb[0].mxu0
  %v345 = vadd.f32 0.0, %v344
  %v346 = vpop.f32.mrb[0].mxu0
  %v347 = vpop.f32.mrb[0].mxu0
  %v348 = vadd.f32 0.0, %v347
  %v349 = vpop.f32.mrb[0].mxu0
  %350 = vmatprep.mubr.bf16.mxu0 %v161
  %351 = vmatmul.mubr.bf16.gmra.mrb[0].mxu0 %v160
  %v352 = vpop.f32.mrb[0].mxu0
  %v353 = vadd.f32 0.0, %v352
  %v354 = vpop.f32.mrb[0].mxu0
  %v355 = vpop.f32.mrb[0].mxu0
  %v356 = vadd.f32 0.0, %v355
  %v357 = vpop.f32.mrb[0].mxu0
  %358 = vmatprep.mubr.bf16.mxu0 %v163
  %359 = vmatmul.mubr.bf16.gmra.mrb[0].mxu0 %v162
  %v360 = vpop.f32.mrb[0].mxu0
  %v361 = vadd.f32 0.0, %v360
  %v362 = vpop.f32.mrb[0].mxu0
  %v363 = vpop.f32.mrb[0].mxu0
  %v364 = vadd.f32 0.0, %v363
  %v365 = vpop.f32.mrb[0].mxu0
  %366 = vmatprep.mubr.bf16.mxu0 %v165
  %367 = vmatmul.mubr.bf16.gmra.mrb[0].mxu0 %v164
  %v368 = vpop.f32.mrb[0].mxu0
  %v369 = vadd.f32 0.0, %v368
  %v370 = vpop.f32.mrb[0].mxu0
  %v371 = vpop.f32.mrb[0].mxu0
  %v372 = vadd.f32 0.0, %v371
  %v373 = vpop.f32.mrb[0].mxu0
  %374 = vdwg.mxu0
  %v375 = vadd.f32 %v38, %v313
  %v376 = vadd.f32 %v39, %v316
  %v377 = vadd.f32 %v40, %v321
  %v378 = vadd.f32 %v41, %v324
  %v379 = vadd.f32 %v42, %v329
  %v380 = vadd.f32 %v43, %v332
  %v381 = vadd.f32 %v44, %v337
  %v382 = vadd.f32 %v45, %v340
  %v383 = vadd.f32 %v46, %v345
  %v384 = vadd.f32 %v47, %v348
  %v385 = vadd.f32 %v48, %v353
  %v386 = vadd.f32 %v49, %v356
  %v387 = vadd.f32 %v50, %v361
  %v388 = vadd.f32 %v51, %v364
  %v389 = vadd.f32 %v52, %v369
  %v390 = vadd.f32 %v53, %v372
  %vm391 = vcmask 261120
  %392 = vst.msk [vmem:[#allocation2] sm:$0xff] %vm391, %v375
  %393 = vst.msk [vmem:[#allocation2 + $0x8] sm:$0xff] %vm391, %v376
  %394 = vst.msk [vmem:[#allocation2 + $0x10] sm:$0xff] %vm391, %v377
  %395 = vst.msk [vmem:[#allocation2 + $0x18] sm:$0xff] %vm391, %v378
  %396 = vst.msk [vmem:[#allocation2 + $0x20] sm:$0xff] %vm391, %v379
  %397 = vst.msk [vmem:[#allocation2 + $0x28] sm:$0xff] %vm391, %v380
  %398 = vst.msk [vmem:[#allocation2 + $0x30] sm:$0xff] %vm391, %v381
  %399 = vst.msk [vmem:[#allocation2 + $0x38] sm:$0xff] %vm391, %v382
  %400 = vst.msk [vmem:[#allocation2 + $0x40] sm:$0xff] %vm391, %v383
  %401 = vst.msk [vmem:[#allocation2 + $0x48] sm:$0xff] %vm391, %v384
  %402 = vst.msk [vmem:[#allocation2 + $0x50] sm:$0xff] %vm391, %v385
  %403 = vst.msk [vmem:[#allocation2 + $0x58] sm:$0xff] %vm391, %v386
  %404 = vst.msk [vmem:[#allocation2 + $0x60] sm:$0xff] %vm391, %v387
  %405 = vst.msk [vmem:[#allocation2 + $0x68] sm:$0xff] %vm391, %v388
  %406 = vst.msk [vmem:[#allocation2 + $0x70] sm:$0xff] %vm391, %v389
  %407 = vst.msk [vmem:[#allocation2 + $0x78] sm:$0xff] %vm391, %v390
  // Predicated region
  $region18: #{discriminator_forward.6} parent=0 // pred_check
    %p408 = pneg %p17
  $region19: #{discriminator_forward.6} parent=0 // pred_check_branch
    %410 = sbr.rel (%p408) target = $region21
  $region20: #{discriminator_forward.6} parent=0 // pred_region
    %v411 = vld [vmem:[#allocation2] sm:$0xff]
    %v412 = vld [vmem:[#allocation2 + $0x8] sm:$0xff]
    %v413 = vld [vmem:[#allocation2 + $0x10] sm:$0xff]
    %v414 = vld [vmem:[#allocation2 + $0x18] sm:$0xff]
    %v415 = vld [vmem:[#allocation2 + $0x20] sm:$0xff]
    %v416 = vld [vmem:[#allocation2 + $0x28] sm:$0xff]
    %v417 = vld [vmem:[#allocation2 + $0x30] sm:$0xff]
    %v418 = vld [vmem:[#allocation2 + $0x38] sm:$0xff]
    %v419 = vld [vmem:[#allocation2 + $0x40] sm:$0xff]
    %v420 = vld [vmem:[#allocation2 + $0x48] sm:$0xff]
    %v421 = vld [vmem:[#allocation2 + $0x50] sm:$0xff]
    %v422 = vld [vmem:[#allocation2 + $0x58] sm:$0xff]
    %v423 = vld [vmem:[#allocation2 + $0x60] sm:$0xff]
    %v424 = vld [vmem:[#allocation2 + $0x68] sm:$0xff]
    %v425 = vld [vmem:[#allocation2 + $0x70] sm:$0xff]
    %v426 = vld [vmem:[#allocation2 + $0x78] sm:$0xff]
    %v427 = vld [vmem:[%s2] sm:$0x1]
    %v429 = vlaneseq
    %v430 = vshrl.u32 %v429, 7
    %v431 = vsub.s32 0, %v430
    %v432 = vrot.slane %v427, %v431
    %v434 = vadd.f32 %v411, %v432
    %v435 = vadd.f32 %v412, %v432
    %v436 = vadd.f32 %v413, %v432
    %v437 = vadd.f32 %v414, %v432
    %v438 = vadd.f32 %v415, %v432
    %v439 = vadd.f32 %v416, %v432
    %v440 = vadd.f32 %v417, %v432
    %v441 = vadd.f32 %v418, %v432
    %v442 = vadd.f32 %v419, %v432
    %v443 = vadd.f32 %v420, %v432
    %v444 = vadd.f32 %v421, %v432
    %v445 = vadd.f32 %v422, %v432
    %v446 = vadd.f32 %v423, %v432
    %v447 = vadd.f32 %v424, %v432
    %v448 = vadd.f32 %v425, %v432
    %v449 = vadd.f32 %v426, %v432
    %v450 = vpack.c.bf16 %v435, %v434
    %v451 = vpack.c.bf16 %v437, %v436
    %v452 = vpack.c.bf16 %v439, %v438
    %v453 = vpack.c.bf16 %v441, %v440
    %v454 = vpack.c.bf16 %v443, %v442
    %v455 = vpack.c.bf16 %v445, %v444
    %v456 = vpack.c.bf16 %v447, %v446
    %v457 = vpack.c.bf16 %v449, %v448
    %v466 = vunpack.c.l.b16 %v450
    %v467 = vunpack.c.h.b16 %v450
    %v468 = vunpack.c.l.b16 %v451
    %v469 = vunpack.c.h.b16 %v451
    %v470 = vunpack.c.l.b16 %v452
    %v471 = vunpack.c.h.b16 %v452
    %v472 = vunpack.c.l.b16 %v453
    %v473 = vunpack.c.h.b16 %v453
    %v474 = vunpack.c.l.b16 %v454
    %v475 = vunpack.c.h.b16 %v454
    %v476 = vunpack.c.l.b16 %v455
    %v477 = vunpack.c.h.b16 %v455
    %v478 = vunpack.c.l.b16 %v456
    %v479 = vunpack.c.h.b16 %v456
    %v480 = vunpack.c.l.b16 %v457
    %v481 = vunpack.c.h.b16 %v457
    %v482 = vpack.c.b16 %v466, %v466
    %v483 = vpack.c.b16 %v467, %v467
    %v484 = vpack.c.b16 %v468, %v468
    %v485 = vpack.c.b16 %v469, %v469
    %v486 = vpack.c.b16 %v470, %v470
    %v487 = vpack.c.b16 %v471, %v471
    %v488 = vpack.c.b16 %v472, %v472
    %v489 = vpack.c.b16 %v473, %v473
    %v490 = vpack.c.b16 %v474, %v474
    %v491 = vpack.c.b16 %v475, %v475
    %v492 = vpack.c.b16 %v476, %v476
    %v493 = vpack.c.b16 %v477, %v477
    %v494 = vpack.c.b16 %v478, %v478
    %v495 = vpack.c.b16 %v479, %v479
    %v496 = vpack.c.b16 %v480, %v480
    %v497 = vpack.c.b16 %v481, %v481
    %vm514 = vcmask 257024
    %515 = vst.msk [vmem:[%s3] sm:$0xf] %vm514, %v482
    %516 = vst.msk [vmem:[%s3 + $0x4] sm:$0xf] %vm514, %v483
    %517 = vst.msk [vmem:[%s3 + $0x8] sm:$0xf] %vm514, %v484
    %518 = vst.msk [vmem:[%s3 + $0xc] sm:$0xf] %vm514, %v485
    %519 = vst.msk [vmem:[%s3 + $0x10] sm:$0xf] %vm514, %v486
    %520 = vst.msk [vmem:[%s3 + $0x14] sm:$0xf] %vm514, %v487
    %521 = vst.msk [vmem:[%s3 + $0x18] sm:$0xf] %vm514, %v488
    %522 = vst.msk [vmem:[%s3 + $0x1c] sm:$0xf] %vm514, %v489
    %523 = vst.msk [vmem:[%s3 + $0x20] sm:$0xf] %vm514, %v490
    %524 = vst.msk [vmem:[%s3 + $0x24] sm:$0xf] %vm514, %v491
    %525 = vst.msk [vmem:[%s3 + $0x28] sm:$0xf] %vm514, %v492
    %526 = vst.msk [vmem:[%s3 + $0x2c] sm:$0xf] %vm514, %v493
    %527 = vst.msk [vmem:[%s3 + $0x30] sm:$0xf] %vm514, %v494
    %528 = vst.msk [vmem:[%s3 + $0x34] sm:$0xf] %vm514, %v495
    %529 = vst.msk [vmem:[%s3 + $0x38] sm:$0xf] %vm514, %v496
    %530 = vst.msk [vmem:[%s3 + $0x3c] sm:$0xf] %vm514, %v497
    %v531 = vsel %vm391, %v434, 0.0
    %v532 = vsel %vm391, %v435, 0.0
    %v533 = vadd.f32 %v531, %v532
    %v534 = vsel %vm391, %v436, 0.0
    %v535 = vadd.f32 %v533, %v534
    %v536 = vsel %vm391, %v437, 0.0
    %v537 = vadd.f32 %v535, %v536
    %v538 = vsel %vm391, %v438, 0.0
    %v539 = vadd.f32 %v537, %v538
    %v540 = vsel %vm391, %v439, 0.0
    %v541 = vadd.f32 %v539, %v540
    %v542 = vsel %vm391, %v440, 0.0
    %v543 = vadd.f32 %v541, %v542
    %v544 = vsel %vm391, %v441, 0.0
    %v545 = vadd.f32 %v543, %v544
    %v546 = vsel %vm391, %v442, 0.0
    %v547 = vadd.f32 %v545, %v546
    %v548 = vsel %vm391, %v443, 0.0
    %v549 = vadd.f32 %v547, %v548
    %v550 = vsel %vm391, %v444, 0.0
    %v551 = vadd.f32 %v549, %v550
    %v552 = vsel %vm391, %v445, 0.0
    %v553 = vadd.f32 %v551, %v552
    %v554 = vsel %vm391, %v446, 0.0
    %v555 = vadd.f32 %v553, %v554
    %v556 = vsel %vm391, %v447, 0.0
    %v557 = vadd.f32 %v555, %v556
    %v558 = vsel %vm391, %v448, 0.0
    %v559 = vadd.f32 %v557, %v558
    %v560 = vsel %vm391, %v449, 0.0
    %v561 = vadd.f32 %v559, %v560
    %v562 = vrot.slane %v561, 4
    %v563 = vadd.f32 %v561, %v562
    %v564 = vrot.slane %v563, 2
    %v565 = vadd.f32 %v563, %v564
    %v566 = vrot.slane %v565, 1
    %v567 = vadd.f32 %v565, %v566
    %v568 = vmul.f32 %v434, %v434
    %v569 = vmul.f32 %v435, %v435
    %v570 = vmul.f32 %v436, %v436
    %v571 = vmul.f32 %v437, %v437
    %v572 = vmul.f32 %v438, %v438
    %v573 = vmul.f32 %v439, %v439
    %v574 = vmul.f32 %v440, %v440
    %v575 = vmul.f32 %v441, %v441
    %v576 = vmul.f32 %v442, %v442
    %v577 = vmul.f32 %v443, %v443
    %v578 = vmul.f32 %v444, %v444
    %v579 = vmul.f32 %v445, %v445
    %v580 = vmul.f32 %v446, %v446
    %v581 = vmul.f32 %v447, %v447
    %v582 = vmul.f32 %v448, %v448
    %v583 = vmul.f32 %v449, %v449
    %v584 = vsel %vm391, %v568, 0.0
    %v585 = vsel %vm391, %v569, 0.0
    %v586 = vadd.f32 %v584, %v585
    %v587 = vsel %vm391, %v570, 0.0
    %v588 = vadd.f32 %v586, %v587
    %v589 = vsel %vm391, %v571, 0.0
    %v590 = vadd.f32 %v588, %v589
    %v591 = vsel %vm391, %v572, 0.0
    %v592 = vadd.f32 %v590, %v591
    %v593 = vsel %vm391, %v573, 0.0
    %v594 = vadd.f32 %v592, %v593
    %v595 = vsel %vm391, %v574, 0.0
    %v596 = vadd.f32 %v594, %v595
    %v597 = vsel %vm391, %v575, 0.0
    %v598 = vadd.f32 %v596, %v597
    %v599 = vsel %vm391, %v576, 0.0
    %v600 = vadd.f32 %v598, %v599
    %v601 = vsel %vm391, %v577, 0.0
    %v602 = vadd.f32 %v600, %v601
    %v603 = vsel %vm391, %v578, 0.0
    %v604 = vadd.f32 %v602, %v603
    %v605 = vsel %vm391, %v579, 0.0
    %v606 = vadd.f32 %v604, %v605
    %v607 = vsel %vm391, %v580, 0.0
    %v608 = vadd.f32 %v606, %v607
    %v609 = vsel %vm391, %v581, 0.0
    %v610 = vadd.f32 %v608, %v609
    %v611 = vsel %vm391, %v582, 0.0
    %v612 = vadd.f32 %v610, %v611
    %v613 = vsel %vm391, %v583, 0.0
    %v614 = vadd.f32 %v612, %v613
    %v615 = vrot.slane %v614, 4
    %v616 = vadd.f32 %v614, %v615
    %v617 = vrot.slane %v616, 2
    %v618 = vadd.f32 %v616, %v617
    %v619 = vrot.slane %v618, 1
    %v620 = vadd.f32 %v618, %v619
    %vm621 = vcmask 1040384
    %v622 = vsel %vm621, %v567, %v620
    %vm623 = vcmask 254976
    %624 = vst.msk [vmem:[%s4] sm:$0x3] %vm623, %v622
  $region21: #{discriminator_forward.6} parent=0 // pred_fallthru
    _
  // Predicated region
  $region22: #{discriminator_forward.6} parent=0 // pred_check
    _
  $region23: #{discriminator_forward.6} parent=0 // pred_check_branch
    %626 = sbr.rel (0) target = $region25
  $region24: #{discriminator_forward.6} parent=0 // pred_region
    _
  $region25: #{discriminator_forward.6} parent=0 // pred_fallthru
    _
  // Predicated region
  $region26: #{discriminator_forward.6} parent=0 // pred_check
    _
  $region27: #{discriminator_forward.6} parent=0 // pred_check_branch
    %628 = sbr.rel (0) target = $region29
  $region28: #{discriminator_forward.6} parent=0 // pred_region
    _
  $region29: #{discriminator_forward.6} parent=0 // pred_fallthru
    _
  // Predicated region
  $region30: #{discriminator_forward.6} parent=0 // pred_check
    _
  $region31: #{discriminator_forward.6} parent=0 // pred_check_branch
    %630 = sbr.rel (0) target = $region33
  $region32: #{discriminator_forward.6} parent=0 // pred_region
    _
  $region33: #{discriminator_forward.6} parent=0 // pred_fallthru
    _
  // Predicated region
  $region34: #{discriminator_forward.6} parent=0 // pred_check
    _
  $region35: #{discriminator_forward.6} parent=0 // pred_check_branch
    %632 = sbr.rel (0) target = $region37
  $region36: #{discriminator_forward.6} parent=0 // pred_region
    _
  $region37: #{discriminator_forward.6} parent=0 // pred_fallthru
    _

// kernel: discriminator_forward.7
$region0: #{discriminator_forward.7}
  #allocation0 [shape = 'u32[]', space=smem, size = 0x4, offset = 0x4, fixed_abs, tag = 'smem constant byte address 0x4 - core index']
  #allocation1 [shape = 'u32[144,128]{1,0:T(1,128)}', space=vmem, size = 0x12000, scoped, tag = 'internal scratch']
  #allocation2 [shape = 'f32[32,64]{1,0:T(8,128)}', space=vmem, size = 0x4000, scoped, tag = 'scratch operand']
  %s0 = inlined_call_operand.vmem [shape: bf16[32,512], index: 0, kind: input, shape index: {}]
  %s1 = inlined_call_operand.vmem [shape: bf16[512,64], index: 1, kind: input, shape index: {}]
  %s2 = inlined_call_operand.vmem [shape: f32[1,64], index: 2, kind: input, shape index: {}]
  %s3 = inlined_call_operand.vmem [shape: bf16[32,64], index: 3, kind: output, shape index: {0}]
  %s4 = inlined_call_operand.vmem [shape: f32[1,2,64], index: 4, kind: output, shape index: {1}]
  %5 = xla_tuple %s3, %s4
  %s6 = sld [smem:[#allocation0]]
  $region38: #{discriminator_forward.7} parent=0
    _
  %s8 = ssub.s32 1, %s6
  %s9 = scalar_select 0, %s8, %s6
  // Predicated region
  $region2: #{discriminator_forward.7} parent=0 // pred_check
    _
  $region3: #{discriminator_forward.7} parent=0 // pred_check_branch
    %11 = sbr.rel (0) target = $region5
  $region4: #{discriminator_forward.7} parent=0 // pred_region
    _
  $region5: #{discriminator_forward.7} parent=0 // pred_fallthru
    _
  // Predicated region
  $region6: #{discriminator_forward.7} parent=0 // pred_check
    _
  $region7: #{discriminator_forward.7} parent=0 // pred_check_branch
    %13 = sbr.rel (0) target = $region9
  $region8: #{discriminator_forward.7} parent=0 // pred_region
    _
  $region9: #{discriminator_forward.7} parent=0 // pred_fallthru
    _
  // Predicated region
  $region10: #{discriminator_forward.7} parent=0 // pred_check
    _
  $region11: #{discriminator_forward.7} parent=0 // pred_check_branch
    %15 = sbr.rel (0) target = $region13
  $region12: #{discriminator_forward.7} parent=0 // pred_region
    _
  $region13: #{discriminator_forward.7} parent=0 // pred_fallthru
    _
  %p17 = scmp.eq.s32.totalorder 0, 0
  // Predicated region
  $region14: #{discriminator_forward.7} parent=0 // pred_check
    %p18 = pneg %p17
  $region15: #{discriminator_forward.7} parent=0 // pred_check_branch
    %20 = sbr.rel (%p18) target = $region17
  $region16: #{discriminator_forward.7} parent=0 // pred_region
    %vm21 = vcmask 523264
    %22 = vst.msk [vmem:[#allocation2] sm:$0xff] %vm21, 0.0
    %23 = vst.msk [vmem:[#allocation2 + $0x8] sm:$0xff] %vm21, 0.0
    %24 = vst.msk [vmem:[#allocation2 + $0x10] sm:$0xff] %vm21, 0.0
    %25 = vst.msk [vmem:[#allocation2 + $0x18] sm:$0xff] %vm21, 0.0
  $region17: #{discriminator_forward.7} parent=0 // pred_fallthru
    _
  %v26 = vld [vmem:[#allocation2] sm:$0xff]
  %v27 = vld [vmem:[#allocation2 + $0x8] sm:$0xff]
  %v28 = vld [vmem:[#allocation2 + $0x10] sm:$0xff]
  %v29 = vld [vmem:[#allocation2 + $0x18] sm:$0xff]
  %v30 = vld [vmem:[%s0] sm:$0xff]
  %v31 = vld [vmem:[%s0 + $0x8] sm:$0xff]
  %v32 = vld [vmem:[%s0 + $0x10] sm:$0xff]
  %v33 = vld [vmem:[%s0 + $0x18] sm:$0xff]
  %v34 = vld [vmem:[%s0 + $0x20] sm:$0xff]
  %v35 = vld [vmem:[%s0 + $0x28] sm:$0xff]
  %v36 = vld [vmem:[%s0 + $0x30] sm:$0xff]
  %v37 = vld [vmem:[%s0 + $0x38] sm:$0xff]
  %v38 = vld [vmem:[%s1] sm:$0xf]
  %v39 = vld [vmem:[%s1 + $0x4] sm:$0xf]
  %v40 = vld [vmem:[%s1 + $0x8] sm:$0xf]
  %v41 = vld [vmem:[%s1 + $0xc] sm:$0xf]
  %v42 = vld [vmem:[%s1 + $0x10] sm:$0xf]
  %v43 = vld [vmem:[%s1 + $0x14] sm:$0xf]
  %v44 = vld [vmem:[%s1 + $0x18] sm:$0xf]
  %v45 = vld [vmem:[%s1 + $0x1c] sm:$0xf]
  %v46 = vld [vmem:[%s1 + $0x20] sm:$0xf]
  %v47 = vld [vmem:[%s1 + $0x24] sm:$0xf]
  %v48 = vld [vmem:[%s1 + $0x28] sm:$0xf]
  %v49 = vld [vmem:[%s1 + $0x2c] sm:$0xf]
  %v50 = vld [vmem:[%s1 + $0x30] sm:$0xf]
  %v51 = vld [vmem:[%s1 + $0x34] sm:$0xf]
  %v52 = vld [vmem:[%s1 + $0x38] sm:$0xf]
  %v53 = vld [vmem:[%s1 + $0x3c] sm:$0xf]
  %v54 = vld [vmem:[%s1 + $0x40] sm:$0xf]
  %v55 = vld [vmem:[%s1 + $0x44] sm:$0xf]
  %v56 = vld [vmem:[%s1 + $0x48] sm:$0xf]
  %v57 = vld [vmem:[%s1 + $0x4c] sm:$0xf]
  %v58 = vld [vmem:[%s1 + $0x50] sm:$0xf]
  %v59 = vld [vmem:[%s1 + $0x54] sm:$0xf]
  %v60 = vld [vmem:[%s1 + $0x58] sm:$0xf]
  %v61 = vld [vmem:[%s1 + $0x5c] sm:$0xf]
  %v62 = vld [vmem:[%s1 + $0x60] sm:$0xf]
  %v63 = vld [vmem:[%s1 + $0x64] sm:$0xf]
  %v64 = vld [vmem:[%s1 + $0x68] sm:$0xf]
  %v65 = vld [vmem:[%s1 + $0x6c] sm:$0xf]
  %v66 = vld [vmem:[%s1 + $0x70] sm:$0xf]
  %v67 = vld [vmem:[%s1 + $0x74] sm:$0xf]
  %v68 = vld [vmem:[%s1 + $0x78] sm:$0xf]
  %v69 = vld [vmem:[%s1 + $0x7c] sm:$0xf]
  %v70 = vld [vmem:[%s1 + $0x80] sm:$0xf]
  %v71 = vld [vmem:[%s1 + $0x84] sm:$0xf]
  %v72 = vld [vmem:[%s1 + $0x88] sm:$0xf]
  %v73 = vld [vmem:[%s1 + $0x8c] sm:$0xf]
  %v74 = vld [vmem:[%s1 + $0x90] sm:$0xf]
  %v75 = vld [vmem:[%s1 + $0x94] sm:$0xf]
  %v76 = vld [vmem:[%s1 + $0x98] sm:$0xf]
  %v77 = vld [vmem:[%s1 + $0x9c] sm:$0xf]
  %v78 = vld [vmem:[%s1 + $0xa0] sm:$0xf]
  %v79 = vld [vmem:[%s1 + $0xa4] sm:$0xf]
  %v80 = vld [vmem:[%s1 + $0xa8] sm:$0xf]
  %v81 = vld [vmem:[%s1 + $0xac] sm:$0xf]
  %v82 = vld [vmem:[%s1 + $0xb0] sm:$0xf]
  %v83 = vld [vmem:[%s1 + $0xb4] sm:$0xf]
  %v84 = vld [vmem:[%s1 + $0xb8] sm:$0xf]
  %v85 = vld [vmem:[%s1 + $0xbc] sm:$0xf]
  %v86 = vld [vmem:[%s1 + $0xc0] sm:$0xf]
  %v87 = vld [vmem:[%s1 + $0xc4] sm:$0xf]
  %v88 = vld [vmem:[%s1 + $0xc8] sm:$0xf]
  %v89 = vld [vmem:[%s1 + $0xcc] sm:$0xf]
  %v90 = vld [vmem:[%s1 + $0xd0] sm:$0xf]
  %v91 = vld [vmem:[%s1 + $0xd4] sm:$0xf]
  %v92 = vld [vmem:[%s1 + $0xd8] sm:$0xf]
  %v93 = vld [vmem:[%s1 + $0xdc] sm:$0xf]
  %v94 = vld [vmem:[%s1 + $0xe0] sm:$0xf]
  %v95 = vld [vmem:[%s1 + $0xe4] sm:$0xf]
  %v96 = vld [vmem:[%s1 + $0xe8] sm:$0xf]
  %v97 = vld [vmem:[%s1 + $0xec] sm:$0xf]
  %v98 = vld [vmem:[%s1 + $0xf0] sm:$0xf]
  %v99 = vld [vmem:[%s1 + $0xf4] sm:$0xf]
  %v100 = vld [vmem:[%s1 + $0xf8] sm:$0xf]
  %v101 = vld [vmem:[%s1 + $0xfc] sm:$0xf]
  %v110 = vunpack.c.l.b16 %v30
  %v111 = vunpack.c.h.b16 %v30
  %v112 = vunpack.c.l.b16 %v31
  %v113 = vunpack.c.h.b16 %v31
  %v114 = vunpack.c.l.b16 %v32
  %v115 = vunpack.c.h.b16 %v32
  %v116 = vunpack.c.l.b16 %v33
  %v117 = vunpack.c.h.b16 %v33
  %v118 = vunpack.c.l.b16 %v34
  %v119 = vunpack.c.h.b16 %v34
  %v120 = vunpack.c.l.b16 %v35
  %v121 = vunpack.c.h.b16 %v35
  %v122 = vunpack.c.l.b16 %v36
  %v123 = vunpack.c.h.b16 %v36
  %v124 = vunpack.c.l.b16 %v37
  %v125 = vunpack.c.h.b16 %v37
  %v126 = vpack.c.b16 %v114, %v110
  %v127 = vpack.c.b16 %v115, %v111
  %v128 = vpack.c.b16 %v116, %v112
  %v129 = vpack.c.b16 %v117, %v113
  %v130 = vpack.c.b16 %v122, %v118
  %v131 = vpack.c.b16 %v123, %v119
  %v132 = vpack.c.b16 %v124, %v120
  %v133 = vpack.c.b16 %v125, %v121
  %v206 = vunpack.c.l.b16 %v38
  %v207 = vunpack.c.l.b16 %v39
  %v208 = vunpack.c.l.b16 %v40
  %v209 = vunpack.c.l.b16 %v41
  %v210 = vunpack.c.l.b16 %v42
  %v211 = vunpack.c.l.b16 %v43
  %v212 = vunpack.c.l.b16 %v44
  %v213 = vunpack.c.l.b16 %v45
  %v214 = vunpack.c.l.b16 %v46
  %v215 = vunpack.c.l.b16 %v47
  %v216 = vunpack.c.l.b16 %v48
  %v217 = vunpack.c.l.b16 %v49
  %v218 = vunpack.c.l.b16 %v50
  %v219 = vunpack.c.l.b16 %v51
  %v220 = vunpack.c.l.b16 %v52
  %v221 = vunpack.c.l.b16 %v53
  %v222 = vunpack.c.l.b16 %v54
  %v223 = vunpack.c.l.b16 %v55
  %v224 = vunpack.c.l.b16 %v56
  %v225 = vunpack.c.l.b16 %v57
  %v226 = vunpack.c.l.b16 %v58
  %v227 = vunpack.c.l.b16 %v59
  %v228 = vunpack.c.l.b16 %v60
  %v229 = vunpack.c.l.b16 %v61
  %v230 = vunpack.c.l.b16 %v62
  %v231 = vunpack.c.l.b16 %v63
  %v232 = vunpack.c.l.b16 %v64
  %v233 = vunpack.c.l.b16 %v65
  %v234 = vunpack.c.l.b16 %v66
  %v235 = vunpack.c.l.b16 %v67
  %v236 = vunpack.c.l.b16 %v68
  %v237 = vunpack.c.l.b16 %v69
  %v238 = vunpack.c.l.b16 %v70
  %v239 = vunpack.c.l.b16 %v71
  %v240 = vunpack.c.l.b16 %v72
  %v241 = vunpack.c.l.b16 %v73
  %v242 = vunpack.c.l.b16 %v74
  %v243 = vunpack.c.l.b16 %v75
  %v244 = vunpack.c.l.b16 %v76
  %v245 = vunpack.c.l.b16 %v77
  %v246 = vunpack.c.l.b16 %v78
  %v247 = vunpack.c.l.b16 %v79
  %v248 = vunpack.c.l.b16 %v80
  %v249 = vunpack.c.l.b16 %v81
  %v250 = vunpack.c.l.b16 %v82
  %v251 = vunpack.c.l.b16 %v83
  %v252 = vunpack.c.l.b16 %v84
  %v253 = vunpack.c.l.b16 %v85
  %v254 = vunpack.c.l.b16 %v86
  %v255 = vunpack.c.l.b16 %v87
  %v256 = vunpack.c.l.b16 %v88
  %v257 = vunpack.c.l.b16 %v89
  %v258 = vunpack.c.l.b16 %v90
  %v259 = vunpack.c.l.b16 %v91
  %v260 = vunpack.c.l.b16 %v92
  %v261 = vunpack.c.l.b16 %v93
  %v262 = vunpack.c.l.b16 %v94
  %v263 = vunpack.c.l.b16 %v95
  %v264 = vunpack.c.l.b16 %v96
  %v265 = vunpack.c.l.b16 %v97
  %v266 = vunpack.c.l.b16 %v98
  %v267 = vunpack.c.l.b16 %v99
  %v268 = vunpack.c.l.b16 %v100
  %v269 = vunpack.c.l.b16 %v101
  %v270 = vpack.c.b16 %v207, %v206
  %v271 = vpack.c.b16 %v209, %v208
  %v272 = vpack.c.b16 %v211, %v210
  %v273 = vpack.c.b16 %v213, %v212
  %v274 = vpack.c.b16 %v215, %v214
  %v275 = vpack.c.b16 %v217, %v216
  %v276 = vpack.c.b16 %v219, %v218
  %v277 = vpack.c.b16 %v221, %v220
  %v278 = vpack.c.b16 %v223, %v222
  %v279 = vpack.c.b16 %v225, %v224
  %v280 = vpack.c.b16 %v227, %v226
  %v281 = vpack.c.b16 %v229, %v228
  %v282 = vpack.c.b16 %v231, %v230
  %v283 = vpack.c.b16 %v233, %v232
  %v284 = vpack.c.b16 %v235, %v234
  %v285 = vpack.c.b16 %v237, %v236
  %v286 = vpack.c.b16 %v239, %v238
  %v287 = vpack.c.b16 %v241, %v240
  %v288 = vpack.c.b16 %v243, %v242
  %v289 = vpack.c.b16 %v245, %v244
  %v290 = vpack.c.b16 %v247, %v246
  %v291 = vpack.c.b16 %v249, %v248
  %v292 = vpack.c.b16 %v251, %v250
  %v293 = vpack.c.b16 %v253, %v252
  %v294 = vpack.c.b16 %v255, %v254
  %v295 = vpack.c.b16 %v257, %v256
  %v296 = vpack.c.b16 %v259, %v258
  %v297 = vpack.c.b16 %v261, %v260
  %v298 = vpack.c.b16 %v263, %v262
  %v299 = vpack.c.b16 %v265, %v264
  %v300 = vpack.c.b16 %v267, %v266
  %v301 = vpack.c.b16 %v269, %v268
  %334 = vmatprep.subr.bf16.mxu0 0
  %335 = vmatpush1.bf16.msra.mxu0 %v270
  %336 = vmatprep.subr.bf16.mxu0 0
  %337 = vmatpush1.bf16.msra.mxu0 %v271
  %338 = vmatprep.subr.bf16.mxu0 0
  %339 = vmatpush1.bf16.msra.mxu0 %v272
  %340 = vmatprep.subr.bf16.mxu0 0
  %341 = vmatpush1.bf16.msra.mxu0 %v273
  %342 = vmatprep.subr.bf16.mxu0 0
  %343 = vmatpush1.bf16.msra.mxu0 %v274
  %344 = vmatprep.subr.bf16.mxu0 0
  %345 = vmatpush1.bf16.msra.mxu0 %v275
  %346 = vmatprep.subr.bf16.mxu0 0
  %347 = vmatpush1.bf16.msra.mxu0 %v276
  %348 = vmatprep.subr.bf16.mxu0 0
  %349 = vmatpush1.bf16.msra.mxu0 %v277
  %350 = vmatprep.subr.bf16.mxu0 0
  %351 = vmatpush1.bf16.msra.mxu0 %v278
  %352 = vmatprep.subr.bf16.mxu0 0
  %353 = vmatpush1.bf16.msra.mxu0 %v279
  %354 = vmatprep.subr.bf16.mxu0 0
  %355 = vmatpush1.bf16.msra.mxu0 %v280
  %356 = vmatprep.subr.bf16.mxu0 0
  %357 = vmatpush1.bf16.msra.mxu0 %v281
  %358 = vmatprep.subr.bf16.mxu0 0
  %359 = vmatpush1.bf16.msra.mxu0 %v282
  %360 = vmatprep.subr.bf16.mxu0 0
  %361 = vmatpush1.bf16.msra.mxu0 %v283
  %362 = vmatprep.subr.bf16.mxu0 0
  %363 = vmatpush1.bf16.msra.mxu0 %v284
  %364 = vmatprep.subr.bf16.mxu0 0
  %365 = vmatpush1.bf16.msra.mxu0 %v285
  %366 = vmatprep.mubr.bf16.mxu0 %v127
  %367 = vmatmul.mubr.bf16.gmra.mrb[0].mxu0 %v126
  %v368 = vpop.f32.mrb[0].mxu0
  %v369 = vadd.f32 0.0, %v368
  %v370 = vpop.f32.mrb[0].mxu0
  %v371 = vpop.f32.mrb[0].mxu0
  %v372 = vadd.f32 0.0, %v371
  %v373 = vpop.f32.mrb[0].mxu0
  %374 = vmatprep.mubr.bf16.mxu0 %v131
  %375 = vmatmul.mubr.bf16.gmra.mrb[0].mxu0 %v130
  %v376 = vpop.f32.mrb[0].mxu0
  %v377 = vadd.f32 0.0, %v376
  %v378 = vpop.f32.mrb[0].mxu0
  %v379 = vpop.f32.mrb[0].mxu0
  %v380 = vadd.f32 0.0, %v379
  %v381 = vpop.f32.mrb[0].mxu0
  %382 = vdwg.mxu0
  %383 = vmatprep.subr.bf16.mxu0 0
  %384 = vmatpush1.bf16.msra.mxu0 %v286
  %385 = vmatprep.subr.bf16.mxu0 0
  %386 = vmatpush1.bf16.msra.mxu0 %v287
  %387 = vmatprep.subr.bf16.mxu0 0
  %388 = vmatpush1.bf16.msra.mxu0 %v288
  %389 = vmatprep.subr.bf16.mxu0 0
  %390 = vmatpush1.bf16.msra.mxu0 %v289
  %391 = vmatprep.subr.bf16.mxu0 0
  %392 = vmatpush1.bf16.msra.mxu0 %v290
  %393 = vmatprep.subr.bf16.mxu0 0
  %394 = vmatpush1.bf16.msra.mxu0 %v291
  %395 = vmatprep.subr.bf16.mxu0 0
  %396 = vmatpush1.bf16.msra.mxu0 %v292
  %397 = vmatprep.subr.bf16.mxu0 0
  %398 = vmatpush1.bf16.msra.mxu0 %v293
  %399 = vmatprep.subr.bf16.mxu0 0
  %400 = vmatpush1.bf16.msra.mxu0 %v294
  %401 = vmatprep.subr.bf16.mxu0 0
  %402 = vmatpush1.bf16.msra.mxu0 %v295
  %403 = vmatprep.subr.bf16.mxu0 0
  %404 = vmatpush1.bf16.msra.mxu0 %v296
  %405 = vmatprep.subr.bf16.mxu0 0
  %406 = vmatpush1.bf16.msra.mxu0 %v297
  %407 = vmatprep.subr.bf16.mxu0 0
  %408 = vmatpush1.bf16.msra.mxu0 %v298
  %409 = vmatprep.subr.bf16.mxu0 0
  %410 = vmatpush1.bf16.msra.mxu0 %v299
  %411 = vmatprep.subr.bf16.mxu0 0
  %412 = vmatpush1.bf16.msra.mxu0 %v300
  %413 = vmatprep.subr.bf16.mxu0 0
  %414 = vmatpush1.bf16.msra.mxu0 %v301
  %415 = vmatprep.mubr.bf16.mxu0 %v129
  %416 = vmatmul.mubr.bf16.gmra.mrb[0].mxu0 %v128
  %v417 = vpop.f32.mrb[0].mxu0
  %v418 = vadd.f32 %v369, %v417
  %v419 = vpop.f32.mrb[0].mxu0
  %v420 = vpop.f32.mrb[0].mxu0
  %v421 = vadd.f32 %v372, %v420
  %v422 = vpop.f32.mrb[0].mxu0
  %423 = vmatprep.mubr.bf16.mxu0 %v133
  %424 = vmatmul.mubr.bf16.gmra.mrb[0].mxu0 %v132
  %v425 = vpop.f32.mrb[0].mxu0
  %v426 = vadd.f32 %v377, %v425
  %v427 = vpop.f32.mrb[0].mxu0
  %v428 = vpop.f32.mrb[0].mxu0
  %v429 = vadd.f32 %v380, %v428
  %v430 = vpop.f32.mrb[0].mxu0
  %431 = vdwg.mxu0
  %v432 = vadd.f32 %v26, %v418
  %v433 = vadd.f32 %v27, %v421
  %v434 = vadd.f32 %v28, %v426
  %v435 = vadd.f32 %v29, %v429
  %vm436 = vcmask 523264
  %437 = vst.msk [vmem:[#allocation2] sm:$0xff] %vm436, %v432
  %438 = vst.msk [vmem:[#allocation2 + $0x8] sm:$0xff] %vm436, %v433
  %439 = vst.msk [vmem:[#allocation2 + $0x10] sm:$0xff] %vm436, %v434
  %440 = vst.msk [vmem:[#allocation2 + $0x18] sm:$0xff] %vm436, %v435
  // Predicated region
  $region18: #{discriminator_forward.7} parent=0 // pred_check
    %p441 = pneg %p17
  $region19: #{discriminator_forward.7} parent=0 // pred_check_branch
    %443 = sbr.rel (%p441) target = $region21
  $region20: #{discriminator_forward.7} parent=0 // pred_region
    %v444 = vld [vmem:[#allocation2] sm:$0xff]
    %v445 = vld [vmem:[#allocation2 + $0x8] sm:$0xff]
    %v446 = vld [vmem:[#allocation2 + $0x10] sm:$0xff]
    %v447 = vld [vmem:[#allocation2 + $0x18] sm:$0xff]
    %v448 = vld [vmem:[%s2] sm:$0x1]
    %v450 = vlaneseq
    %v451 = vshrl.u32 %v450, 7
    %v452 = vsub.s32 0, %v451
    %v453 = vrot.slane %v448, %v452
    %v455 = vadd.f32 %v444, %v453
    %v456 = vadd.f32 %v445, %v453
    %v457 = vadd.f32 %v446, %v453
    %v458 = vadd.f32 %v447, %v453
    %v459 = vpack.c.bf16 %v456, %v455
    %v460 = vpack.c.bf16 %v458, %v457
    %v463 = vunpack.c.l.b16 %v459
    %v464 = vunpack.c.h.b16 %v459
    %v465 = vunpack.c.l.b16 %v460
    %v466 = vunpack.c.h.b16 %v460
    %v467 = vpack.c.b16 %v463, %v463
    %v468 = vpack.c.b16 %v464, %v464
    %v469 = vpack.c.b16 %v465, %v465
    %v470 = vpack.c.b16 %v466, %v466
    %vm475 = vcmask 519168
    %476 = vst.msk [vmem:[%s3] sm:$0xf] %vm475, %v467
    %477 = vst.msk [vmem:[%s3 + $0x4] sm:$0xf] %vm475, %v468
    %478 = vst.msk [vmem:[%s3 + $0x8] sm:$0xf] %vm475, %v469
    %479 = vst.msk [vmem:[%s3 + $0xc] sm:$0xf] %vm475, %v470
    %v480 = vsel %vm436, %v455, 0.0
    %v481 = vsel %vm436, %v456, 0.0
    %v482 = vadd.f32 %v480, %v481
    %v483 = vsel %vm436, %v457, 0.0
    %v484 = vadd.f32 %v482, %v483
    %v485 = vsel %vm436, %v458, 0.0
    %v486 = vadd.f32 %v484, %v485
    %v487 = vrot.slane %v486, 4
    %v488 = vadd.f32 %v486, %v487
    %v489 = vrot.slane %v488, 2
    %v490 = vadd.f32 %v488, %v489
    %v491 = vrot.slane %v490, 1
    %v492 = vadd.f32 %v490, %v491
    %v493 = vmul.f32 %v455, %v455
    %v494 = vmul.f32 %v456, %v456
    %v495 = vmul.f32 %v457, %v457
    %v496 = vmul.f32 %v458, %v458
    %v497 = vsel %vm436, %v493, 0.0
    %v498 = vsel %vm436, %v494, 0.0
    %v499 = vadd.f32 %v497, %v498
    %v500 = vsel %vm436, %v495, 0.0
    %v501 = vadd.f32 %v499, %v500
    %v502 = vsel %vm436, %v496, 0.0
    %v503 = vadd.f32 %v501, %v502
    %v504 = vrot.slane %v503, 4
    %v505 = vadd.f32 %v503, %v504
    %v506 = vrot.slane %v505, 2
    %v507 = vadd.f32 %v505, %v506
    %v508 = vrot.slane %v507, 1
    %v509 = vadd.f32 %v507, %v508
    %vm510 = vcmask 1040384
    %v511 = vsel %vm510, %v492, %v509
    %vm512 = vcmask 517120
    %513 = vst.msk [vmem:[%s4] sm:$0x3] %vm512, %v511
  $region21: #{discriminator_forward.7} parent=0 // pred_fallthru
    _
  // Predicated region
  $region22: #{discriminator_forward.7} parent=0 // pred_check
    _
  $region23: #{discriminator_forward.7} parent=0 // pred_check_branch
    %515 = sbr.rel (0) target = $region25
  $region24: #{discriminator_forward.7} parent=0 // pred_region
    _
  $region25: #{discriminator_forward.7} parent=0 // pred_fallthru
    _
  // Predicated region
  $region26: #{discriminator_forward.7} parent=0 // pred_check
    _
  $region27: #{discriminator_forward.7} parent=0 // pred_check_branch
    %517 = sbr.rel (0) target = $region29
  $region28: #{discriminator_forward.7} parent=0 // pred_region
    _
  $region29: #{discriminator_forward.7} parent=0 // pred_fallthru
    _
  // Predicated region
  $region30: #{discriminator_forward.7} parent=0 // pred_check
    _
  $region31: #{discriminator_forward.7} parent=0 // pred_check_branch
    %519 = sbr.rel (0) target = $region33
  $region32: #{discriminator_forward.7} parent=0 // pred_region
    _
  $region33: #{discriminator_forward.7} parent=0 // pred_fallthru
    _
  // Predicated region
  $region34: #{discriminator_forward.7} parent=0 // pred_check
    _
  $region35: #{discriminator_forward.7} parent=0 // pred_check_branch
    %521 = sbr.rel (0) target = $region37
  $region36: #{discriminator_forward.7} parent=0 // pred_region
    _
  $region37: #{discriminator_forward.7} parent=0 // pred_fallthru
    _

</llo_original>
